<compile_context>
chip_gen: v7x
topology: tpu7x:2x2x1
jax: 0.10.0
libtpu: 0.0.40
codegen_flags: <defaults>
</compile_context>

<pallas_src>
import functools
import math

import jax
import jax.numpy as jnp
from jax.experimental import pallas as pl
from jax.experimental.pallas import tpu as pltpu

LN_EPS = 1e-5  # PyTorch nn.LayerNorm default


# ----------------------------------------------------------------------------
# Small helpers used inside kernels
# ----------------------------------------------------------------------------

def _ln(z, g, beta):
    mean = jnp.mean(z, axis=-1, keepdims=True)
    var = jnp.mean(jnp.square(z - mean), axis=-1, keepdims=True)
    return (z - mean) * jax.lax.rsqrt(var + LN_EPS) * g + beta


def _sum_keep2d(x):
    # full reduce of a 2-D tile, staying 2-D throughout -> (1, 1)
    return jnp.sum(jnp.sum(x, axis=1, keepdims=True), axis=0, keepdims=True)


# ----------------------------------------------------------------------------
# Pallas kernels
# ----------------------------------------------------------------------------

def _linear_kernel(x_ref, w_ref, b_ref, o_ref):
    o_ref[...] = (jnp.dot(x_ref[...], w_ref[...],
                          preferred_element_type=jnp.float32) + b_ref[...])


def pallas_linear(x, w, b2d):
    M = x.shape[0]
    N = w.shape[1]
    return pl.pallas_call(
        _linear_kernel,
        out_shape=jax.ShapeDtypeStruct((M, N), jnp.float32),
    )(x, w, b2d)


def _linear_res_ln_kernel(x_ref, w_ref, b_ref, res_ref, g_ref, beta_ref, o_ref):
    y = jnp.dot(x_ref[...], w_ref[...], preferred_element_type=jnp.float32) + b_ref[...]
    o_ref[...] = _ln(res_ref[...] + y, g_ref[...], beta_ref[...])


def pallas_linear_res_ln(x, w, b2d, res, g2d, beta2d):
    M = x.shape[0]
    N = w.shape[1]
    return pl.pallas_call(
        _linear_res_ln_kernel,
        out_shape=jax.ShapeDtypeStruct((M, N), jnp.float32),
    )(x, w, b2d, res, g2d, beta2d)


def _ff_kernel(x_ref, w1_ref, b1_ref, w2_ref, b2_ref, o_ref):
    h = jnp.maximum(
        jnp.dot(x_ref[...], w1_ref[...], preferred_element_type=jnp.float32) + b1_ref[...],
        0.0)
    o_ref[...] = jnp.dot(h, w2_ref[...], preferred_element_type=jnp.float32) + b2_ref[...]


def pallas_ff(x, w1, b1_2d, w2, b2_2d):
    M = x.shape[0]
    D = w2.shape[1]
    return pl.pallas_call(
        _ff_kernel,
        out_shape=jax.ShapeDtypeStruct((M, D), jnp.float32),
    )(x, w1, b1_2d, w2, b2_2d)


def _ff_res_ln_kernel(x_ref, w1_ref, b1_ref, w2_ref, b2_ref, g_ref, beta_ref, o_ref):
    x = x_ref[...]
    h = jnp.maximum(
        jnp.dot(x, w1_ref[...], preferred_element_type=jnp.float32) + b1_ref[...], 0.0)
    y = jnp.dot(h, w2_ref[...], preferred_element_type=jnp.float32) + b2_ref[...]
    o_ref[...] = _ln(x + y, g_ref[...], beta_ref[...])


def pallas_ff_res_ln(x, w1, b1_2d, w2, b2_2d, g2d, beta2d):
    M = x.shape[0]
    D = w2.shape[1]
    return pl.pallas_call(
        _ff_res_ln_kernel,
        out_shape=jax.ShapeDtypeStruct((M, D), jnp.float32),
    )(x, w1, b1_2d, w2, b2_2d, g2d, beta2d)


def _bias_mlp_kernel(sf_ref, w0_ref, b0_ref, w1_ref, b1_ref, bias_ref, norm_ref, *, L):
    # one attention-bias head per grid step (grid over heads, "parallel")
    h = jnp.maximum(
        jnp.dot(sf_ref[...], w0_ref[0], preferred_element_type=jnp.float32) + b0_ref[0],
        0.0)
    bias = jnp.dot(h, w1_ref[0], preferred_element_type=jnp.float32) + b1_ref[0]  # (B, L*L)
    bias_ref[0] = bias

    # L1 smoothness of the per-batch (L, L) bias map, on the flat lane layout:
    #   row diff (i vs i-1) == flat lane shift by L; col diff (j vs j-1) == shift
    #   by 1 with wrap positions (j==0) masked out.
    # TODO(synk): for large L use pltpu.roll along the lane axis instead of slices.
    d_row = jnp.abs(bias[:, L:] - bias[:, :-L])
    d_col = jnp.abs(bias[:, 1:] - bias[:, :-1])
    lane = jax.lax.broadcasted_iota(jnp.int32, d_col.shape, 1)
    col_valid = ((lane + 1) % L) != 0
    norm_ref[0] = _sum_keep2d(d_row) + _sum_keep2d(jnp.where(col_valid, d_col, 0.0))


def pallas_bias_mlp(sf, w0, b0, w1, b1, seq_len):
    B, dim_s = sf.shape
    H, _, hid = w0.shape
    LL = w1.shape[2]
    kernel = functools.partial(_bias_mlp_kernel, L=seq_len)
    bias, norms = pl.pallas_call(
        kernel,
        out_shape=(jax.ShapeDtypeStruct((H, B, LL), jnp.float32),
                   jax.ShapeDtypeStruct((H, 1, 1), jnp.float32)),
        grid=(H,),
        in_specs=[pl.BlockSpec((B, dim_s), lambda h: (0, 0)),
                  pl.BlockSpec((1, dim_s, hid), lambda h: (h, 0, 0)),
                  pl.BlockSpec((1, 1, hid), lambda h: (h, 0, 0)),
                  pl.BlockSpec((1, hid, LL), lambda h: (h, 0, 0)),
                  pl.BlockSpec((1, 1, LL), lambda h: (h, 0, 0))],
        out_specs=(pl.BlockSpec((1, B, LL), lambda h: (h, 0, 0)),
                   pl.BlockSpec((1, 1, 1), lambda h: (h, 0, 0))),
        compiler_params=pltpu.CompilerParams(dimension_semantics=("parallel",)),
    )(sf, w0, b0, w1, b1)
    return bias, norms


def _attn_kernel(qkv_ref, bias_ref, o_ref, *, num_heads, dk, inv_scale):
    qkv = qkv_ref[0]  # (L, 3*H*dk), columns ordered [q heads | k heads | v heads]
    outs = []
    for h in range(num_heads):  # small H, unrolled inside ONE kernel
        q = qkv[:, h * dk:(h + 1) * dk]
        k = qkv[:, (num_heads + h) * dk:(num_heads + h + 1) * dk]
        v = qkv[:, (2 * num_heads + h) * dk:(2 * num_heads + h + 1) * dk]
        b = bias_ref[h, 0]                                   # (L, L)
        s = jnp.dot(q, k.T, preferred_element_type=jnp.float32) * inv_scale
        m = jnp.max(s, axis=-1, keepdims=True)
        e = jnp.exp(s - m)
        p = e * pl.reciprocal(jnp.sum(e, axis=-1, keepdims=True), approx=True)
        att = p + b                                          # add_mode == 0
        outs.append(jnp.dot(att, v, preferred_element_type=jnp.float32))
    o_ref[0] = jnp.concatenate(outs, axis=-1)                # lane-dense (L, H*dk)


def pallas_attention(qkv, bias4, num_heads, dk):
    B, L, C = qkv.shape
    kernel = functools.partial(_attn_kernel, num_heads=num_heads, dk=dk,
                               inv_scale=1.0 / math.sqrt(dk))
    return pl.pallas_call(
        kernel,
        out_shape=jax.ShapeDtypeStruct((B, L, num_heads * dk), jnp.float32),
        grid=(B,),
        in_specs=[pl.BlockSpec((1, L, C), lambda b: (b, 0, 0)),
                  pl.BlockSpec((num_heads, 1, L, L), lambda b: (0, b, 0, 0))],
        out_specs=pl.BlockSpec((1, L, num_heads * dk), lambda b: (b, 0, 0)),
        compiler_params=pltpu.CompilerParams(dimension_semantics=("parallel",)),
    )(qkv, bias4)


def _county_pool_fc_kernel(sf_ref, w1_ref, b1_ref, w2_ref, b2_ref,
                           src_ref, wfc_ref, bfc_ref, o_ref, n_ref, *, batch):
    c1 = jnp.maximum(
        jnp.dot(sf_ref[...], w1_ref[...], preferred_element_type=jnp.float32) + b1_ref[...],
        0.0)
    c2 = jnp.dot(c1, w2_ref[...], preferred_element_type=jnp.float32) + b2_ref[...]  # (B, L)
    n_ref[...] = _sum_keep2d(jnp.abs(c2[:, 1:] - c2[:, :-1]))
    rows = []
    for b in range(batch):  # state[b, :] = sum_l c2[b, l] * src[b, l, :]
        rows.append(jnp.dot(c2[b:b + 1, :], src_ref[b],
                            preferred_element_type=jnp.float32))
    last = jnp.maximum(jnp.concatenate(rows, axis=0), 0.0)    # relu
    o_ref[...] = (jnp.dot(last, wfc_ref[...], preferred_element_type=jnp.float32)
                  + bfc_ref[...])


def pallas_county_pool_fc(sf, w1, b1_2d, w2, b2_2d, src, wfc, bfc_2d):
    B = src.shape[0]
    kernel = functools.partial(_county_pool_fc_kernel, batch=B)
    out, norm = pl.pallas_call(
        kernel,
        out_shape=(jax.ShapeDtypeStruct((B, 1), jnp.float32),
                   jax.ShapeDtypeStruct((1, 1), jnp.float32)),
    )(sf, w1, b1_2d, w2, b2_2d, src, wfc, bfc_2d)
    return out, norm[0, 0]


# ----------------------------------------------------------------------------
# Parameter init (deterministic; only the parameters used by the default
# forward path are materialized).  Biases are stored 2-D for broadcasting.
# ----------------------------------------------------------------------------

def _init_linear(key, d_in, d_out, scale=0.1):
    kw, kb = jax.random.split(key)
    return {"w": jax.random.normal(kw, (d_in, d_out), jnp.float32) * scale,
            "b": jax.random.normal(kb, (1, d_out), jnp.float32) * scale}


def _init_ln(dim):
    return {"g": jnp.ones((1, dim), jnp.float32),
            "b": jnp.zeros((1, dim), jnp.float32)}


def init_mha(key, num_heads, dim_in, dim_model, dk, dim_s, seq_len, bias_hidden=1024):
    # TODO(synk): agg / agg_eps / b1(cpe) / q_cpe / k_cpe of AttentionBiasHead are
    # dead code for pos=None & add_mode==0 and are not materialized.
    ks = jax.random.split(key, 6)
    s = 0.1
    LL = seq_len * seq_len
    return {
        # per-head q/k/v Linear weights stacked column-wise: [q heads | k heads | v heads]
        "w_qkv": jax.random.normal(ks[0], (dim_in, 3 * num_heads * dk), jnp.float32) * s,
        "b_qkv": jax.random.normal(ks[1], (1, 3 * num_heads * dk), jnp.float32) * s,
        # per-head bias MLP Linear(dim_s,1024) -> ReLU -> Linear(1024, L*L), head-stacked
        "w_b0": jax.random.normal(ks[2], (num_heads, dim_s, bias_hidden), jnp.float32) * s,
        "b_b0": jax.random.normal(ks[3], (num_heads, 1, bias_hidden), jnp.float32) * s,
        "w_b1": jax.random.normal(ks[4], (num_heads, bias_hidden, LL), jnp.float32) * s,
        "b_b1": jax.random.normal(ks[5], (num_heads, 1, LL), jnp.float32) * s,
        # output projection Linear(H*dk, dim_model)
        "out": _init_linear(jax.random.fold_in(key, 7), num_heads * dk, dim_model),
    }


def init_ff(key, d_model, d_ff):
    k1, k2 = jax.random.split(key)
    return {"l1": _init_linear(k1, d_model, d_ff),
            "l2": _init_linear(k2, d_ff, d_model)}


def init_layer(key, dim_model, num_heads, d_ff, dim_s, seq_len):
    dk = max(dim_model // num_heads, 1)
    k1, k2 = jax.random.split(key)
    return {"mha": init_mha(k1, num_heads, dim_model, dim_model, dk, dim_s, seq_len),
            "ln1": _init_ln(dim_model),
            "ff": init_ff(k2, dim_model, d_ff),
            "ln2": _init_ln(dim_model)}


def init_net(key, num_layers, dim_in, dim_model, num_heads, d_ff, dim_s, seq_len):
    # TODO(synk): pos_emb / id_emb / cls_fc / first_layer / last_layer1-2 are unused
    # for the default forward (pos=None, use_cls=0, use_id=False, first_layer_mode=1,
    # last_layer_mode=0) and are not materialized.
    dk = dim_model // num_heads
    ks = jax.random.split(key, num_layers + 5)
    return {
        "first_mha": init_mha(ks[0], num_heads, dim_in, dim_model, dk, dim_s, seq_len),
        "first_ff": init_ff(ks[1], dim_model, d_ff),
        "layers": [init_layer(ks[2 + i], dim_model, num_heads, d_ff, dim_s, seq_len)
                   for i in range(num_layers)],
        "fc_county_1": _init_linear(ks[num_layers + 2], dim_s, seq_len * 4),
        "fc_county_2": _init_linear(ks[num_layers + 3], seq_len * 4, seq_len),
        "fc": _init_linear(ks[num_layers + 4], dim_model, 1),
    }


# ----------------------------------------------------------------------------
# Forward pass (eval-mode dropout; mirrors the PyTorch module structure)
# ----------------------------------------------------------------------------

def mha_block(p, src, sf, num_heads, dk, seq_len):
    """Fused MultiHeadAttentionBias (before output projection)."""
    B, L, d_in = src.shape
    qkv = pallas_linear(src.reshape(B * L, d_in), p["w_qkv"], p["b_qkv"]).reshape(B, L, -1)
    bias_flat, head_norms = pallas_bias_mlp(sf, p["w_b0"], p["b_b0"],
                                            p["w_b1"], p["b_b1"], seq_len)
    bias4 = bias_flat.reshape(num_heads, B, L, L)
    hidden = pallas_attention(qkv, bias4, num_heads, dk)      # (B, L, H*dk)
    return hidden, jnp.sum(head_norms)


def encoder_forward(params, src, sf, num_heads, dk, seq_len):
    B, L, _ = src.shape
    dm = params["first_mha"]["out"]["w"].shape[1]

    # first_layer_mode == 1, diff_dim == True: MHA (no residual/LN) then plain FF
    hidden, norm = mha_block(params["first_mha"], src, sf, num_heads, dk, seq_len)
    out2d = pallas_linear(hidden.reshape(B * L, -1),
                          params["first_mha"]["out"]["w"], params["first_mha"]["out"]["b"])
    src2d = pallas_ff(out2d,
                      params["first_ff"]["l1"]["w"], params["first_ff"]["l1"]["b"],
                      params["first_ff"]["l2"]["w"], params["first_ff"]["l2"]["b"])
    src = src2d.reshape(B, L, dm)
    total = norm

    for lp in params["layers"]:
        hidden, norm = mha_block(lp["mha"], src, sf, num_heads, dk, seq_len)
        # Residual_MH: LayerNorm(src + Linear(hidden))   (dropout = identity)
        src2d = pallas_linear_res_ln(hidden.reshape(B * L, -1),
                                     lp["mha"]["out"]["w"], lp["mha"]["out"]["b"],
                                     src.reshape(B * L, dm),
                                     lp["ln1"]["g"], lp["ln1"]["b"])
        # Residual_FF: LayerNorm(x + FF(x))
        src2d = pallas_ff_res_ln(src2d,
                                 lp["ff"]["l1"]["w"], lp["ff"]["l1"]["b"],
                                 lp["ff"]["l2"]["w"], lp["ff"]["l2"]["b"],
                                 lp["ln2"]["g"], lp["ln2"]["b"])
        src = src2d.reshape(B, L, dm)
        total = total + norm
    # last_layer_mode == 0: pass
    return src, total


def net_forward(params, src, sf, county_id, num_heads, dk, seq_len):
    del county_id  # use_id = False
    src, total_norm = encoder_forward(params, src, sf, num_heads, dk, seq_len)
    out, county_norm = pallas_county_pool_fc(
        sf,
        params["fc_county_1"]["w"], params["fc_county_1"]["b"],
        params["fc_county_2"]["w"], params["fc_county_2"]["b"],
        src, params["fc"]["w"], params["fc"]["b"])
    return out, county_norm + total_norm


# ----------------------------------------------------------------------------

if __name__ == "__main__":
    NUM_LAYERS = 2
    DIM_IN = 8
    DIM_MODEL = 32
    NUM_HEADS = 4          # dim_q = dim_k = 8
    DIM_FF = 64
    DIM_S = 8
    SEQ_LEN = 8
    BATCH = 2
    DK = DIM_MODEL // NUM_HEADS

    key = jax.random.PRNGKey(0)
    kp, kx, ks = jax.random.split(key, 3)
    params = init_net(kp, NUM_LAYERS, DIM_IN, DIM_MODEL, NUM_HEADS,
                      DIM_FF, DIM_S, SEQ_LEN)

    src = jax.random.normal(kx, (BATCH, SEQ_LEN, DIM_IN), jnp.float32)
    sf = jax.random.normal(ks, (BATCH, DIM_S), jnp.float32)
    county_id = jnp.zeros((BATCH,), jnp.int32)

    fwd = jax.jit(lambda s, f, c: net_forward(params, s, f, c, NUM_HEADS, DK, SEQ_LEN))
    out, total_norm = fwd(src, sf, county_id)
    jax.block_until_ready((out, total_norm))

    assert out.shape == (BATCH, 1)
    assert total_norm.shape == ()
    print("KERNEL_OK")
</pallas_src>

<mosaic_0001>
module attributes {stable_mosaic.version = 11 : i64} {
  func.func @_attn_kernel(%arg0: i32, %arg1: memref<1x8x96xf32, #tpu.memory_space<vmem>>, %arg2: memref<4x1x8x8xf32, #tpu.memory_space<vmem>>, %arg3: memref<1x8x32xf32, #tpu.memory_space<vmem>>) attributes {dimension_semantics = [#tpu.dimension_semantics<parallel>], iteration_bounds = array<i64: 2>, scalar_prefetch = 0 : i64, scratch_operands = 0 : i64, tpu.core_type = #tpu.core_type<tc>, window_params = [{transform_indices = @transform_0, window_bounds = array<i64: 1, 8, 96>}, {transform_indices = @transform_1, window_bounds = array<i64: 4, 1, 8, 8>}, {transform_indices = @transform_2, window_bounds = array<i64: 1, 8, 32>}]} {
    %c0 = arith.constant 0 : index
    %c0_0 = arith.constant 0 : index
    %c0_1 = arith.constant 0 : index
    %0 = vector.load %arg1[%c0, %c0_0, %c0_1] : memref<1x8x96xf32, #tpu.memory_space<vmem>>, vector<1x8x96xf32>
    %1 = vector.shape_cast %0 : vector<1x8x96xf32> to vector<8x96xf32>
    %2 = vector.extract_strided_slice %1 {offsets = [0, 0], sizes = [8, 8], strides = [1, 1]} : vector<8x96xf32> to vector<8x8xf32>
    %3 = vector.extract_strided_slice %1 {offsets = [0, 32], sizes = [8, 8], strides = [1, 1]} : vector<8x96xf32> to vector<8x8xf32>
    %4 = vector.extract_strided_slice %1 {offsets = [0, 64], sizes = [8, 8], strides = [1, 1]} : vector<8x96xf32> to vector<8x8xf32>
    %c0_2 = arith.constant 0 : index
    %c0_3 = arith.constant 0 : index
    %c0_4 = arith.constant 0 : index
    %c0_5 = arith.constant 0 : index
    %5 = vector.load %arg2[%c0_2, %c0_3, %c0_4, %c0_5] : memref<4x1x8x8xf32, #tpu.memory_space<vmem>>, vector<1x1x8x8xf32>
    %6 = vector.shape_cast %5 : vector<1x1x8x8xf32> to vector<8x8xf32>
    %7 = tpu.transpose %3, [1, 0] : vector<8x8xf32> -> vector<8x8xf32>
    %cst = arith.constant dense<0.000000e+00> : vector<8x8xf32>
    %8 = tpu.matmul %2, %7, %cst {dimension_numbers = #tpu.dot_dimension_numbers<[1], [0], [0], [1], [0, 0, 1, 1], [], []>} : vector<8x8xf32>, vector<8x8xf32>, vector<8x8xf32> -> vector<8x8xf32>
    %cst_6 = arith.constant 0.353553385 : f32
    %9 = vector.broadcast %cst_6 : f32 to vector<8x8xf32>
    %10 = arith.mulf %8, %9 : vector<8x8xf32>
    %cst_7 = arith.constant dense<0xFF800000> : vector<8xf32>
    %11 = vector.multi_reduction <maximumf>, %10, %cst_7 [1] : vector<8x8xf32> to vector<8xf32>
    %12 = vector.shape_cast %11 : vector<8xf32> to vector<8x1xf32>
    %13 = vector.broadcast %12 : vector<8x1xf32> to vector<8x8xf32>
    %14 = arith.subf %10, %13 : vector<8x8xf32>
    %15 = math.exp %14 : vector<8x8xf32>
    %cst_8 = arith.constant dense<0.000000e+00> : vector<8xf32>
    %16 = vector.multi_reduction <add>, %15, %cst_8 [1] : vector<8x8xf32> to vector<8xf32>
    %17 = vector.shape_cast %16 : vector<8xf32> to vector<8x1xf32>
    %18 = tpu.reciprocal %17 {approx = true} : vector<8x1xf32> -> vector<8x1xf32>
    %19 = vector.broadcast %18 : vector<8x1xf32> to vector<8x8xf32>
    %20 = arith.mulf %15, %19 : vector<8x8xf32>
    %21 = arith.addf %20, %6 : vector<8x8xf32>
    %cst_9 = arith.constant dense<0.000000e+00> : vector<8x8xf32>
    %22 = tpu.matmul %21, %4, %cst_9 {dimension_numbers = #tpu.dot_dimension_numbers<[1], [0], [0], [1], [0, 0, 1, 1], [], []>} : vector<8x8xf32>, vector<8x8xf32>, vector<8x8xf32> -> vector<8x8xf32>
    %23 = vector.extract_strided_slice %1 {offsets = [0, 8], sizes = [8, 8], strides = [1, 1]} : vector<8x96xf32> to vector<8x8xf32>
    %24 = vector.extract_strided_slice %1 {offsets = [0, 40], sizes = [8, 8], strides = [1, 1]} : vector<8x96xf32> to vector<8x8xf32>
    %25 = vector.extract_strided_slice %1 {offsets = [0, 72], sizes = [8, 8], strides = [1, 1]} : vector<8x96xf32> to vector<8x8xf32>
    %c1 = arith.constant 1 : index
    %c0_10 = arith.constant 0 : index
    %c0_11 = arith.constant 0 : index
    %c0_12 = arith.constant 0 : index
    %26 = vector.load %arg2[%c1, %c0_10, %c0_11, %c0_12] : memref<4x1x8x8xf32, #tpu.memory_space<vmem>>, vector<1x1x8x8xf32>
    %27 = vector.shape_cast %26 : vector<1x1x8x8xf32> to vector<8x8xf32>
    %28 = tpu.transpose %24, [1, 0] : vector<8x8xf32> -> vector<8x8xf32>
    %cst_13 = arith.constant dense<0.000000e+00> : vector<8x8xf32>
    %29 = tpu.matmul %23, %28, %cst_13 {dimension_numbers = #tpu.dot_dimension_numbers<[1], [0], [0], [1], [0, 0, 1, 1], [], []>} : vector<8x8xf32>, vector<8x8xf32>, vector<8x8xf32> -> vector<8x8xf32>
    %cst_14 = arith.constant 0.353553385 : f32
    %30 = vector.broadcast %cst_14 : f32 to vector<8x8xf32>
    %31 = arith.mulf %29, %30 : vector<8x8xf32>
    %cst_15 = arith.constant dense<0xFF800000> : vector<8xf32>
    %32 = vector.multi_reduction <maximumf>, %31, %cst_15 [1] : vector<8x8xf32> to vector<8xf32>
    %33 = vector.shape_cast %32 : vector<8xf32> to vector<8x1xf32>
    %34 = vector.broadcast %33 : vector<8x1xf32> to vector<8x8xf32>
    %35 = arith.subf %31, %34 : vector<8x8xf32>
    %36 = math.exp %35 : vector<8x8xf32>
    %cst_16 = arith.constant dense<0.000000e+00> : vector<8xf32>
    %37 = vector.multi_reduction <add>, %36, %cst_16 [1] : vector<8x8xf32> to vector<8xf32>
    %38 = vector.shape_cast %37 : vector<8xf32> to vector<8x1xf32>
    %39 = tpu.reciprocal %38 {approx = true} : vector<8x1xf32> -> vector<8x1xf32>
    %40 = vector.broadcast %39 : vector<8x1xf32> to vector<8x8xf32>
    %41 = arith.mulf %36, %40 : vector<8x8xf32>
    %42 = arith.addf %41, %27 : vector<8x8xf32>
    %cst_17 = arith.constant dense<0.000000e+00> : vector<8x8xf32>
    %43 = tpu.matmul %42, %25, %cst_17 {dimension_numbers = #tpu.dot_dimension_numbers<[1], [0], [0], [1], [0, 0, 1, 1], [], []>} : vector<8x8xf32>, vector<8x8xf32>, vector<8x8xf32> -> vector<8x8xf32>
    %44 = vector.extract_strided_slice %1 {offsets = [0, 16], sizes = [8, 8], strides = [1, 1]} : vector<8x96xf32> to vector<8x8xf32>
    %45 = vector.extract_strided_slice %1 {offsets = [0, 48], sizes = [8, 8], strides = [1, 1]} : vector<8x96xf32> to vector<8x8xf32>
    %46 = vector.extract_strided_slice %1 {offsets = [0, 80], sizes = [8, 8], strides = [1, 1]} : vector<8x96xf32> to vector<8x8xf32>
    %c2 = arith.constant 2 : index
    %c0_18 = arith.constant 0 : index
    %c0_19 = arith.constant 0 : index
    %c0_20 = arith.constant 0 : index
    %47 = vector.load %arg2[%c2, %c0_18, %c0_19, %c0_20] : memref<4x1x8x8xf32, #tpu.memory_space<vmem>>, vector<1x1x8x8xf32>
    %48 = vector.shape_cast %47 : vector<1x1x8x8xf32> to vector<8x8xf32>
    %49 = tpu.transpose %45, [1, 0] : vector<8x8xf32> -> vector<8x8xf32>
    %cst_21 = arith.constant dense<0.000000e+00> : vector<8x8xf32>
    %50 = tpu.matmul %44, %49, %cst_21 {dimension_numbers = #tpu.dot_dimension_numbers<[1], [0], [0], [1], [0, 0, 1, 1], [], []>} : vector<8x8xf32>, vector<8x8xf32>, vector<8x8xf32> -> vector<8x8xf32>
    %cst_22 = arith.constant 0.353553385 : f32
    %51 = vector.broadcast %cst_22 : f32 to vector<8x8xf32>
    %52 = arith.mulf %50, %51 : vector<8x8xf32>
    %cst_23 = arith.constant dense<0xFF800000> : vector<8xf32>
    %53 = vector.multi_reduction <maximumf>, %52, %cst_23 [1] : vector<8x8xf32> to vector<8xf32>
    %54 = vector.shape_cast %53 : vector<8xf32> to vector<8x1xf32>
    %55 = vector.broadcast %54 : vector<8x1xf32> to vector<8x8xf32>
    %56 = arith.subf %52, %55 : vector<8x8xf32>
    %57 = math.exp %56 : vector<8x8xf32>
    %cst_24 = arith.constant dense<0.000000e+00> : vector<8xf32>
    %58 = vector.multi_reduction <add>, %57, %cst_24 [1] : vector<8x8xf32> to vector<8xf32>
    %59 = vector.shape_cast %58 : vector<8xf32> to vector<8x1xf32>
    %60 = tpu.reciprocal %59 {approx = true} : vector<8x1xf32> -> vector<8x1xf32>
    %61 = vector.broadcast %60 : vector<8x1xf32> to vector<8x8xf32>
    %62 = arith.mulf %57, %61 : vector<8x8xf32>
    %63 = arith.addf %62, %48 : vector<8x8xf32>
    %cst_25 = arith.constant dense<0.000000e+00> : vector<8x8xf32>
    %64 = tpu.matmul %63, %46, %cst_25 {dimension_numbers = #tpu.dot_dimension_numbers<[1], [0], [0], [1], [0, 0, 1, 1], [], []>} : vector<8x8xf32>, vector<8x8xf32>, vector<8x8xf32> -> vector<8x8xf32>
    %65 = vector.extract_strided_slice %1 {offsets = [0, 24], sizes = [8, 8], strides = [1, 1]} : vector<8x96xf32> to vector<8x8xf32>
    %66 = vector.extract_strided_slice %1 {offsets = [0, 56], sizes = [8, 8], strides = [1, 1]} : vector<8x96xf32> to vector<8x8xf32>
    %67 = vector.extract_strided_slice %1 {offsets = [0, 88], sizes = [8, 8], strides = [1, 1]} : vector<8x96xf32> to vector<8x8xf32>
    %c3 = arith.constant 3 : index
    %c0_26 = arith.constant 0 : index
    %c0_27 = arith.constant 0 : index
    %c0_28 = arith.constant 0 : index
    %68 = vector.load %arg2[%c3, %c0_26, %c0_27, %c0_28] : memref<4x1x8x8xf32, #tpu.memory_space<vmem>>, vector<1x1x8x8xf32>
    %69 = vector.shape_cast %68 : vector<1x1x8x8xf32> to vector<8x8xf32>
    %70 = tpu.transpose %66, [1, 0] : vector<8x8xf32> -> vector<8x8xf32>
    %cst_29 = arith.constant dense<0.000000e+00> : vector<8x8xf32>
    %71 = tpu.matmul %65, %70, %cst_29 {dimension_numbers = #tpu.dot_dimension_numbers<[1], [0], [0], [1], [0, 0, 1, 1], [], []>} : vector<8x8xf32>, vector<8x8xf32>, vector<8x8xf32> -> vector<8x8xf32>
    %cst_30 = arith.constant 0.353553385 : f32
    %72 = vector.broadcast %cst_30 : f32 to vector<8x8xf32>
    %73 = arith.mulf %71, %72 : vector<8x8xf32>
    %cst_31 = arith.constant dense<0xFF800000> : vector<8xf32>
    %74 = vector.multi_reduction <maximumf>, %73, %cst_31 [1] : vector<8x8xf32> to vector<8xf32>
    %75 = vector.shape_cast %74 : vector<8xf32> to vector<8x1xf32>
    %76 = vector.broadcast %75 : vector<8x1xf32> to vector<8x8xf32>
    %77 = arith.subf %73, %76 : vector<8x8xf32>
    %78 = math.exp %77 : vector<8x8xf32>
    %cst_32 = arith.constant dense<0.000000e+00> : vector<8xf32>
    %79 = vector.multi_reduction <add>, %78, %cst_32 [1] : vector<8x8xf32> to vector<8xf32>
    %80 = vector.shape_cast %79 : vector<8xf32> to vector<8x1xf32>
    %81 = tpu.reciprocal %80 {approx = true} : vector<8x1xf32> -> vector<8x1xf32>
    %82 = vector.broadcast %81 : vector<8x1xf32> to vector<8x8xf32>
    %83 = arith.mulf %78, %82 : vector<8x8xf32>
    %84 = arith.addf %83, %69 : vector<8x8xf32>
    %cst_33 = arith.constant dense<0.000000e+00> : vector<8x8xf32>
    %85 = tpu.matmul %84, %67, %cst_33 {dimension_numbers = #tpu.dot_dimension_numbers<[1], [0], [0], [1], [0, 0, 1, 1], [], []>} : vector<8x8xf32>, vector<8x8xf32>, vector<8x8xf32> -> vector<8x8xf32>
    %86 = tpu.concatenate %22, %43, %64, %85 in 1 : vector<8x8xf32>, vector<8x8xf32>, vector<8x8xf32>, vector<8x8xf32> -> vector<8x32xf32>
    %c0_34 = arith.constant 0 : index
    %c0_35 = arith.constant 0 : index
    %c0_36 = arith.constant 0 : index
    %87 = vector.load %arg3[%c0_34, %c0_35, %c0_36] : memref<1x8x32xf32, #tpu.memory_space<vmem>>, vector<1x8x32xf32>
    %88 = vector.shape_cast %87 : vector<1x8x32xf32> to vector<8x32xf32>
    %89 = vector.shape_cast %86 : vector<8x32xf32> to vector<1x8x32xf32>
    tpu.vector_store %arg3[%c0_34, %c0_35, %c0_36], %89 {strides = array<i32>} : memref<1x8x32xf32, #tpu.memory_space<vmem>>, vector<1x8x32xf32>,
    return
  }
  func.func @transform_0(%arg0: i32) -> (i32, i32, i32) {
    %c0_i32 = arith.constant 0 : i32
    %c0_i32_0 = arith.constant 0 : i32
    %c0_i32_1 = arith.constant 0 : i32
    return %arg0, %c0_i32, %c0_i32_0 : i32, i32, i32
  }
  func.func @transform_1(%arg0: i32) -> (i32, i32, i32, i32) {
    %c0_i32 = arith.constant 0 : i32
    %c0_i32_0 = arith.constant 0 : i32
    %c0_i32_1 = arith.constant 0 : i32
    %c0_i32_2 = arith.constant 0 : i32
    return %c0_i32, %arg0, %c0_i32_0, %c0_i32_1 : i32, i32, i32, i32
  }
  func.func @transform_2(%arg0: i32) -> (i32, i32, i32) {
    %c0_i32 = arith.constant 0 : i32
    %c0_i32_0 = arith.constant 0 : i32
    %c0_i32_1 = arith.constant 0 : i32
    return %arg0, %c0_i32, %c0_i32_0 : i32, i32, i32
  }
}

module attributes {stable_mosaic.version = 11 : i64} {
  func.func @_linear_kernel(%arg0: memref<16x8xf32, #tpu.memory_space<vmem>>, %arg1: memref<8x96xf32, #tpu.memory_space<vmem>>, %arg2: memref<1x96xf32, #tpu.memory_space<vmem>>, %arg3: memref<16x96xf32, #tpu.memory_space<vmem>>) attributes {dimension_semantics = [], scalar_prefetch = 0 : i64, scratch_operands = 0 : i64, tpu.core_type = #tpu.core_type<tc>} {
    %c0 = arith.constant 0 : index
    %c0_0 = arith.constant 0 : index
    %0 = vector.load %arg0[%c0, %c0_0] : memref<16x8xf32, #tpu.memory_space<vmem>>, vector<16x8xf32>
    %c0_1 = arith.constant 0 : index
    %c0_2 = arith.constant 0 : index
    %1 = vector.load %arg1[%c0_1, %c0_2] : memref<8x96xf32, #tpu.memory_space<vmem>>, vector<8x96xf32>
    %cst = arith.constant dense<0.000000e+00> : vector<16x96xf32>
    %2 = tpu.matmul %0, %1, %cst {dimension_numbers = #tpu.dot_dimension_numbers<[1], [0], [0], [1], [0, 0, 1, 1], [], []>} : vector<16x8xf32>, vector<8x96xf32>, vector<16x96xf32> -> vector<16x96xf32>
    %c0_3 = arith.constant 0 : index
    %c0_4 = arith.constant 0 : index
    %3 = vector.load %arg2[%c0_3, %c0_4] : memref<1x96xf32, #tpu.memory_space<vmem>>, vector<1x96xf32>
    %4 = vector.broadcast %3 : vector<1x96xf32> to vector<16x96xf32>
    %5 = arith.addf %2, %4 : vector<16x96xf32>
    %c0_5 = arith.constant 0 : index
    %c0_6 = arith.constant 0 : index
    %6 = vector.load %arg3[%c0_5, %c0_6] : memref<16x96xf32, #tpu.memory_space<vmem>>, vector<16x96xf32>
    tpu.vector_store %arg3[%c0_5, %c0_6], %5 {strides = array<i32>} : memref<16x96xf32, #tpu.memory_space<vmem>>, vector<16x96xf32>,
    return
  }
}

module attributes {stable_mosaic.version = 11 : i64} {
  func.func @_bias_mlp_kernel(%arg0: i32, %arg1: memref<2x8xf32, #tpu.memory_space<vmem>>, %arg2: memref<1x8x1024xf32, #tpu.memory_space<vmem>>, %arg3: memref<1x1x1024xf32, #tpu.memory_space<vmem>>, %arg4: memref<1x1024x64xf32, #tpu.memory_space<vmem>>, %arg5: memref<1x1x64xf32, #tpu.memory_space<vmem>>, %arg6: memref<1x2x64xf32, #tpu.memory_space<vmem>>, %arg7: memref<1x1x1xf32, #tpu.memory_space<vmem>>) attributes {dimension_semantics = [#tpu.dimension_semantics<parallel>], iteration_bounds = array<i64: 4>, scalar_prefetch = 0 : i64, scratch_operands = 0 : i64, tpu.core_type = #tpu.core_type<tc>, window_params = [{pipeline_mode = #tpu.pipeline_mode<synchronous>, transform_indices = @transform_0, window_bounds = array<i64: 2, 8>}, {transform_indices = @transform_1, window_bounds = array<i64: 1, 8, 1024>}, {transform_indices = @transform_2, window_bounds = array<i64: 1, 1, 1024>}, {transform_indices = @transform_3, window_bounds = array<i64: 1, 1024, 64>}, {transform_indices = @transform_4, window_bounds = array<i64: 1, 1, 64>}, {transform_indices = @transform_5, window_bounds = array<i64: 1, 2, 64>}, {transform_indices = @transform_6, window_bounds = array<i64: 1, 1, 1>}]} {
    %c0 = arith.constant 0 : index
    %c0_0 = arith.constant 0 : index
    %0 = vector.load %arg1[%c0, %c0_0] : memref<2x8xf32, #tpu.memory_space<vmem>>, vector<2x8xf32>
    %c0_1 = arith.constant 0 : index
    %c0_2 = arith.constant 0 : index
    %c0_3 = arith.constant 0 : index
    %1 = vector.load %arg2[%c0_1, %c0_2, %c0_3] : memref<1x8x1024xf32, #tpu.memory_space<vmem>>, vector<1x8x1024xf32>
    %2 = vector.shape_cast %1 : vector<1x8x1024xf32> to vector<8x1024xf32>
    %cst = arith.constant dense<0.000000e+00> : vector<2x1024xf32>
    %3 = tpu.matmul %0, %2, %cst {dimension_numbers = #tpu.dot_dimension_numbers<[1], [0], [0], [1], [0, 0, 1, 1], [], []>} : vector<2x8xf32>, vector<8x1024xf32>, vector<2x1024xf32> -> vector<2x1024xf32>
    %c0_4 = arith.constant 0 : index
    %c0_5 = arith.constant 0 : index
    %c0_6 = arith.constant 0 : index
    %4 = vector.load %arg3[%c0_4, %c0_5, %c0_6] : memref<1x1x1024xf32, #tpu.memory_space<vmem>>, vector<1x1x1024xf32>
    %5 = vector.shape_cast %4 : vector<1x1x1024xf32> to vector<1x1024xf32>
    %6 = vector.broadcast %5 : vector<1x1024xf32> to vector<2x1024xf32>
    %7 = arith.addf %3, %6 : vector<2x1024xf32>
    %cst_7 = arith.constant 0.000000e+00 : f32
    %8 = vector.broadcast %cst_7 : f32 to vector<2x1024xf32>
    %9 = arith.maximumf %7, %8 : vector<2x1024xf32>
    %c0_8 = arith.constant 0 : index
    %c0_9 = arith.constant 0 : index
    %c0_10 = arith.constant 0 : index
    %10 = vector.load %arg4[%c0_8, %c0_9, %c0_10] : memref<1x1024x64xf32, #tpu.memory_space<vmem>>, vector<1x1024x64xf32>
    %11 = vector.shape_cast %10 : vector<1x1024x64xf32> to vector<1024x64xf32>
    %cst_11 = arith.constant dense<0.000000e+00> : vector<2x64xf32>
    %12 = tpu.matmul %9, %11, %cst_11 {dimension_numbers = #tpu.dot_dimension_numbers<[1], [0], [0], [1], [0, 0, 1, 1], [], []>} : vector<2x1024xf32>, vector<1024x64xf32>, vector<2x64xf32> -> vector<2x64xf32>
    %c0_12 = arith.constant 0 : index
    %c0_13 = arith.constant 0 : index
    %c0_14 = arith.constant 0 : index
    %13 = vector.load %arg5[%c0_12, %c0_13, %c0_14] : memref<1x1x64xf32, #tpu.memory_space<vmem>>, vector<1x1x64xf32>
    %14 = vector.shape_cast %13 : vector<1x1x64xf32> to vector<1x64xf32>
    %15 = vector.broadcast %14 : vector<1x64xf32> to vector<2x64xf32>
    %16 = arith.addf %12, %15 : vector<2x64xf32>
    %c0_15 = arith.constant 0 : index
    %c0_16 = arith.constant 0 : index
    %c0_17 = arith.constant 0 : index
    %17 = vector.load %arg6[%c0_15, %c0_16, %c0_17] : memref<1x2x64xf32, #tpu.memory_space<vmem>>, vector<1x2x64xf32>
    %18 = vector.shape_cast %17 : vector<1x2x64xf32> to vector<2x64xf32>
    %19 = vector.shape_cast %16 : vector<2x64xf32> to vector<1x2x64xf32>
    tpu.vector_store %arg6[%c0_15, %c0_16, %c0_17], %19 {strides = array<i32>} : memref<1x2x64xf32, #tpu.memory_space<vmem>>, vector<1x2x64xf32>,
    %20 = vector.extract_strided_slice %16 {offsets = [0, 8], sizes = [2, 56], strides = [1, 1]} : vector<2x64xf32> to vector<2x56xf32>
    %21 = vector.extract_strided_slice %16 {offsets = [0, 0], sizes = [2, 56], strides = [1, 1]} : vector<2x64xf32> to vector<2x56xf32>
    %22 = arith.subf %20, %21 : vector<2x56xf32>
    %23 = math.absf %22 : vector<2x56xf32>
    %24 = vector.extract_strided_slice %16 {offsets = [0, 1], sizes = [2, 63], strides = [1, 1]} : vector<2x64xf32> to vector<2x63xf32>
    %25 = vector.extract_strided_slice %16 {offsets = [0, 0], sizes = [2, 63], strides = [1, 1]} : vector<2x64xf32> to vector<2x63xf32>
    %26 = arith.subf %24, %25 : vector<2x63xf32>
    %27 = math.absf %26 : vector<2x63xf32>
    %28 = tpu.iota {dimensions = array<i32: 1>} : vector<2x63xi32>
    %c1_i32 = arith.constant 1 : i32
    %29 = vector.broadcast %c1_i32 : i32 to vector<2x63xi32>
    %30 = arith.addi %28, %29 : vector<2x63xi32>
    %c8_i32 = arith.constant 8 : i32
    %c0_i32 = arith.constant 0 : i32
    %31 = arith.cmpi eq, %c8_i32, %c0_i32 : i32
    %c1_i32_18 = arith.constant 1 : i32
    %32 = arith.select %31, %c1_i32_18, %c8_i32 : i32
    %33 = vector.broadcast %32 : i32 to vector<2x63xi32>
    %34 = arith.remsi %30, %33 : vector<2x63xi32>
    %c0_i32_19 = arith.constant 0 : i32
    %35 = vector.broadcast %c0_i32_19 : i32 to vector<2x63xi32>
    %36 = arith.cmpi ne, %34, %35 : vector<2x63xi32>
    %c0_i32_20 = arith.constant 0 : i32
    %37 = vector.broadcast %c0_i32_20 : i32 to vector<2x63xi32>
    %38 = arith.cmpi slt, %34, %37 : vector<2x63xi32>
    %c0_i32_21 = arith.constant 0 : i32
    %39 = arith.cmpi slt, %32, %c0_i32_21 : i32
    %40 = vector.broadcast %39 : i1 to vector<2x63xi1>
    %41 = vector.broadcast %40 : vector<2x63xi1> to vector<2x63xi1>
    %42 = arith.xori %38, %41 : vector<2x63xi1>
    %43 = arith.andi %42, %36 : vector<2x63xi1>
    %44 = vector.broadcast %32 : i32 to vector<2x63xi32>
    %45 = arith.addi %34, %44 : vector<2x63xi32>
    %46 = arith.select %43, %45, %34 : vector<2x63xi1>, vector<2x63xi32>
    %c0_i32_22 = arith.constant 0 : i32
    %47 = vector.broadcast %c0_i32_22 : i32 to vector<2x63xi32>
    %48 = arith.cmpi ne, %46, %47 : vector<2x63xi32>
    %cst_23 = arith.constant dense<0.000000e+00> : vector<2xf32>
    %49 = vector.multi_reduction <add>, %23, %cst_23 [1] : vector<2x56xf32> to vector<2xf32>
    %50 = vector.shape_cast %49 : vector<2xf32> to vector<2x1xf32>
    %cst_24 = arith.constant dense<0.000000e+00> : vector<1xf32>
    %51 = vector.multi_reduction <add>, %50, %cst_24 [0] : vector<2x1xf32> to vector<1xf32>
    %52 = vector.shape_cast %51 : vector<1xf32> to vector<1x1xf32>
    %cst_25 = arith.constant 0.000000e+00 : f32
    %53 = vector.broadcast %cst_25 : f32 to vector<2x63xf32>
    %54 = arith.select %48, %27, %53 : vector<2x63xi1>, vector<2x63xf32>
    %cst_26 = arith.constant dense<0.000000e+00> : vector<2xf32>
    %55 = vector.multi_reduction <add>, %54, %cst_26 [1] : vector<2x63xf32> to vector<2xf32>
    %56 = vector.shape_cast %55 : vector<2xf32> to vector<2x1xf32>
    %cst_27 = arith.constant dense<0.000000e+00> : vector<1xf32>
    %57 = vector.multi_reduction <add>, %56, %cst_27 [0] : vector<2x1xf32> to vector<1xf32>
    %58 = vector.shape_cast %57 : vector<1xf32> to vector<1x1xf32>
    %59 = arith.addf %52, %58 : vector<1x1xf32>
    %c0_28 = arith.constant 0 : index
    %c0_29 = arith.constant 0 : index
    %c0_30 = arith.constant 0 : index
    %60 = vector.load %arg7[%c0_28, %c0_29, %c0_30] : memref<1x1x1xf32, #tpu.memory_space<vmem>>, vector<1x1x1xf32>
    %61 = vector.shape_cast %60 : vector<1x1x1xf32> to vector<1x1xf32>
    %62 = vector.shape_cast %59 : vector<1x1xf32> to vector<1x1x1xf32>
    tpu.vector_store %arg7[%c0_28, %c0_29, %c0_30], %62 {strides = array<i32>} : memref<1x1x1xf32, #tpu.memory_space<vmem>>, vector<1x1x1xf32>,
    return
  }
  func.func @transform_0(%arg0: i32) -> (i32, i32) {
    %c0_i32 = arith.constant 0 : i32
    %c0_i32_0 = arith.constant 0 : i32
    %c0_i32_1 = arith.constant 0 : i32
    return %c0_i32, %c0_i32_0 : i32, i32
  }
  func.func @transform_1(%arg0: i32) -> (i32, i32, i32) {
    %c0_i32 = arith.constant 0 : i32
    %c0_i32_0 = arith.constant 0 : i32
    %c0_i32_1 = arith.constant 0 : i32
    return %arg0, %c0_i32, %c0_i32_0 : i32, i32, i32
  }
  func.func @transform_2(%arg0: i32) -> (i32, i32, i32) {
    %c0_i32 = arith.constant 0 : i32
    %c0_i32_0 = arith.constant 0 : i32
    %c0_i32_1 = arith.constant 0 : i32
    return %arg0, %c0_i32, %c0_i32_0 : i32, i32, i32
  }
  func.func @transform_3(%arg0: i32) -> (i32, i32, i32) {
    %c0_i32 = arith.constant 0 : i32
    %c0_i32_0 = arith.constant 0 : i32
    %c0_i32_1 = arith.constant 0 : i32
    return %arg0, %c0_i32, %c0_i32_0 : i32, i32, i32
  }
  func.func @transform_4(%arg0: i32) -> (i32, i32, i32) {
    %c0_i32 = arith.constant 0 : i32
    %c0_i32_0 = arith.constant 0 : i32
    %c0_i32_1 = arith.constant 0 : i32
    return %arg0, %c0_i32, %c0_i32_0 : i32, i32, i32
  }
  func.func @transform_5(%arg0: i32) -> (i32, i32, i32) {
    %c0_i32 = arith.constant 0 : i32
    %c0_i32_0 = arith.constant 0 : i32
    %c0_i32_1 = arith.constant 0 : i32
    return %arg0, %c0_i32, %c0_i32_0 : i32, i32, i32
  }
  func.func @transform_6(%arg0: i32) -> (i32, i32, i32) {
    %c0_i32 = arith.constant 0 : i32
    %c0_i32_0 = arith.constant 0 : i32
    %c0_i32_1 = arith.constant 0 : i32
    return %arg0, %c0_i32, %c0_i32_0 : i32, i32, i32
  }
}

module attributes {stable_mosaic.version = 11 : i64} {
  func.func @_ff_kernel(%arg0: memref<16x32xf32, #tpu.memory_space<vmem>>, %arg1: memref<32x64xf32, #tpu.memory_space<vmem>>, %arg2: memref<1x64xf32, #tpu.memory_space<vmem>>, %arg3: memref<64x32xf32, #tpu.memory_space<vmem>>, %arg4: memref<1x32xf32, #tpu.memory_space<vmem>>, %arg5: memref<16x32xf32, #tpu.memory_space<vmem>>) attributes {dimension_semantics = [], scalar_prefetch = 0 : i64, scratch_operands = 0 : i64, tpu.core_type = #tpu.core_type<tc>} {
    %c0 = arith.constant 0 : index
    %c0_0 = arith.constant 0 : index
    %0 = vector.load %arg0[%c0, %c0_0] : memref<16x32xf32, #tpu.memory_space<vmem>>, vector<16x32xf32>
    %c0_1 = arith.constant 0 : index
    %c0_2 = arith.constant 0 : index
    %1 = vector.load %arg1[%c0_1, %c0_2] : memref<32x64xf32, #tpu.memory_space<vmem>>, vector<32x64xf32>
    %cst = arith.constant dense<0.000000e+00> : vector<16x64xf32>
    %2 = tpu.matmul %0, %1, %cst {dimension_numbers = #tpu.dot_dimension_numbers<[1], [0], [0], [1], [0, 0, 1, 1], [], []>} : vector<16x32xf32>, vector<32x64xf32>, vector<16x64xf32> -> vector<16x64xf32>
    %c0_3 = arith.constant 0 : index
    %c0_4 = arith.constant 0 : index
    %3 = vector.load %arg2[%c0_3, %c0_4] : memref<1x64xf32, #tpu.memory_space<vmem>>, vector<1x64xf32>
    %4 = vector.broadcast %3 : vector<1x64xf32> to vector<16x64xf32>
    %5 = arith.addf %2, %4 : vector<16x64xf32>
    %cst_5 = arith.constant 0.000000e+00 : f32
    %6 = vector.broadcast %cst_5 : f32 to vector<16x64xf32>
    %7 = arith.maximumf %5, %6 : vector<16x64xf32>
    %c0_6 = arith.constant 0 : index
    %c0_7 = arith.constant 0 : index
    %8 = vector.load %arg3[%c0_6, %c0_7] : memref<64x32xf32, #tpu.memory_space<vmem>>, vector<64x32xf32>
    %cst_8 = arith.constant dense<0.000000e+00> : vector<16x32xf32>
    %9 = tpu.matmul %7, %8, %cst_8 {dimension_numbers = #tpu.dot_dimension_numbers<[1], [0], [0], [1], [0, 0, 1, 1], [], []>} : vector<16x64xf32>, vector<64x32xf32>, vector<16x32xf32> -> vector<16x32xf32>
    %c0_9 = arith.constant 0 : index
    %c0_10 = arith.constant 0 : index
    %10 = vector.load %arg4[%c0_9, %c0_10] : memref<1x32xf32, #tpu.memory_space<vmem>>, vector<1x32xf32>
    %11 = vector.broadcast %10 : vector<1x32xf32> to vector<16x32xf32>
    %12 = arith.addf %9, %11 : vector<16x32xf32>
    %c0_11 = arith.constant 0 : index
    %c0_12 = arith.constant 0 : index
    %13 = vector.load %arg5[%c0_11, %c0_12] : memref<16x32xf32, #tpu.memory_space<vmem>>, vector<16x32xf32>
    tpu.vector_store %arg5[%c0_11, %c0_12], %12 {strides = array<i32>} : memref<16x32xf32, #tpu.memory_space<vmem>>, vector<16x32xf32>,
    return
  }
}

module attributes {stable_mosaic.version = 11 : i64} {
  func.func @_linear_kernel(%arg0: memref<16x32xf32, #tpu.memory_space<vmem>>, %arg1: memref<32x32xf32, #tpu.memory_space<vmem>>, %arg2: memref<1x32xf32, #tpu.memory_space<vmem>>, %arg3: memref<16x32xf32, #tpu.memory_space<vmem>>) attributes {dimension_semantics = [], scalar_prefetch = 0 : i64, scratch_operands = 0 : i64, tpu.core_type = #tpu.core_type<tc>} {
    %c0 = arith.constant 0 : index
    %c0_0 = arith.constant 0 : index
    %0 = vector.load %arg0[%c0, %c0_0] : memref<16x32xf32, #tpu.memory_space<vmem>>, vector<16x32xf32>
    %c0_1 = arith.constant 0 : index
    %c0_2 = arith.constant 0 : index
    %1 = vector.load %arg1[%c0_1, %c0_2] : memref<32x32xf32, #tpu.memory_space<vmem>>, vector<32x32xf32>
    %cst = arith.constant dense<0.000000e+00> : vector<16x32xf32>
    %2 = tpu.matmul %0, %1, %cst {dimension_numbers = #tpu.dot_dimension_numbers<[1], [0], [0], [1], [0, 0, 1, 1], [], []>} : vector<16x32xf32>, vector<32x32xf32>, vector<16x32xf32> -> vector<16x32xf32>
    %c0_3 = arith.constant 0 : index
    %c0_4 = arith.constant 0 : index
    %3 = vector.load %arg2[%c0_3, %c0_4] : memref<1x32xf32, #tpu.memory_space<vmem>>, vector<1x32xf32>
    %4 = vector.broadcast %3 : vector<1x32xf32> to vector<16x32xf32>
    %5 = arith.addf %2, %4 : vector<16x32xf32>
    %c0_5 = arith.constant 0 : index
    %c0_6 = arith.constant 0 : index
    %6 = vector.load %arg3[%c0_5, %c0_6] : memref<16x32xf32, #tpu.memory_space<vmem>>, vector<16x32xf32>
    tpu.vector_store %arg3[%c0_5, %c0_6], %5 {strides = array<i32>} : memref<16x32xf32, #tpu.memory_space<vmem>>, vector<16x32xf32>,
    return
  }
}

module attributes {stable_mosaic.version = 11 : i64} {
  func.func @_linear_kernel(%arg0: memref<16x32xf32, #tpu.memory_space<vmem>>, %arg1: memref<32x96xf32, #tpu.memory_space<vmem>>, %arg2: memref<1x96xf32, #tpu.memory_space<vmem>>, %arg3: memref<16x96xf32, #tpu.memory_space<vmem>>) attributes {dimension_semantics = [], scalar_prefetch = 0 : i64, scratch_operands = 0 : i64, tpu.core_type = #tpu.core_type<tc>} {
    %c0 = arith.constant 0 : index
    %c0_0 = arith.constant 0 : index
    %0 = vector.load %arg0[%c0, %c0_0] : memref<16x32xf32, #tpu.memory_space<vmem>>, vector<16x32xf32>
    %c0_1 = arith.constant 0 : index
    %c0_2 = arith.constant 0 : index
    %1 = vector.load %arg1[%c0_1, %c0_2] : memref<32x96xf32, #tpu.memory_space<vmem>>, vector<32x96xf32>
    %cst = arith.constant dense<0.000000e+00> : vector<16x96xf32>
    %2 = tpu.matmul %0, %1, %cst {dimension_numbers = #tpu.dot_dimension_numbers<[1], [0], [0], [1], [0, 0, 1, 1], [], []>} : vector<16x32xf32>, vector<32x96xf32>, vector<16x96xf32> -> vector<16x96xf32>
    %c0_3 = arith.constant 0 : index
    %c0_4 = arith.constant 0 : index
    %3 = vector.load %arg2[%c0_3, %c0_4] : memref<1x96xf32, #tpu.memory_space<vmem>>, vector<1x96xf32>
    %4 = vector.broadcast %3 : vector<1x96xf32> to vector<16x96xf32>
    %5 = arith.addf %2, %4 : vector<16x96xf32>
    %c0_5 = arith.constant 0 : index
    %c0_6 = arith.constant 0 : index
    %6 = vector.load %arg3[%c0_5, %c0_6] : memref<16x96xf32, #tpu.memory_space<vmem>>, vector<16x96xf32>
    tpu.vector_store %arg3[%c0_5, %c0_6], %5 {strides = array<i32>} : memref<16x96xf32, #tpu.memory_space<vmem>>, vector<16x96xf32>,
    return
  }
}

module attributes {stable_mosaic.version = 11 : i64} {
  func.func @_bias_mlp_kernel(%arg0: i32, %arg1: memref<2x8xf32, #tpu.memory_space<vmem>>, %arg2: memref<1x8x1024xf32, #tpu.memory_space<vmem>>, %arg3: memref<1x1x1024xf32, #tpu.memory_space<vmem>>, %arg4: memref<1x1024x64xf32, #tpu.memory_space<vmem>>, %arg5: memref<1x1x64xf32, #tpu.memory_space<vmem>>, %arg6: memref<1x2x64xf32, #tpu.memory_space<vmem>>, %arg7: memref<1x1x1xf32, #tpu.memory_space<vmem>>) attributes {dimension_semantics = [#tpu.dimension_semantics<parallel>], iteration_bounds = array<i64: 4>, scalar_prefetch = 0 : i64, scratch_operands = 0 : i64, tpu.core_type = #tpu.core_type<tc>, window_params = [{pipeline_mode = #tpu.pipeline_mode<synchronous>, transform_indices = @transform_0, window_bounds = array<i64: 2, 8>}, {transform_indices = @transform_1, window_bounds = array<i64: 1, 8, 1024>}, {transform_indices = @transform_2, window_bounds = array<i64: 1, 1, 1024>}, {transform_indices = @transform_3, window_bounds = array<i64: 1, 1024, 64>}, {transform_indices = @transform_4, window_bounds = array<i64: 1, 1, 64>}, {transform_indices = @transform_5, window_bounds = array<i64: 1, 2, 64>}, {transform_indices = @transform_6, window_bounds = array<i64: 1, 1, 1>}]} {
    %c0 = arith.constant 0 : index
    %c0_0 = arith.constant 0 : index
    %0 = vector.load %arg1[%c0, %c0_0] : memref<2x8xf32, #tpu.memory_space<vmem>>, vector<2x8xf32>
    %c0_1 = arith.constant 0 : index
    %c0_2 = arith.constant 0 : index
    %c0_3 = arith.constant 0 : index
    %1 = vector.load %arg2[%c0_1, %c0_2, %c0_3] : memref<1x8x1024xf32, #tpu.memory_space<vmem>>, vector<1x8x1024xf32>
    %2 = vector.shape_cast %1 : vector<1x8x1024xf32> to vector<8x1024xf32>
    %cst = arith.constant dense<0.000000e+00> : vector<2x1024xf32>
    %3 = tpu.matmul %0, %2, %cst {dimension_numbers = #tpu.dot_dimension_numbers<[1], [0], [0], [1], [0, 0, 1, 1], [], []>} : vector<2x8xf32>, vector<8x1024xf32>, vector<2x1024xf32> -> vector<2x1024xf32>
    %c0_4 = arith.constant 0 : index
    %c0_5 = arith.constant 0 : index
    %c0_6 = arith.constant 0 : index
    %4 = vector.load %arg3[%c0_4, %c0_5, %c0_6] : memref<1x1x1024xf32, #tpu.memory_space<vmem>>, vector<1x1x1024xf32>
    %5 = vector.shape_cast %4 : vector<1x1x1024xf32> to vector<1x1024xf32>
    %6 = vector.broadcast %5 : vector<1x1024xf32> to vector<2x1024xf32>
    %7 = arith.addf %3, %6 : vector<2x1024xf32>
    %cst_7 = arith.constant 0.000000e+00 : f32
    %8 = vector.broadcast %cst_7 : f32 to vector<2x1024xf32>
    %9 = arith.maximumf %7, %8 : vector<2x1024xf32>
    %c0_8 = arith.constant 0 : index
    %c0_9 = arith.constant 0 : index
    %c0_10 = arith.constant 0 : index
    %10 = vector.load %arg4[%c0_8, %c0_9, %c0_10] : memref<1x1024x64xf32, #tpu.memory_space<vmem>>, vector<1x1024x64xf32>
    %11 = vector.shape_cast %10 : vector<1x1024x64xf32> to vector<1024x64xf32>
    %cst_11 = arith.constant dense<0.000000e+00> : vector<2x64xf32>
    %12 = tpu.matmul %9, %11, %cst_11 {dimension_numbers = #tpu.dot_dimension_numbers<[1], [0], [0], [1], [0, 0, 1, 1], [], []>} : vector<2x1024xf32>, vector<1024x64xf32>, vector<2x64xf32> -> vector<2x64xf32>
    %c0_12 = arith.constant 0 : index
    %c0_13 = arith.constant 0 : index
    %c0_14 = arith.constant 0 : index
    %13 = vector.load %arg5[%c0_12, %c0_13, %c0_14] : memref<1x1x64xf32, #tpu.memory_space<vmem>>, vector<1x1x64xf32>
    %14 = vector.shape_cast %13 : vector<1x1x64xf32> to vector<1x64xf32>
    %15 = vector.broadcast %14 : vector<1x64xf32> to vector<2x64xf32>
    %16 = arith.addf %12, %15 : vector<2x64xf32>
    %c0_15 = arith.constant 0 : index
    %c0_16 = arith.constant 0 : index
    %c0_17 = arith.constant 0 : index
    %17 = vector.load %arg6[%c0_15, %c0_16, %c0_17] : memref<1x2x64xf32, #tpu.memory_space<vmem>>, vector<1x2x64xf32>
    %18 = vector.shape_cast %17 : vector<1x2x64xf32> to vector<2x64xf32>
    %19 = vector.shape_cast %16 : vector<2x64xf32> to vector<1x2x64xf32>
    tpu.vector_store %arg6[%c0_15, %c0_16, %c0_17], %19 {strides = array<i32>} : memref<1x2x64xf32, #tpu.memory_space<vmem>>, vector<1x2x64xf32>,
    %20 = vector.extract_strided_slice %16 {offsets = [0, 8], sizes = [2, 56], strides = [1, 1]} : vector<2x64xf32> to vector<2x56xf32>
    %21 = vector.extract_strided_slice %16 {offsets = [0, 0], sizes = [2, 56], strides = [1, 1]} : vector<2x64xf32> to vector<2x56xf32>
    %22 = arith.subf %20, %21 : vector<2x56xf32>
    %23 = math.absf %22 : vector<2x56xf32>
    %24 = vector.extract_strided_slice %16 {offsets = [0, 1], sizes = [2, 63], strides = [1, 1]} : vector<2x64xf32> to vector<2x63xf32>
    %25 = vector.extract_strided_slice %16 {offsets = [0, 0], sizes = [2, 63], strides = [1, 1]} : vector<2x64xf32> to vector<2x63xf32>
    %26 = arith.subf %24, %25 : vector<2x63xf32>
    %27 = math.absf %26 : vector<2x63xf32>
    %28 = tpu.iota {dimensions = array<i32: 1>} : vector<2x63xi32>
    %c1_i32 = arith.constant 1 : i32
    %29 = vector.broadcast %c1_i32 : i32 to vector<2x63xi32>
    %30 = arith.addi %28, %29 : vector<2x63xi32>
    %c8_i32 = arith.constant 8 : i32
    %c0_i32 = arith.constant 0 : i32
    %31 = arith.cmpi eq, %c8_i32, %c0_i32 : i32
    %c1_i32_18 = arith.constant 1 : i32
    %32 = arith.select %31, %c1_i32_18, %c8_i32 : i32
    %33 = vector.broadcast %32 : i32 to vector<2x63xi32>
    %34 = arith.remsi %30, %33 : vector<2x63xi32>
    %c0_i32_19 = arith.constant 0 : i32
    %35 = vector.broadcast %c0_i32_19 : i32 to vector<2x63xi32>
    %36 = arith.cmpi ne, %34, %35 : vector<2x63xi32>
    %c0_i32_20 = arith.constant 0 : i32
    %37 = vector.broadcast %c0_i32_20 : i32 to vector<2x63xi32>
    %38 = arith.cmpi slt, %34, %37 : vector<2x63xi32>
    %c0_i32_21 = arith.constant 0 : i32
    %39 = arith.cmpi slt, %32, %c0_i32_21 : i32
    %40 = vector.broadcast %39 : i1 to vector<2x63xi1>
    %41 = vector.broadcast %40 : vector<2x63xi1> to vector<2x63xi1>
    %42 = arith.xori %38, %41 : vector<2x63xi1>
    %43 = arith.andi %42, %36 : vector<2x63xi1>
    %44 = vector.broadcast %32 : i32 to vector<2x63xi32>
    %45 = arith.addi %34, %44 : vector<2x63xi32>
    %46 = arith.select %43, %45, %34 : vector<2x63xi1>, vector<2x63xi32>
    %c0_i32_22 = arith.constant 0 : i32
    %47 = vector.broadcast %c0_i32_22 : i32 to vector<2x63xi32>
    %48 = arith.cmpi ne, %46, %47 : vector<2x63xi32>
    %cst_23 = arith.constant dense<0.000000e+00> : vector<2xf32>
    %49 = vector.multi_reduction <add>, %23, %cst_23 [1] : vector<2x56xf32> to vector<2xf32>
    %50 = vector.shape_cast %49 : vector<2xf32> to vector<2x1xf32>
    %cst_24 = arith.constant dense<0.000000e+00> : vector<1xf32>
    %51 = vector.multi_reduction <add>, %50, %cst_24 [0] : vector<2x1xf32> to vector<1xf32>
    %52 = vector.shape_cast %51 : vector<1xf32> to vector<1x1xf32>
    %cst_25 = arith.constant 0.000000e+00 : f32
    %53 = vector.broadcast %cst_25 : f32 to vector<2x63xf32>
    %54 = arith.select %48, %27, %53 : vector<2x63xi1>, vector<2x63xf32>
    %cst_26 = arith.constant dense<0.000000e+00> : vector<2xf32>
    %55 = vector.multi_reduction <add>, %54, %cst_26 [1] : vector<2x63xf32> to vector<2xf32>
    %56 = vector.shape_cast %55 : vector<2xf32> to vector<2x1xf32>
    %cst_27 = arith.constant dense<0.000000e+00> : vector<1xf32>
    %57 = vector.multi_reduction <add>, %56, %cst_27 [0] : vector<2x1xf32> to vector<1xf32>
    %58 = vector.shape_cast %57 : vector<1xf32> to vector<1x1xf32>
    %59 = arith.addf %52, %58 : vector<1x1xf32>
    %c0_28 = arith.constant 0 : index
    %c0_29 = arith.constant 0 : index
    %c0_30 = arith.constant 0 : index
    %60 = vector.load %arg7[%c0_28, %c0_29, %c0_30] : memref<1x1x1xf32, #tpu.memory_space<vmem>>, vector<1x1x1xf32>
    %61 = vector.shape_cast %60 : vector<1x1x1xf32> to vector<1x1xf32>
    %62 = vector.shape_cast %59 : vector<1x1xf32> to vector<1x1x1xf32>
    tpu.vector_store %arg7[%c0_28, %c0_29, %c0_30], %62 {strides = array<i32>} : memref<1x1x1xf32, #tpu.memory_space<vmem>>, vector<1x1x1xf32>,
    return
  }
  func.func @transform_0(%arg0: i32) -> (i32, i32) {
    %c0_i32 = arith.constant 0 : i32
    %c0_i32_0 = arith.constant 0 : i32
    %c0_i32_1 = arith.constant 0 : i32
    return %c0_i32, %c0_i32_0 : i32, i32
  }
  func.func @transform_1(%arg0: i32) -> (i32, i32, i32) {
    %c0_i32 = arith.constant 0 : i32
    %c0_i32_0 = arith.constant 0 : i32
    %c0_i32_1 = arith.constant 0 : i32
    return %arg0, %c0_i32, %c0_i32_0 : i32, i32, i32
  }
  func.func @transform_2(%arg0: i32) -> (i32, i32, i32) {
    %c0_i32 = arith.constant 0 : i32
    %c0_i32_0 = arith.constant 0 : i32
    %c0_i32_1 = arith.constant 0 : i32
    return %arg0, %c0_i32, %c0_i32_0 : i32, i32, i32
  }
  func.func @transform_3(%arg0: i32) -> (i32, i32, i32) {
    %c0_i32 = arith.constant 0 : i32
    %c0_i32_0 = arith.constant 0 : i32
    %c0_i32_1 = arith.constant 0 : i32
    return %arg0, %c0_i32, %c0_i32_0 : i32, i32, i32
  }
  func.func @transform_4(%arg0: i32) -> (i32, i32, i32) {
    %c0_i32 = arith.constant 0 : i32
    %c0_i32_0 = arith.constant 0 : i32
    %c0_i32_1 = arith.constant 0 : i32
    return %arg0, %c0_i32, %c0_i32_0 : i32, i32, i32
  }
  func.func @transform_5(%arg0: i32) -> (i32, i32, i32) {
    %c0_i32 = arith.constant 0 : i32
    %c0_i32_0 = arith.constant 0 : i32
    %c0_i32_1 = arith.constant 0 : i32
    return %arg0, %c0_i32, %c0_i32_0 : i32, i32, i32
  }
  func.func @transform_6(%arg0: i32) -> (i32, i32, i32) {
    %c0_i32 = arith.constant 0 : i32
    %c0_i32_0 = arith.constant 0 : i32
    %c0_i32_1 = arith.constant 0 : i32
    return %arg0, %c0_i32, %c0_i32_0 : i32, i32, i32
  }
}

module attributes {stable_mosaic.version = 11 : i64} {
  func.func @_ff_res_ln_kernel(%arg0: memref<16x32xf32, #tpu.memory_space<vmem>>, %arg1: memref<32x64xf32, #tpu.memory_space<vmem>>, %arg2: memref<1x64xf32, #tpu.memory_space<vmem>>, %arg3: memref<64x32xf32, #tpu.memory_space<vmem>>, %arg4: memref<1x32xf32, #tpu.memory_space<vmem>>, %arg5: memref<1x32xf32, #tpu.memory_space<vmem>>, %arg6: memref<1x32xf32, #tpu.memory_space<vmem>>, %arg7: memref<16x32xf32, #tpu.memory_space<vmem>>) attributes {dimension_semantics = [], scalar_prefetch = 0 : i64, scratch_operands = 0 : i64, tpu.core_type = #tpu.core_type<tc>} {
    %c0 = arith.constant 0 : index
    %c0_0 = arith.constant 0 : index
    %0 = vector.load %arg0[%c0, %c0_0] : memref<16x32xf32, #tpu.memory_space<vmem>>, vector<16x32xf32>
    %c0_1 = arith.constant 0 : index
    %c0_2 = arith.constant 0 : index
    %1 = vector.load %arg1[%c0_1, %c0_2] : memref<32x64xf32, #tpu.memory_space<vmem>>, vector<32x64xf32>
    %cst = arith.constant dense<0.000000e+00> : vector<16x64xf32>
    %2 = tpu.matmul %0, %1, %cst {dimension_numbers = #tpu.dot_dimension_numbers<[1], [0], [0], [1], [0, 0, 1, 1], [], []>} : vector<16x32xf32>, vector<32x64xf32>, vector<16x64xf32> -> vector<16x64xf32>
    %c0_3 = arith.constant 0 : index
    %c0_4 = arith.constant 0 : index
    %3 = vector.load %arg2[%c0_3, %c0_4] : memref<1x64xf32, #tpu.memory_space<vmem>>, vector<1x64xf32>
    %4 = vector.broadcast %3 : vector<1x64xf32> to vector<16x64xf32>
    %5 = arith.addf %2, %4 : vector<16x64xf32>
    %cst_5 = arith.constant 0.000000e+00 : f32
    %6 = vector.broadcast %cst_5 : f32 to vector<16x64xf32>
    %7 = arith.maximumf %5, %6 : vector<16x64xf32>
    %c0_6 = arith.constant 0 : index
    %c0_7 = arith.constant 0 : index
    %8 = vector.load %arg3[%c0_6, %c0_7] : memref<64x32xf32, #tpu.memory_space<vmem>>, vector<64x32xf32>
    %cst_8 = arith.constant dense<0.000000e+00> : vector<16x32xf32>
    %9 = tpu.matmul %7, %8, %cst_8 {dimension_numbers = #tpu.dot_dimension_numbers<[1], [0], [0], [1], [0, 0, 1, 1], [], []>} : vector<16x64xf32>, vector<64x32xf32>, vector<16x32xf32> -> vector<16x32xf32>
    %c0_9 = arith.constant 0 : index
    %c0_10 = arith.constant 0 : index
    %10 = vector.load %arg4[%c0_9, %c0_10] : memref<1x32xf32, #tpu.memory_space<vmem>>, vector<1x32xf32>
    %11 = vector.broadcast %10 : vector<1x32xf32> to vector<16x32xf32>
    %12 = arith.addf %9, %11 : vector<16x32xf32>
    %13 = arith.addf %0, %12 : vector<16x32xf32>
    %c0_11 = arith.constant 0 : index
    %c0_12 = arith.constant 0 : index
    %14 = vector.load %arg5[%c0_11, %c0_12] : memref<1x32xf32, #tpu.memory_space<vmem>>, vector<1x32xf32>
    %c0_13 = arith.constant 0 : index
    %c0_14 = arith.constant 0 : index
    %15 = vector.load %arg6[%c0_13, %c0_14] : memref<1x32xf32, #tpu.memory_space<vmem>>, vector<1x32xf32>
    %cst_15 = arith.constant dense<0.000000e+00> : vector<16xf32>
    %16 = vector.multi_reduction <add>, %13, %cst_15 [1] : vector<16x32xf32> to vector<16xf32>
    %17 = vector.shape_cast %16 : vector<16xf32> to vector<16x1xf32>
    %cst_16 = arith.constant 3.200000e+01 : f32
    %18 = vector.broadcast %cst_16 : f32 to vector<16x1xf32>
    %19 = arith.divf %17, %18 : vector<16x1xf32>
    %20 = vector.broadcast %19 : vector<16x1xf32> to vector<16x32xf32>
    %21 = arith.subf %13, %20 : vector<16x32xf32>
    %22 = arith.mulf %21, %21 : vector<16x32xf32>
    %cst_17 = arith.constant dense<0.000000e+00> : vector<16xf32>
    %23 = vector.multi_reduction <add>, %22, %cst_17 [1] : vector<16x32xf32> to vector<16xf32>
    %24 = vector.shape_cast %23 : vector<16xf32> to vector<16x1xf32>
    %cst_18 = arith.constant 3.200000e+01 : f32
    %25 = vector.broadcast %cst_18 : f32 to vector<16x1xf32>
    %26 = arith.divf %24, %25 : vector<16x1xf32>
    %27 = vector.broadcast %19 : vector<16x1xf32> to vector<16x32xf32>
    %28 = arith.subf %13, %27 : vector<16x32xf32>
    %cst_19 = arith.constant 9.99999974E-6 : f32
    %29 = vector.broadcast %cst_19 : f32 to vector<16x1xf32>
    %30 = arith.addf %26, %29 : vector<16x1xf32>
    %31 = math.rsqrt %30 : vector<16x1xf32>
    %32 = vector.broadcast %31 : vector<16x1xf32> to vector<16x32xf32>
    %33 = arith.mulf %28, %32 : vector<16x32xf32>
    %34 = vector.broadcast %14 : vector<1x32xf32> to vector<16x32xf32>
    %35 = arith.mulf %33, %34 : vector<16x32xf32>
    %36 = vector.broadcast %15 : vector<1x32xf32> to vector<16x32xf32>
    %37 = arith.addf %35, %36 : vector<16x32xf32>
    %c0_20 = arith.constant 0 : index
    %c0_21 = arith.constant 0 : index
    %38 = vector.load %arg7[%c0_20, %c0_21] : memref<16x32xf32, #tpu.memory_space<vmem>>, vector<16x32xf32>
    tpu.vector_store %arg7[%c0_20, %c0_21], %37 {strides = array<i32>} : memref<16x32xf32, #tpu.memory_space<vmem>>, vector<16x32xf32>,
    return
  }
}

module attributes {stable_mosaic.version = 11 : i64} {
  func.func @_linear_res_ln_kernel(%arg0: memref<16x32xf32, #tpu.memory_space<vmem>>, %arg1: memref<32x32xf32, #tpu.memory_space<vmem>>, %arg2: memref<1x32xf32, #tpu.memory_space<vmem>>, %arg3: memref<16x32xf32, #tpu.memory_space<vmem>>, %arg4: memref<1x32xf32, #tpu.memory_space<vmem>>, %arg5: memref<1x32xf32, #tpu.memory_space<vmem>>, %arg6: memref<16x32xf32, #tpu.memory_space<vmem>>) attributes {dimension_semantics = [], scalar_prefetch = 0 : i64, scratch_operands = 0 : i64, tpu.core_type = #tpu.core_type<tc>} {
    %c0 = arith.constant 0 : index
    %c0_0 = arith.constant 0 : index
    %0 = vector.load %arg0[%c0, %c0_0] : memref<16x32xf32, #tpu.memory_space<vmem>>, vector<16x32xf32>
    %c0_1 = arith.constant 0 : index
    %c0_2 = arith.constant 0 : index
    %1 = vector.load %arg1[%c0_1, %c0_2] : memref<32x32xf32, #tpu.memory_space<vmem>>, vector<32x32xf32>
    %cst = arith.constant dense<0.000000e+00> : vector<16x32xf32>
    %2 = tpu.matmul %0, %1, %cst {dimension_numbers = #tpu.dot_dimension_numbers<[1], [0], [0], [1], [0, 0, 1, 1], [], []>} : vector<16x32xf32>, vector<32x32xf32>, vector<16x32xf32> -> vector<16x32xf32>
    %c0_3 = arith.constant 0 : index
    %c0_4 = arith.constant 0 : index
    %3 = vector.load %arg2[%c0_3, %c0_4] : memref<1x32xf32, #tpu.memory_space<vmem>>, vector<1x32xf32>
    %4 = vector.broadcast %3 : vector<1x32xf32> to vector<16x32xf32>
    %5 = arith.addf %2, %4 : vector<16x32xf32>
    %c0_5 = arith.constant 0 : index
    %c0_6 = arith.constant 0 : index
    %6 = vector.load %arg3[%c0_5, %c0_6] : memref<16x32xf32, #tpu.memory_space<vmem>>, vector<16x32xf32>
    %7 = arith.addf %6, %5 : vector<16x32xf32>
    %c0_7 = arith.constant 0 : index
    %c0_8 = arith.constant 0 : index
    %8 = vector.load %arg4[%c0_7, %c0_8] : memref<1x32xf32, #tpu.memory_space<vmem>>, vector<1x32xf32>
    %c0_9 = arith.constant 0 : index
    %c0_10 = arith.constant 0 : index
    %9 = vector.load %arg5[%c0_9, %c0_10] : memref<1x32xf32, #tpu.memory_space<vmem>>, vector<1x32xf32>
    %cst_11 = arith.constant dense<0.000000e+00> : vector<16xf32>
    %10 = vector.multi_reduction <add>, %7, %cst_11 [1] : vector<16x32xf32> to vector<16xf32>
    %11 = vector.shape_cast %10 : vector<16xf32> to vector<16x1xf32>
    %cst_12 = arith.constant 3.200000e+01 : f32
    %12 = vector.broadcast %cst_12 : f32 to vector<16x1xf32>
    %13 = arith.divf %11, %12 : vector<16x1xf32>
    %14 = vector.broadcast %13 : vector<16x1xf32> to vector<16x32xf32>
    %15 = arith.subf %7, %14 : vector<16x32xf32>
    %16 = arith.mulf %15, %15 : vector<16x32xf32>
    %cst_13 = arith.constant dense<0.000000e+00> : vector<16xf32>
    %17 = vector.multi_reduction <add>, %16, %cst_13 [1] : vector<16x32xf32> to vector<16xf32>
    %18 = vector.shape_cast %17 : vector<16xf32> to vector<16x1xf32>
    %cst_14 = arith.constant 3.200000e+01 : f32
    %19 = vector.broadcast %cst_14 : f32 to vector<16x1xf32>
    %20 = arith.divf %18, %19 : vector<16x1xf32>
    %21 = vector.broadcast %13 : vector<16x1xf32> to vector<16x32xf32>
    %22 = arith.subf %7, %21 : vector<16x32xf32>
    %cst_15 = arith.constant 9.99999974E-6 : f32
    %23 = vector.broadcast %cst_15 : f32 to vector<16x1xf32>
    %24 = arith.addf %20, %23 : vector<16x1xf32>
    %25 = math.rsqrt %24 : vector<16x1xf32>
    %26 = vector.broadcast %25 : vector<16x1xf32> to vector<16x32xf32>
    %27 = arith.mulf %22, %26 : vector<16x32xf32>
    %28 = vector.broadcast %8 : vector<1x32xf32> to vector<16x32xf32>
    %29 = arith.mulf %27, %28 : vector<16x32xf32>
    %30 = vector.broadcast %9 : vector<1x32xf32> to vector<16x32xf32>
    %31 = arith.addf %29, %30 : vector<16x32xf32>
    %c0_16 = arith.constant 0 : index
    %c0_17 = arith.constant 0 : index
    %32 = vector.load %arg6[%c0_16, %c0_17] : memref<16x32xf32, #tpu.memory_space<vmem>>, vector<16x32xf32>
    tpu.vector_store %arg6[%c0_16, %c0_17], %31 {strides = array<i32>} : memref<16x32xf32, #tpu.memory_space<vmem>>, vector<16x32xf32>,
    return
  }
}

module attributes {stable_mosaic.version = 11 : i64} {
  func.func @_county_pool_fc_kernel(%arg0: memref<2x8xf32, #tpu.memory_space<vmem>>, %arg1: memref<8x32xf32, #tpu.memory_space<vmem>>, %arg2: memref<1x32xf32, #tpu.memory_space<vmem>>, %arg3: memref<32x8xf32, #tpu.memory_space<vmem>>, %arg4: memref<1x8xf32, #tpu.memory_space<vmem>>, %arg5: memref<2x8x32xf32, #tpu.memory_space<vmem>>, %arg6: memref<32x1xf32, #tpu.memory_space<vmem>>, %arg7: memref<1x1xf32, #tpu.memory_space<vmem>>, %arg8: memref<2x1xf32, #tpu.memory_space<vmem>>, %arg9: memref<1x1xf32, #tpu.memory_space<vmem>>) attributes {dimension_semantics = [], scalar_prefetch = 0 : i64, scratch_operands = 0 : i64, tpu.core_type = #tpu.core_type<tc>} {
    %c0 = arith.constant 0 : index
    %c0_0 = arith.constant 0 : index
    %0 = vector.load %arg0[%c0, %c0_0] : memref<2x8xf32, #tpu.memory_space<vmem>>, vector<2x8xf32>
    %c0_1 = arith.constant 0 : index
    %c0_2 = arith.constant 0 : index
    %1 = vector.load %arg1[%c0_1, %c0_2] : memref<8x32xf32, #tpu.memory_space<vmem>>, vector<8x32xf32>
    %cst = arith.constant dense<0.000000e+00> : vector<2x32xf32>
    %2 = tpu.matmul %0, %1, %cst {dimension_numbers = #tpu.dot_dimension_numbers<[1], [0], [0], [1], [0, 0, 1, 1], [], []>} : vector<2x8xf32>, vector<8x32xf32>, vector<2x32xf32> -> vector<2x32xf32>
    %c0_3 = arith.constant 0 : index
    %c0_4 = arith.constant 0 : index
    %3 = vector.load %arg2[%c0_3, %c0_4] : memref<1x32xf32, #tpu.memory_space<vmem>>, vector<1x32xf32>
    %4 = vector.broadcast %3 : vector<1x32xf32> to vector<2x32xf32>
    %5 = arith.addf %2, %4 : vector<2x32xf32>
    %cst_5 = arith.constant 0.000000e+00 : f32
    %6 = vector.broadcast %cst_5 : f32 to vector<2x32xf32>
    %7 = arith.maximumf %5, %6 : vector<2x32xf32>
    %c0_6 = arith.constant 0 : index
    %c0_7 = arith.constant 0 : index
    %8 = vector.load %arg3[%c0_6, %c0_7] : memref<32x8xf32, #tpu.memory_space<vmem>>, vector<32x8xf32>
    %cst_8 = arith.constant dense<0.000000e+00> : vector<2x8xf32>
    %9 = tpu.matmul %7, %8, %cst_8 {dimension_numbers = #tpu.dot_dimension_numbers<[1], [0], [0], [1], [0, 0, 1, 1], [], []>} : vector<2x32xf32>, vector<32x8xf32>, vector<2x8xf32> -> vector<2x8xf32>
    %c0_9 = arith.constant 0 : index
    %c0_10 = arith.constant 0 : index
    %10 = vector.load %arg4[%c0_9, %c0_10] : memref<1x8xf32, #tpu.memory_space<vmem>>, vector<1x8xf32>
    %11 = vector.broadcast %10 : vector<1x8xf32> to vector<2x8xf32>
    %12 = arith.addf %9, %11 : vector<2x8xf32>
    %13 = vector.extract_strided_slice %12 {offsets = [0, 1], sizes = [2, 7], strides = [1, 1]} : vector<2x8xf32> to vector<2x7xf32>
    %14 = vector.extract_strided_slice %12 {offsets = [0, 0], sizes = [2, 7], strides = [1, 1]} : vector<2x8xf32> to vector<2x7xf32>
    %15 = arith.subf %13, %14 : vector<2x7xf32>
    %16 = math.absf %15 : vector<2x7xf32>
    %cst_11 = arith.constant dense<0.000000e+00> : vector<2xf32>
    %17 = vector.multi_reduction <add>, %16, %cst_11 [1] : vector<2x7xf32> to vector<2xf32>
    %18 = vector.shape_cast %17 : vector<2xf32> to vector<2x1xf32>
    %cst_12 = arith.constant dense<0.000000e+00> : vector<1xf32>
    %19 = vector.multi_reduction <add>, %18, %cst_12 [0] : vector<2x1xf32> to vector<1xf32>
    %20 = vector.shape_cast %19 : vector<1xf32> to vector<1x1xf32>
    %c0_13 = arith.constant 0 : index
    %c0_14 = arith.constant 0 : index
    %21 = vector.load %arg9[%c0_13, %c0_14] : memref<1x1xf32, #tpu.memory_space<vmem>>, vector<1x1xf32>
    tpu.vector_store %arg9[%c0_13, %c0_14], %20 {strides = array<i32>} : memref<1x1xf32, #tpu.memory_space<vmem>>, vector<1x1xf32>,
    %22 = vector.extract_strided_slice %12 {offsets = [0, 0], sizes = [1, 8], strides = [1, 1]} : vector<2x8xf32> to vector<1x8xf32>
    %c0_15 = arith.constant 0 : index
    %c0_16 = arith.constant 0 : index
    %c0_17 = arith.constant 0 : index
    %23 = vector.load %arg5[%c0_15, %c0_16, %c0_17] : memref<2x8x32xf32, #tpu.memory_space<vmem>>, vector<1x8x32xf32>
    %24 = vector.shape_cast %23 : vector<1x8x32xf32> to vector<8x32xf32>
    %cst_18 = arith.constant dense<0.000000e+00> : vector<1x32xf32>
    %25 = tpu.matmul %22, %24, %cst_18 {dimension_numbers = #tpu.dot_dimension_numbers<[1], [0], [0], [1], [0, 0, 1, 1], [], []>} : vector<1x8xf32>, vector<8x32xf32>, vector<1x32xf32> -> vector<1x32xf32>
    %26 = vector.extract_strided_slice %12 {offsets = [1, 0], sizes = [1, 8], strides = [1, 1]} : vector<2x8xf32> to vector<1x8xf32>
    %c1 = arith.constant 1 : index
    %c0_19 = arith.constant 0 : index
    %c0_20 = arith.constant 0 : index
    %27 = vector.load %arg5[%c1, %c0_19, %c0_20] : memref<2x8x32xf32, #tpu.memory_space<vmem>>, vector<1x8x32xf32>
    %28 = vector.shape_cast %27 : vector<1x8x32xf32> to vector<8x32xf32>
    %cst_21 = arith.constant dense<0.000000e+00> : vector<1x32xf32>
    %29 = tpu.matmul %26, %28, %cst_21 {dimension_numbers = #tpu.dot_dimension_numbers<[1], [0], [0], [1], [0, 0, 1, 1], [], []>} : vector<1x8xf32>, vector<8x32xf32>, vector<1x32xf32> -> vector<1x32xf32>
    %30 = tpu.concatenate %25, %29 in 0 : vector<1x32xf32>, vector<1x32xf32> -> vector<2x32xf32>
    %cst_22 = arith.constant 0.000000e+00 : f32
    %31 = vector.broadcast %cst_22 : f32 to vector<2x32xf32>
    %32 = arith.maximumf %30, %31 : vector<2x32xf32>
    %c0_23 = arith.constant 0 : index
    %c0_24 = arith.constant 0 : index
    %33 = vector.load %arg6[%c0_23, %c0_24] : memref<32x1xf32, #tpu.memory_space<vmem>>, vector<32x1xf32>
    %cst_25 = arith.constant dense<0.000000e+00> : vector<2x1xf32>
    %34 = tpu.matmul %32, %33, %cst_25 {dimension_numbers = #tpu.dot_dimension_numbers<[1], [0], [0], [1], [0, 0, 1, 1], [], []>} : vector<2x32xf32>, vector<32x1xf32>, vector<2x1xf32> -> vector<2x1xf32>
    %c0_26 = arith.constant 0 : index
    %c0_27 = arith.constant 0 : index
    %35 = vector.load %arg7[%c0_26, %c0_27] : memref<1x1xf32, #tpu.memory_space<vmem>>, vector<1x1xf32>
    %36 = vector.broadcast %35 : vector<1x1xf32> to vector<2x1xf32>
    %37 = arith.addf %34, %36 : vector<2x1xf32>
    %c0_28 = arith.constant 0 : index
    %c0_29 = arith.constant 0 : index
    %38 = vector.load %arg8[%c0_28, %c0_29] : memref<2x1xf32, #tpu.memory_space<vmem>>, vector<2x1xf32>
    tpu.vector_store %arg8[%c0_28, %c0_29], %37 {strides = array<i32>} : memref<2x1xf32, #tpu.memory_space<vmem>>, vector<2x1xf32>,
    return
  }
}

</mosaic_0001>

<llo_original>
// kernel: _lambda_.16
$region0: #{_lambda_.16}
  #allocation0 [shape = 'u32[]', space=smem, size = 0x4, offset = 0x4, fixed_abs, tag = 'smem constant byte address 0x4 - core index']
  #allocation1 [shape = 'u32[144,128]{1,0:T(1,128)}', space=vmem, size = 0x12000, scoped, tag = 'internal scratch']
  %s0 = inlined_call_operand.hbm [shape: f32[16,8], index: 0, kind: input, shape index: {}]
  %s1 = inlined_call_operand.vmem [shape: f32[8,96], index: 1, kind: input, shape index: {}]
  %s2 = inlined_call_operand.vmem [shape: f32[1,96], index: 2, kind: input, shape index: {}]
  %s3 = inlined_call_operand.vmem [shape: f32[16,96], index: 3, kind: output, shape index: {}]
  %s4 = sld [smem:[#allocation0]]
  $region26: #{_lambda_.16} parent=0
    _
  %s6 = ssub.s32 1, %s4
  %s7 = scalar_select 0, %s6, %s4
  $region1: #{_lambda_.16} parent=0
    #allocation2 [shape = 'u8[8192]{0}', space=vmem, size = 0x2000, scoped, tag = 'input window, operand 0, single buffered']
    #allocation3 [shape = 's32[1]{0}', space=sflag, size = 0x4, scoped, tag = 'scoped memory for _lambda_.16']
    %8 = vsyncpa [#allocation3], 0
    // Predicated region
    $region2: #{_lambda_.16} parent=1 // pred_check
      _
    $region3: #{_lambda_.16} parent=1 // pred_check_branch
      %10 = sbr.rel (0) target = $region5
    $region4: #{_lambda_.16} parent=1 // pred_region
      %s12 = ssub.s32 256, 256
      %13 = vsyncadd [#allocation3], %s12
      %s14 = sshll.u32 [#allocation2], 4
      %s15 = int_to_ptr.vmem [resolvable:$true] %s14
      %20 = dma.hbm_to_vmem [thread:$0]  %s0, 256, %s15, [#allocation3], 128, 128, 8
    $region5: #{_lambda_.16} parent=1 // pred_fallthru
      _
    // Predicated region
    $region6: #{_lambda_.16} parent=1 // pred_check
      _
    $region7: #{_lambda_.16} parent=1 // pred_check_branch
      %22 = sbr.rel (0) target = $region9
    $region8: #{_lambda_.16} parent=1 // pred_region
      _
    $region9: #{_lambda_.16} parent=1 // pred_fallthru
      _
    // Predicated region
    $region10: #{_lambda_.16} parent=1 // pred_check
      _
    $region11: #{_lambda_.16} parent=1 // pred_check_branch
      %24 = sbr.rel (0) target = $region13
    $region12: #{_lambda_.16} parent=1 // pred_region
      _
    $region13: #{_lambda_.16} parent=1 // pred_fallthru
      _
    // Predicated region
    $region14: #{_lambda_.16} parent=1 // pred_check
      _
    $region15: #{_lambda_.16} parent=1 // pred_check_branch
      %26 = sbr.rel (0) target = $region17
    $region16: #{_lambda_.16} parent=1 // pred_region
      %27 = dma.done [#allocation3], 256
    $region17: #{_lambda_.16} parent=1 // pred_fallthru
      _
    %v28 = vld [vmem:[#allocation2] sm:$0xff]
    %v29 = vld [vmem:[#allocation2 + $0x8] sm:$0xff]
    %v30 = vld [vmem:[%s1] sm:$0xff]
    %v31 = vld [vmem:[%s2] sm:$0x1]
    %v33 = vlaneseq
    %v34 = vshrl.u32 %v33, 7
    %v35 = vsub.s32 0, %v34
    %v36 = vrot.slane %v31, %v35
    %vm38 = vcmask 64512
    %v40 = vsel %vm38, %v28, 0
    %v43 = vsel %vm38, %v29, 0
    %45 = vmatprep.subr.mxu0 0.0
    %46 = vmatpush1.msra.mxu0 %v30
    %47 = vmatprep.subr.mxu0 0.0
    %48 = vmatpush1.msra.mxu0 0.0
    %49 = vmatprep.subr.mxu0 0.0
    %50 = vmatpush1.msra.mxu0 0.0
    %51 = vmatprep.subr.mxu0 0.0
    %52 = vmatpush1.msra.mxu0 0.0
    %53 = vmatprep.subr.mxu0 0.0
    %54 = vmatpush1.msra.mxu0 0.0
    %55 = vmatprep.subr.mxu0 0.0
    %56 = vmatpush1.msra.mxu0 0.0
    %57 = vmatprep.subr.mxu0 0.0
    %58 = vmatpush1.msra.mxu0 0.0
    %59 = vmatprep.subr.mxu0 0.0
    %60 = vmatpush1.msra.mxu0 0.0
    %61 = vmatprep.subr.mxu0 0.0
    %62 = vmatpush1.msra.mxu0 0.0
    %63 = vmatprep.subr.mxu0 0.0
    %64 = vmatpush1.msra.mxu0 0.0
    %65 = vmatprep.subr.mxu0 0.0
    %66 = vmatpush1.msra.mxu0 0.0
    %67 = vmatprep.subr.mxu0 0.0
    %68 = vmatpush1.msra.mxu0 0.0
    %69 = vmatprep.subr.mxu0 0.0
    %70 = vmatpush1.msra.mxu0 0.0
    %71 = vmatprep.subr.mxu0 0.0
    %72 = vmatpush1.msra.mxu0 0.0
    %73 = vmatprep.subr.mxu0 0.0
    %74 = vmatpush1.msra.mxu0 0.0
    %75 = vmatprep.subr.mxu0 0.0
    %76 = vmatpush1.msra.mxu0 0.0
    %77 = vmatprep.subr.mxu0 0.0
    %78 = vmatpush1.msra.mxu0 0.0
    %79 = vmatprep.subr.mxu0 0.0
    %80 = vmatpush1.msra.mxu0 0.0
    %81 = vmatprep.subr.mxu0 0.0
    %82 = vmatpush1.msra.mxu0 0.0
    %83 = vmatprep.subr.mxu0 0.0
    %84 = vmatpush1.msra.mxu0 0.0
    %85 = vmatprep.subr.mxu0 0.0
    %86 = vmatpush1.msra.mxu0 0.0
    %87 = vmatprep.subr.mxu0 0.0
    %88 = vmatpush1.msra.mxu0 0.0
    %89 = vmatprep.subr.mxu0 0.0
    %90 = vmatpush1.msra.mxu0 0.0
    %91 = vmatprep.subr.mxu0 0.0
    %92 = vmatpush1.msra.mxu0 0.0
    %93 = vmatprep.subr.mxu0 0.0
    %94 = vmatpush1.msra.mxu0 0.0
    %95 = vmatprep.subr.mxu0 0.0
    %96 = vmatpush1.msra.mxu0 0.0
    %97 = vmatprep.subr.mxu0 0.0
    %98 = vmatpush1.msra.mxu0 0.0
    %99 = vmatprep.subr.mxu0 0.0
    %100 = vmatpush1.msra.mxu0 0.0
    %101 = vmatprep.subr.mxu0 0.0
    %102 = vmatpush1.msra.mxu0 0.0
    %103 = vmatprep.subr.mxu0 0.0
    %104 = vmatpush1.msra.mxu0 0.0
    %105 = vmatprep.subr.mxu0 0.0
    %106 = vmatpush1.msra.mxu0 0.0
    %107 = vmatprep.subr.mxu0 0.0
    %108 = vmatpush1.msra.mxu0 0.0
    %109 = vmatprep.mubr.f32.mxu0 0.0
    %110 = vmatmul.mubr.f32.gmra.mrb[0].mxu0 %v40
    %v111 = vpop.f32.mrb[0].mxu0
    %v112 = vadd.f32 %v36, %v111
    %v113 = vpop.f32.mrb[0].mxu0
    %114 = vmatprep.mubr.f32.mxu0 0.0
    %115 = vmatmul.mubr.f32.gmra.mrb[0].mxu0 %v43
    %v116 = vpop.f32.mrb[0].mxu0
    %v117 = vadd.f32 %v36, %v116
    %v118 = vpop.f32.mrb[0].mxu0
    %119 = vdwg.mxu0
    %vm120 = vcmask 785408
    %121 = vst.msk [vmem:[%s3] sm:$0xff] %vm120, %v112
    %122 = vst.msk [vmem:[%s3 + $0x8] sm:$0xff] %vm120, %v117
    // Predicated region
    $region18: #{_lambda_.16} parent=1 // pred_check
      _
    $region19: #{_lambda_.16} parent=1 // pred_check_branch
      %124 = sbr.rel (0) target = $region21
    $region20: #{_lambda_.16} parent=1 // pred_region
      _
    $region21: #{_lambda_.16} parent=1 // pred_fallthru
      _
    // Predicated region
    $region22: #{_lambda_.16} parent=1 // pred_check
      _
    $region23: #{_lambda_.16} parent=1 // pred_check_branch
      %126 = sbr.rel (0) target = $region25
    $region24: #{_lambda_.16} parent=1 // pred_region
      _
    $region25: #{_lambda_.16} parent=1 // pred_fallthru
      _
    %127 = vsyncpa [#allocation3], 1

// kernel: _lambda_.18
$region0: #{_lambda_.18}
  #allocation0 [shape = 'u32[]', space=smem, size = 0x4, offset = 0x4, fixed_abs, tag = 'smem constant byte address 0x4 - core index']
  #allocation1 [shape = 'u32[144,128]{1,0:T(1,128)}', space=vmem, size = 0x12000, scoped, tag = 'internal scratch']
  %s0 = inlined_call_operand.vmem [shape: f32[2,8,96], index: 0, kind: input, shape index: {}]
  %s1 = inlined_call_operand.vmem [shape: f32[4,2,8,8], index: 1, kind: input, shape index: {}]
  %s2 = inlined_call_operand.vmem [shape: f32[2,8,32], index: 2, kind: output, shape index: {}]
  %s3 = sld [smem:[#allocation0]]
  $region79: #{_lambda_.18} parent=0
    _
  %s5 = ssub.s32 1, %s3
  %s6 = scalar_select 0, %s5, %s3
  $region1: #{_lambda_.18} parent=0
    #allocation2 [shape = 'u8[32768]{0}', space=vmem, size = 0x8000, scoped, tag = 'input window, operand 1']
    loop: start=0, step=1, limit=4
    $region2: #{_lambda_.18} parent=1 // loop_pre_header
      _
    $region3: #{_lambda_.18} parent=1 // loop_header
      %s8 = sphi 0, %s12
      %p9 = scmp.ge.s32.totalorder %s8, 4
      %s18 = sphi 0, %s20
      %s21 = sphi 0, %s18
      %s22 = sphi 0, %s21
      %s38 = sphi 0, %s22
      %s44 = sphi 0, %s46
      %s47 = sphi 0, %s44
      %s48 = sphi 0, %s47
      %s64 = sphi 0, %s48
      %s70 = sphi 0, %s72
      %s73 = sphi 0, %s70
      %s74 = sphi 0, %s73
      %s90 = sphi 0, %s74
    $region4: #{_lambda_.18} parent=1 // loop_header_branch
      %11 = sbr.rel (%p9) target = $region8
    $region5: #{_lambda_.18} parent=1 // loop_body
      %s13 = ssub.s32 %s8, 1
      %s14 = ssub.s32 %s8, 2
      %s15 = sadd.s32 %s8, 1
      %s16 = ssub.s32 %s8, %s15
      %p17 = scmp.eq.s32.totalorder %s16, 0
      %s19 = sadd.s32 %s18, 1
      %s20 = scalar_select %p17, %s18, %s19
      %p23 = pneg %p17
      %p24 = scmp.eq.s32.totalorder %s8, 1
      %p25 = por %p23, %p24
      %p26 = scmp.ne.s32.totalorder %s18, %s21
      %p27 = scmp.eq.s32.totalorder %s8, 0
      %p28 = por %p26, %p27
      %p29 = scmp.ne.s32.totalorder %s18, %s21
      %p30 = scmp.eq.s32.totalorder %s13, 1
      %p31 = por %p29, %p30
      %p32 = scmp.ne.s32.totalorder %s21, %s22
      %p33 = scmp.eq.s32.totalorder %s13, 0
      %p34 = por %p32, %p33
      %p35 = scmp.ne.s32.totalorder %s21, %s22
      %p36 = scmp.eq.s32.totalorder %s14, 1
      %p37 = por %p35, %p36
      %p39 = scmp.ne.s32.totalorder %s22, %s38
      %p40 = scmp.eq.s32.totalorder %s14, 0
      %p41 = por %p39, %p40
      %s42 = ssub.s32 %s8, %s15
      %p43 = scmp.eq.s32.totalorder %s42, 0
      %s45 = sadd.s32 %s44, 1
      %s46 = scalar_select %p43, %s44, %s45
      %p49 = pneg %p43
      %p50 = scmp.eq.s32.totalorder %s8, 1
      %p51 = por %p49, %p50
      %p52 = scmp.ne.s32.totalorder %s44, %s47
      %p53 = scmp.eq.s32.totalorder %s8, 0
      %p54 = por %p52, %p53
      %p55 = scmp.ne.s32.totalorder %s44, %s47
      %p56 = scmp.eq.s32.totalorder %s13, 1
      %p57 = por %p55, %p56
      %p58 = scmp.ne.s32.totalorder %s47, %s48
      %p59 = scmp.eq.s32.totalorder %s13, 0
      %p60 = por %p58, %p59
      %p61 = scmp.ne.s32.totalorder %s47, %s48
      %p62 = scmp.eq.s32.totalorder %s14, 1
      %p63 = por %p61, %p62
      %p65 = scmp.ne.s32.totalorder %s48, %s64
      %p66 = scmp.eq.s32.totalorder %s14, 0
      %p67 = por %p65, %p66
      %s68 = ssub.s32 %s8, %s15
      %p69 = scmp.eq.s32.totalorder %s68, 0
      %s71 = sadd.s32 %s70, 1
      %s72 = scalar_select %p69, %s70, %s71
      %p75 = pneg %p69
      %p76 = scmp.eq.s32.totalorder %s8, 1
      %p77 = por %p75, %p76
      %p78 = scmp.ne.s32.totalorder %s70, %s73
      %p79 = scmp.eq.s32.totalorder %s8, 0
      %p80 = por %p78, %p79
      %p81 = scmp.ne.s32.totalorder %s70, %s73
      %p82 = scmp.eq.s32.totalorder %s13, 1
      %p83 = por %p81, %p82
      %p84 = scmp.ne.s32.totalorder %s73, %s74
      %p85 = scmp.eq.s32.totalorder %s13, 0
      %p86 = por %p84, %p85
      %p87 = scmp.ne.s32.totalorder %s73, %s74
      %p88 = scmp.eq.s32.totalorder %s14, 1
      %p89 = por %p87, %p88
      %p91 = scmp.ne.s32.totalorder %s74, %s90
      %p92 = scmp.eq.s32.totalorder %s14, 0
      %p93 = por %p91, %p92
      %p94 = scmp.le.s32.totalorder 1, %s8
      %p95 = scmp.lt.s32.totalorder %s8, 3
      %p96 = pnand %p94, %p95
      %p97 = pneg %p96
      // Predicated region
      $region9: #{_lambda_.18} parent=5 // pred_check
        _
      $region10: #{_lambda_.18} parent=5 // pred_check_branch
        %99 = sbr.rel (%p96) target = $region12
      $region11: #{_lambda_.18} parent=5 // pred_region
        %s100 = ssub.s32 %s8, 1
      $region12: #{_lambda_.18} parent=5 // pred_fallthru
        _
      %p101 = scmp.lt.s32.totalorder %s8, 2
      // Predicated region
      $region13: #{_lambda_.18} parent=5 // pred_check
        %p102 = pneg %p101
      $region14: #{_lambda_.18} parent=5 // pred_check_branch
        %104 = sbr.rel (%p102) target = $region16
      $region15: #{_lambda_.18} parent=5 // pred_region
        // Predicated region
        $region17: #{_lambda_.18} parent=15 // pred_check
          %p105 = pneg %p28
        $region18: #{_lambda_.18} parent=15 // pred_check_branch
          %107 = sbr.rel (%p105) target = $region20
        $region19: #{_lambda_.18} parent=15 // pred_region
          %p108 = scmp.lt.s32.totalorder %s8, 1
          %s109 = scalar_select %p108, %s8, 1
          %s110 = smul.addr %s109, 8
          %s111 = scalar_lea.vmem %s0, %s110
        $region20: #{_lambda_.18} parent=15 // pred_fallthru
          _
        // Predicated region
        $region21: #{_lambda_.18} parent=15 // pred_check
          %p112 = pneg %p54
        $region22: #{_lambda_.18} parent=15 // pred_check_branch
          %114 = sbr.rel (%p112) target = $region24
        $region23: #{_lambda_.18} parent=15 // pred_region
          %s115 = sand.u32 %s44, 1
          %s116 = sand.u32 %s44, 1
          %s117 = smul.addr %s116, 32
          %s118 = scalar_lea.vmem [#allocation2], %s117
          %s119 = smul.addr %s8, 8
          %s120 = scalar_lea.vmem %s1, %s119
          // Predicated region
          $region25: #{_lambda_.18} parent=23 // pred_check
            _
          $region26: #{_lambda_.18} parent=23 // pred_check_branch
            %122 = sbr.rel (0) target = $region28
          $region27: #{_lambda_.18} parent=23 // pred_region
            // Predicated region
            $region29: #{_lambda_.18} parent=27 // pred_check
              _
            $region30: #{_lambda_.18} parent=27 // pred_check_branch
              %124 = sbr.rel (0) target = $region32
            $region31: #{_lambda_.18} parent=27 // pred_region
              // Predicated region
              $region44: #{_lambda_.18} parent=31 // pred_check
                _
              $region45: #{_lambda_.18} parent=31 // pred_check_branch
                %145 = sbr.rel (0) target = $region47
              $region46: #{_lambda_.18} parent=31 // pred_region
                loop: start=0, step=1, limit=1
                $region48: #{_lambda_.18} parent=46 // loop_pre_header
                  _
                $region49: #{_lambda_.18} parent=46 // loop_header
                  %s147 = sphi 0, %s151
                  %p148 = scmp.ge.s32.totalorder %s147, 1
                  %s152 = sphi %s120, %s120
                  %s153 = sphi %s118, %s118
                $region50: #{_lambda_.18} parent=46 // loop_header_branch
                  %150 = sbr.rel (%p148) target = $region54
                $region51: #{_lambda_.18} parent=46 // loop_body
                  %v154 = vld [vmem:[%s152] sm:$0xff]
                  %155 = vst [vmem:[%s153] sm:$0xff] %v154
                  %v156 = vld [vmem:[%s152 + $0x10] sm:$0xff]
                  %157 = vst [vmem:[%s153 + $0x8] sm:$0xff] %v156
                  %v158 = vld [vmem:[%s152 + $0x20] sm:$0xff]
                  %159 = vst [vmem:[%s153 + $0x10] sm:$0xff] %v158
                  %v160 = vld [vmem:[%s152 + $0x30] sm:$0xff]
                  %161 = vst [vmem:[%s153 + $0x18] sm:$0xff] %v160
                $region52: #{_lambda_.18} parent=46 // loop_footer
                  %s151 = sadd.s32 1, %s147
                $region53: #{_lambda_.18} parent=46 // loop_footer_branch
                  %146 = sbr.rel target = $region49
                $region54: #{_lambda_.18} parent=46 // loop_exit
                  _
              $region47: #{_lambda_.18} parent=31 // pred_fallthru
                _
              // Predicated region
              $region55: #{_lambda_.18} parent=31 // pred_check
                _
              $region56: #{_lambda_.18} parent=31 // pred_check_branch
                %163 = sbr.rel target = $region58
              $region57: #{_lambda_.18} parent=31 // pred_region
                _
              $region58: #{_lambda_.18} parent=31 // pred_fallthru
                _
            $region32: #{_lambda_.18} parent=27 // pred_fallthru
              _
            // Predicated region
            $region33: #{_lambda_.18} parent=27 // pred_check
              _
            $region34: #{_lambda_.18} parent=27 // pred_check_branch
              %126 = sbr.rel target = $region36
            $region35: #{_lambda_.18} parent=27 // pred_region
              loop: start=0, step=1, limit=1
              $region37: #{_lambda_.18} parent=35 // loop_pre_header
                _
              $region38: #{_lambda_.18} parent=35 // loop_header
                %s129 = sphi 0, %s133
                %p130 = scmp.ge.s32.totalorder %s129, 1
                %s134 = sphi %s120, %s120
                %s135 = sphi %s118, %s118
              $region39: #{_lambda_.18} parent=35 // loop_header_branch
                %132 = sbr.rel (%p130) target = $region43
              $region40: #{_lambda_.18} parent=35 // loop_body
                %v136 = vld [vmem:[%s134] sm:$0xff]
                %137 = vst [vmem:[%s135] sm:$0xff] %v136
                %v138 = vld [vmem:[%s134 + $0x10] sm:$0xff]
                %139 = vst [vmem:[%s135 + $0x8] sm:$0xff] %v138
                %v140 = vld [vmem:[%s134 + $0x20] sm:$0xff]
                %141 = vst [vmem:[%s135 + $0x10] sm:$0xff] %v140
                %v142 = vld [vmem:[%s134 + $0x30] sm:$0xff]
                %143 = vst [vmem:[%s135 + $0x18] sm:$0xff] %v142
              $region41: #{_lambda_.18} parent=35 // loop_footer
                %s133 = sadd.s32 1, %s129
              $region42: #{_lambda_.18} parent=35 // loop_footer_branch
                %128 = sbr.rel target = $region38
              $region43: #{_lambda_.18} parent=35 // loop_exit
                _
            $region36: #{_lambda_.18} parent=27 // pred_fallthru
              _
          $region28: #{_lambda_.18} parent=23 // pred_fallthru
            _
          %164 = vnop
        $region24: #{_lambda_.18} parent=15 // pred_fallthru
          _
      $region16: #{_lambda_.18} parent=5 // pred_fallthru
        _
      %p165 = scmp.le.s32.totalorder 1, %s8
      %p166 = scmp.lt.s32.totalorder %s8, 3
      %p167 = pnand %p165, %p166
      %p168 = pneg %p167
      // Predicated region
      $region59: #{_lambda_.18} parent=5 // pred_check
        _
      $region60: #{_lambda_.18} parent=5 // pred_check_branch
        %170 = sbr.rel (%p167) target = $region62
      $region61: #{_lambda_.18} parent=5 // pred_region
        %s171 = ssub.s32 %s8, 1
        %s172 = sand.u32 %s47, 1
        %s173 = sand.u32 %s47, 1
        %s174 = smul.addr %s173, 32
        %s175 = scalar_lea.vmem [#allocation2], %s174
        // Predicated region
        $region63: #{_lambda_.18} parent=61 // pred_check
          %p176 = pneg %p60
        $region64: #{_lambda_.18} parent=61 // pred_check_branch
          %178 = sbr.rel (%p176) target = $region66
        $region65: #{_lambda_.18} parent=61 // pred_region
          _
        $region66: #{_lambda_.18} parent=61 // pred_fallthru
          _
        %p179 = scmp.lt.s32.totalorder %s13, 1
        %s180 = scalar_select %p179, %s13, 1
        %s181 = smul.addr %s180, 8
        %s182 = scalar_lea.vmem %s0, %s181
        %p183 = pneg %p34
        %p184 = pneg %p31
        %s185 = sand.u32 %s47, 1
        %s186 = sand.u32 %s47, 1
        %s187 = smul.addr %s186, 32
        %s188 = scalar_lea.vmem [#allocation2], %s187
        %p189 = pneg %p60
        %p190 = pneg %p57
        %p191 = pneg %p86
        %p192 = pneg %p83
        %p193 = scmp.lt.s32.totalorder %s13, 1
        %s194 = scalar_select %p193, %s13, 1
        %s195 = smul.addr %s194, 8
        %s196 = scalar_lea.vmem %s2, %s195
        %p197 = scmp.lt.s32.totalorder %s13, 1
        %s198 = scalar_select %p197, %s13, 1
        %s199 = smul.addr %s198, 8
        %s200 = scalar_lea.vmem %s0, %s199
        %p201 = scmp.lt.s32.totalorder %s13, 1
        %s202 = scalar_select %p201, %s13, 1
        %s203 = smul.addr %s202, 8
        %s204 = scalar_lea.vmem %s2, %s203
        %v205 = vld [vmem:[%s200] sm:$0xff]
        %v206 = vld [vmem:[%s175] sm:$0xff]
        %208 = vrot.lane.b32.xlu0 %v205, 96
        %v209 = vpop.permute.xlu0 %208
        %vm210 = vcmask 64512
        %v211 = vsel %vm210, %v205, 0
        %v213 = vsel %vm210, %v209, 0
        %215 = vmatprep.subr.mxu0 0.0
        %216 = vmatpush1.xpose.msra.mxu0 %v213
        %217 = vmatprep.subr.mxu0 0.0
        %218 = vmatpush1.xpose.msra.mxu0 0.0
        %219 = vmatprep.subr.mxu0 0.0
        %220 = vmatpush1.xpose.msra.mxu0 0.0
        %221 = vmatprep.subr.mxu0 0.0
        %222 = vmatpush1.xpose.msra.mxu0 0.0
        %223 = vmatprep.subr.mxu0 0.0
        %224 = vmatpush1.xpose.msra.mxu0 0.0
        %225 = vmatprep.subr.mxu0 0.0
        %226 = vmatpush1.xpose.msra.mxu0 0.0
        %227 = vmatprep.subr.mxu0 0.0
        %228 = vmatpush1.xpose.msra.mxu0 0.0
        %229 = vmatprep.subr.mxu0 0.0
        %230 = vmatpush1.xpose.msra.mxu0 0.0
        %231 = vmatprep.subr.mxu0 0.0
        %232 = vmatpush1.xpose.msra.mxu0 0.0
        %233 = vmatprep.subr.mxu0 0.0
        %234 = vmatpush1.xpose.msra.mxu0 0.0
        %235 = vmatprep.subr.mxu0 0.0
        %236 = vmatpush1.xpose.msra.mxu0 0.0
        %237 = vmatprep.subr.mxu0 0.0
        %238 = vmatpush1.xpose.msra.mxu0 0.0
        %239 = vmatprep.subr.mxu0 0.0
        %240 = vmatpush1.xpose.msra.mxu0 0.0
        %241 = vmatprep.subr.mxu0 0.0
        %242 = vmatpush1.xpose.msra.mxu0 0.0
        %243 = vmatprep.subr.mxu0 0.0
        %244 = vmatpush1.xpose.msra.mxu0 0.0
        %245 = vmatprep.subr.mxu0 0.0
        %246 = vmatpush1.xpose.msra.mxu0 0.0
        %247 = vmatprep.subr.mxu0 0.0
        %248 = vmatpush1.xpose.msra.mxu0 0.0
        %249 = vmatprep.subr.mxu0 0.0
        %250 = vmatpush1.xpose.msra.mxu0 0.0
        %251 = vmatprep.subr.mxu0 0.0
        %252 = vmatpush1.xpose.msra.mxu0 0.0
        %253 = vmatprep.subr.mxu0 0.0
        %254 = vmatpush1.xpose.msra.mxu0 0.0
        %255 = vmatprep.subr.mxu0 0.0
        %256 = vmatpush1.xpose.msra.mxu0 0.0
        %257 = vmatprep.subr.mxu0 0.0
        %258 = vmatpush1.xpose.msra.mxu0 0.0
        %259 = vmatprep.subr.mxu0 0.0
        %260 = vmatpush1.xpose.msra.mxu0 0.0
        %261 = vmatprep.subr.mxu0 0.0
        %262 = vmatpush1.xpose.msra.mxu0 0.0
        %263 = vmatprep.subr.mxu0 0.0
        %264 = vmatpush1.xpose.msra.mxu0 0.0
        %265 = vmatprep.subr.mxu0 0.0
        %266 = vmatpush1.xpose.msra.mxu0 0.0
        %267 = vmatprep.subr.mxu0 0.0
        %268 = vmatpush1.xpose.msra.mxu0 0.0
        %269 = vmatprep.subr.mxu0 0.0
        %270 = vmatpush1.xpose.msra.mxu0 0.0
        %271 = vmatprep.subr.mxu0 0.0
        %272 = vmatpush1.xpose.msra.mxu0 0.0
        %273 = vmatprep.subr.mxu0 0.0
        %274 = vmatpush1.xpose.msra.mxu0 0.0
        %275 = vmatprep.subr.mxu0 0.0
        %276 = vmatpush1.xpose.msra.mxu0 0.0
        %277 = vmatprep.subr.mxu0 0.0
        %278 = vmatpush1.xpose.msra.mxu0 0.0
        %279 = vmatprep.mubr.f32.mxu0 0.0
        %280 = vmatmul.mubr.f32.gmra.mrb[0].mxu0 %v211
        %v281 = vpop.f32.mrb[0].mxu0
        %v282 = vadd.f32 0.0, %v281
        %v283 = vpop.f32.mrb[0].mxu0
        %284 = vdwg.mxu0
        %v285 = vmul.f32 %v282, 0.35355338
        %v286 = vsel %vm210, %v285, -inf
        %287 = vmax.xlane.f32.xlu0 %v286
        %v288 = vpop.xlane.xlu0 %287
        %v289 = vsub.f32 %v285, %v288
        %v290 = vmul.f32 %v289, 1.442695
        %v291 = vpow.pop %v290
        %v292 = vsel %vm210, %v291, 0.0
        %293 = vadd.xlane.f32.xlu0 %v292
        %v294 = vpop.xlane.xlu0 %293
        %v295 = vrcp.pop %v294
        %v296 = vmul.f32 %v291, %v295
        %v297 = vadd.f32 %v296, %v206
        %298 = vrot.lane.b32.xlu0 %v205, 64
        %v299 = vpop.permute.xlu0 %298
        %v302 = vsel %vm210, %v297, 0
        %304 = vmatprep.subr.mxu0 0.0
        %305 = vmatpush1.msra.mxu0 %v299
        %306 = vmatprep.subr.mxu0 0.0
        %307 = vmatpush1.msra.mxu0 0.0
        %308 = vmatprep.subr.mxu0 0.0
        %309 = vmatpush1.msra.mxu0 0.0
        %310 = vmatprep.subr.mxu0 0.0
        %311 = vmatpush1.msra.mxu0 0.0
        %312 = vmatprep.subr.mxu0 0.0
        %313 = vmatpush1.msra.mxu0 0.0
        %314 = vmatprep.subr.mxu0 0.0
        %315 = vmatpush1.msra.mxu0 0.0
        %316 = vmatprep.subr.mxu0 0.0
        %317 = vmatpush1.msra.mxu0 0.0
        %318 = vmatprep.subr.mxu0 0.0
        %319 = vmatpush1.msra.mxu0 0.0
        %320 = vmatprep.subr.mxu0 0.0
        %321 = vmatpush1.msra.mxu0 0.0
        %322 = vmatprep.subr.mxu0 0.0
        %323 = vmatpush1.msra.mxu0 0.0
        %324 = vmatprep.subr.mxu0 0.0
        %325 = vmatpush1.msra.mxu0 0.0
        %326 = vmatprep.subr.mxu0 0.0
        %327 = vmatpush1.msra.mxu0 0.0
        %328 = vmatprep.subr.mxu0 0.0
        %329 = vmatpush1.msra.mxu0 0.0
        %330 = vmatprep.subr.mxu0 0.0
        %331 = vmatpush1.msra.mxu0 0.0
        %332 = vmatprep.subr.mxu0 0.0
        %333 = vmatpush1.msra.mxu0 0.0
        %334 = vmatprep.subr.mxu0 0.0
        %335 = vmatpush1.msra.mxu0 0.0
        %336 = vmatprep.subr.mxu0 0.0
        %337 = vmatpush1.msra.mxu0 0.0
        %338 = vmatprep.subr.mxu0 0.0
        %339 = vmatpush1.msra.mxu0 0.0
        %340 = vmatprep.subr.mxu0 0.0
        %341 = vmatpush1.msra.mxu0 0.0
        %342 = vmatprep.subr.mxu0 0.0
        %343 = vmatpush1.msra.mxu0 0.0
        %344 = vmatprep.subr.mxu0 0.0
        %345 = vmatpush1.msra.mxu0 0.0
        %346 = vmatprep.subr.mxu0 0.0
        %347 = vmatpush1.msra.mxu0 0.0
        %348 = vmatprep.subr.mxu0 0.0
        %349 = vmatpush1.msra.mxu0 0.0
        %350 = vmatprep.subr.mxu0 0.0
        %351 = vmatpush1.msra.mxu0 0.0
        %352 = vmatprep.subr.mxu0 0.0
        %353 = vmatpush1.msra.mxu0 0.0
        %354 = vmatprep.subr.mxu0 0.0
        %355 = vmatpush1.msra.mxu0 0.0
        %356 = vmatprep.subr.mxu0 0.0
        %357 = vmatpush1.msra.mxu0 0.0
        %358 = vmatprep.subr.mxu0 0.0
        %359 = vmatpush1.msra.mxu0 0.0
        %360 = vmatprep.subr.mxu0 0.0
        %361 = vmatpush1.msra.mxu0 0.0
        %362 = vmatprep.subr.mxu0 0.0
        %363 = vmatpush1.msra.mxu0 0.0
        %364 = vmatprep.subr.mxu0 0.0
        %365 = vmatpush1.msra.mxu0 0.0
        %366 = vmatprep.subr.mxu0 0.0
        %367 = vmatpush1.msra.mxu0 0.0
        %368 = vmatprep.mubr.f32.mxu0 0.0
        %369 = vmatmul.mubr.f32.gmra.mrb[0].mxu0 %v302
        %v370 = vpop.f32.mrb[0].mxu0
        %v371 = vadd.f32 0.0, %v370
        %v372 = vpop.f32.mrb[0].mxu0
        %373 = vdwg.mxu0
        %s374 = scalar_lea.vmem %s175, 8 [#allocation2]
        %v375 = vld [vmem:[%s374] sm:$0xff]
        %376 = vrot.lane.b32.xlu0 %v205, 120
        %v377 = vpop.permute.xlu0 %376
        %378 = vrot.lane.b32.xlu0 %v205, 88
        %v379 = vpop.permute.xlu0 %378
        %v380 = vsel %vm210, %v377, 0
        %v382 = vsel %vm210, %v379, 0
        %384 = vmatprep.subr.mxu0 0.0
        %385 = vmatpush1.xpose.msra.mxu0 %v382
        %386 = vmatprep.subr.mxu0 0.0
        %387 = vmatpush1.xpose.msra.mxu0 0.0
        %388 = vmatprep.subr.mxu0 0.0
        %389 = vmatpush1.xpose.msra.mxu0 0.0
        %390 = vmatprep.subr.mxu0 0.0
        %391 = vmatpush1.xpose.msra.mxu0 0.0
        %392 = vmatprep.subr.mxu0 0.0
        %393 = vmatpush1.xpose.msra.mxu0 0.0
        %394 = vmatprep.subr.mxu0 0.0
        %395 = vmatpush1.xpose.msra.mxu0 0.0
        %396 = vmatprep.subr.mxu0 0.0
        %397 = vmatpush1.xpose.msra.mxu0 0.0
        %398 = vmatprep.subr.mxu0 0.0
        %399 = vmatpush1.xpose.msra.mxu0 0.0
        %400 = vmatprep.subr.mxu0 0.0
        %401 = vmatpush1.xpose.msra.mxu0 0.0
        %402 = vmatprep.subr.mxu0 0.0
        %403 = vmatpush1.xpose.msra.mxu0 0.0
        %404 = vmatprep.subr.mxu0 0.0
        %405 = vmatpush1.xpose.msra.mxu0 0.0
        %406 = vmatprep.subr.mxu0 0.0
        %407 = vmatpush1.xpose.msra.mxu0 0.0
        %408 = vmatprep.subr.mxu0 0.0
        %409 = vmatpush1.xpose.msra.mxu0 0.0
        %410 = vmatprep.subr.mxu0 0.0
        %411 = vmatpush1.xpose.msra.mxu0 0.0
        %412 = vmatprep.subr.mxu0 0.0
        %413 = vmatpush1.xpose.msra.mxu0 0.0
        %414 = vmatprep.subr.mxu0 0.0
        %415 = vmatpush1.xpose.msra.mxu0 0.0
        %416 = vmatprep.subr.mxu0 0.0
        %417 = vmatpush1.xpose.msra.mxu0 0.0
        %418 = vmatprep.subr.mxu0 0.0
        %419 = vmatpush1.xpose.msra.mxu0 0.0
        %420 = vmatprep.subr.mxu0 0.0
        %421 = vmatpush1.xpose.msra.mxu0 0.0
        %422 = vmatprep.subr.mxu0 0.0
        %423 = vmatpush1.xpose.msra.mxu0 0.0
        %424 = vmatprep.subr.mxu0 0.0
        %425 = vmatpush1.xpose.msra.mxu0 0.0
        %426 = vmatprep.subr.mxu0 0.0
        %427 = vmatpush1.xpose.msra.mxu0 0.0
        %428 = vmatprep.subr.mxu0 0.0
        %429 = vmatpush1.xpose.msra.mxu0 0.0
        %430 = vmatprep.subr.mxu0 0.0
        %431 = vmatpush1.xpose.msra.mxu0 0.0
        %432 = vmatprep.subr.mxu0 0.0
        %433 = vmatpush1.xpose.msra.mxu0 0.0
        %434 = vmatprep.subr.mxu0 0.0
        %435 = vmatpush1.xpose.msra.mxu0 0.0
        %436 = vmatprep.subr.mxu0 0.0
        %437 = vmatpush1.xpose.msra.mxu0 0.0
        %438 = vmatprep.subr.mxu0 0.0
        %439 = vmatpush1.xpose.msra.mxu0 0.0
        %440 = vmatprep.subr.mxu0 0.0
        %441 = vmatpush1.xpose.msra.mxu0 0.0
        %442 = vmatprep.subr.mxu0 0.0
        %443 = vmatpush1.xpose.msra.mxu0 0.0
        %444 = vmatprep.subr.mxu0 0.0
        %445 = vmatpush1.xpose.msra.mxu0 0.0
        %446 = vmatprep.subr.mxu0 0.0
        %447 = vmatpush1.xpose.msra.mxu0 0.0
        %448 = vmatprep.mubr.f32.mxu0 0.0
        %449 = vmatmul.mubr.f32.gmra.mrb[0].mxu0 %v380
        %v450 = vpop.f32.mrb[0].mxu0
        %v451 = vadd.f32 0.0, %v450
        %v452 = vpop.f32.mrb[0].mxu0
        %453 = vdwg.mxu0
        %v454 = vmul.f32 %v451, 0.35355338
        %v455 = vsel %vm210, %v454, -inf
        %456 = vmax.xlane.f32.xlu0 %v455
        %v457 = vpop.xlane.xlu0 %456
        %v458 = vsub.f32 %v454, %v457
        %v459 = vmul.f32 %v458, 1.442695
        %v460 = vpow.pop %v459
        %v461 = vsel %vm210, %v460, 0.0
        %462 = vadd.xlane.f32.xlu0 %v461
        %v463 = vpop.xlane.xlu0 %462
        %v464 = vrcp.pop %v463
        %v465 = vmul.f32 %v460, %v464
        %v466 = vadd.f32 %v465, %v375
        %467 = vrot.lane.b32.xlu0 %v205, 56
        %v468 = vpop.permute.xlu0 %467
        %v471 = vsel %vm210, %v466, 0
        %473 = vmatprep.subr.mxu0 0.0
        %474 = vmatpush1.msra.mxu0 %v468
        %475 = vmatprep.subr.mxu0 0.0
        %476 = vmatpush1.msra.mxu0 0.0
        %477 = vmatprep.subr.mxu0 0.0
        %478 = vmatpush1.msra.mxu0 0.0
        %479 = vmatprep.subr.mxu0 0.0
        %480 = vmatpush1.msra.mxu0 0.0
        %481 = vmatprep.subr.mxu0 0.0
        %482 = vmatpush1.msra.mxu0 0.0
        %483 = vmatprep.subr.mxu0 0.0
        %484 = vmatpush1.msra.mxu0 0.0
        %485 = vmatprep.subr.mxu0 0.0
        %486 = vmatpush1.msra.mxu0 0.0
        %487 = vmatprep.subr.mxu0 0.0
        %488 = vmatpush1.msra.mxu0 0.0
        %489 = vmatprep.subr.mxu0 0.0
        %490 = vmatpush1.msra.mxu0 0.0
        %491 = vmatprep.subr.mxu0 0.0
        %492 = vmatpush1.msra.mxu0 0.0
        %493 = vmatprep.subr.mxu0 0.0
        %494 = vmatpush1.msra.mxu0 0.0
        %495 = vmatprep.subr.mxu0 0.0
        %496 = vmatpush1.msra.mxu0 0.0
        %497 = vmatprep.subr.mxu0 0.0
        %498 = vmatpush1.msra.mxu0 0.0
        %499 = vmatprep.subr.mxu0 0.0
        %500 = vmatpush1.msra.mxu0 0.0
        %501 = vmatprep.subr.mxu0 0.0
        %502 = vmatpush1.msra.mxu0 0.0
        %503 = vmatprep.subr.mxu0 0.0
        %504 = vmatpush1.msra.mxu0 0.0
        %505 = vmatprep.subr.mxu0 0.0
        %506 = vmatpush1.msra.mxu0 0.0
        %507 = vmatprep.subr.mxu0 0.0
        %508 = vmatpush1.msra.mxu0 0.0
        %509 = vmatprep.subr.mxu0 0.0
        %510 = vmatpush1.msra.mxu0 0.0
        %511 = vmatprep.subr.mxu0 0.0
        %512 = vmatpush1.msra.mxu0 0.0
        %513 = vmatprep.subr.mxu0 0.0
        %514 = vmatpush1.msra.mxu0 0.0
        %515 = vmatprep.subr.mxu0 0.0
        %516 = vmatpush1.msra.mxu0 0.0
        %517 = vmatprep.subr.mxu0 0.0
        %518 = vmatpush1.msra.mxu0 0.0
        %519 = vmatprep.subr.mxu0 0.0
        %520 = vmatpush1.msra.mxu0 0.0
        %521 = vmatprep.subr.mxu0 0.0
        %522 = vmatpush1.msra.mxu0 0.0
        %523 = vmatprep.subr.mxu0 0.0
        %524 = vmatpush1.msra.mxu0 0.0
        %525 = vmatprep.subr.mxu0 0.0
        %526 = vmatpush1.msra.mxu0 0.0
        %527 = vmatprep.subr.mxu0 0.0
        %528 = vmatpush1.msra.mxu0 0.0
        %529 = vmatprep.subr.mxu0 0.0
        %530 = vmatpush1.msra.mxu0 0.0
        %531 = vmatprep.subr.mxu0 0.0
        %532 = vmatpush1.msra.mxu0 0.0
        %533 = vmatprep.subr.mxu0 0.0
        %534 = vmatpush1.msra.mxu0 0.0
        %535 = vmatprep.subr.mxu0 0.0
        %536 = vmatpush1.msra.mxu0 0.0
        %537 = vmatprep.mubr.f32.mxu0 0.0
        %538 = vmatmul.mubr.f32.gmra.mrb[0].mxu0 %v471
        %v539 = vpop.f32.mrb[0].mxu0
        %v540 = vadd.f32 0.0, %v539
        %v541 = vpop.f32.mrb[0].mxu0
        %542 = vdwg.mxu0
        %s543 = scalar_lea.vmem %s175, 16 [#allocation2]
        %v544 = vld [vmem:[%s543] sm:$0xff]
        %545 = vrot.lane.b32.xlu0 %v205, 112
        %v546 = vpop.permute.xlu0 %545
        %547 = vrot.lane.b32.xlu0 %v205, 80
        %v548 = vpop.permute.xlu0 %547
        %v549 = vsel %vm210, %v546, 0
        %v551 = vsel %vm210, %v548, 0
        %553 = vmatprep.subr.mxu0 0.0
        %554 = vmatpush1.xpose.msra.mxu0 %v551
        %555 = vmatprep.subr.mxu0 0.0
        %556 = vmatpush1.xpose.msra.mxu0 0.0
        %557 = vmatprep.subr.mxu0 0.0
        %558 = vmatpush1.xpose.msra.mxu0 0.0
        %559 = vmatprep.subr.mxu0 0.0
        %560 = vmatpush1.xpose.msra.mxu0 0.0
        %561 = vmatprep.subr.mxu0 0.0
        %562 = vmatpush1.xpose.msra.mxu0 0.0
        %563 = vmatprep.subr.mxu0 0.0
        %564 = vmatpush1.xpose.msra.mxu0 0.0
        %565 = vmatprep.subr.mxu0 0.0
        %566 = vmatpush1.xpose.msra.mxu0 0.0
        %567 = vmatprep.subr.mxu0 0.0
        %568 = vmatpush1.xpose.msra.mxu0 0.0
        %569 = vmatprep.subr.mxu0 0.0
        %570 = vmatpush1.xpose.msra.mxu0 0.0
        %571 = vmatprep.subr.mxu0 0.0
        %572 = vmatpush1.xpose.msra.mxu0 0.0
        %573 = vmatprep.subr.mxu0 0.0
        %574 = vmatpush1.xpose.msra.mxu0 0.0
        %575 = vmatprep.subr.mxu0 0.0
        %576 = vmatpush1.xpose.msra.mxu0 0.0
        %577 = vmatprep.subr.mxu0 0.0
        %578 = vmatpush1.xpose.msra.mxu0 0.0
        %579 = vmatprep.subr.mxu0 0.0
        %580 = vmatpush1.xpose.msra.mxu0 0.0
        %581 = vmatprep.subr.mxu0 0.0
        %582 = vmatpush1.xpose.msra.mxu0 0.0
        %583 = vmatprep.subr.mxu0 0.0
        %584 = vmatpush1.xpose.msra.mxu0 0.0
        %585 = vmatprep.subr.mxu0 0.0
        %586 = vmatpush1.xpose.msra.mxu0 0.0
        %587 = vmatprep.subr.mxu0 0.0
        %588 = vmatpush1.xpose.msra.mxu0 0.0
        %589 = vmatprep.subr.mxu0 0.0
        %590 = vmatpush1.xpose.msra.mxu0 0.0
        %591 = vmatprep.subr.mxu0 0.0
        %592 = vmatpush1.xpose.msra.mxu0 0.0
        %593 = vmatprep.subr.mxu0 0.0
        %594 = vmatpush1.xpose.msra.mxu0 0.0
        %595 = vmatprep.subr.mxu0 0.0
        %596 = vmatpush1.xpose.msra.mxu0 0.0
        %597 = vmatprep.subr.mxu0 0.0
        %598 = vmatpush1.xpose.msra.mxu0 0.0
        %599 = vmatprep.subr.mxu0 0.0
        %600 = vmatpush1.xpose.msra.mxu0 0.0
        %601 = vmatprep.subr.mxu0 0.0
        %602 = vmatpush1.xpose.msra.mxu0 0.0
        %603 = vmatprep.subr.mxu0 0.0
        %604 = vmatpush1.xpose.msra.mxu0 0.0
        %605 = vmatprep.subr.mxu0 0.0
        %606 = vmatpush1.xpose.msra.mxu0 0.0
        %607 = vmatprep.subr.mxu0 0.0
        %608 = vmatpush1.xpose.msra.mxu0 0.0
        %609 = vmatprep.subr.mxu0 0.0
        %610 = vmatpush1.xpose.msra.mxu0 0.0
        %611 = vmatprep.subr.mxu0 0.0
        %612 = vmatpush1.xpose.msra.mxu0 0.0
        %613 = vmatprep.subr.mxu0 0.0
        %614 = vmatpush1.xpose.msra.mxu0 0.0
        %615 = vmatprep.subr.mxu0 0.0
        %616 = vmatpush1.xpose.msra.mxu0 0.0
        %617 = vmatprep.mubr.f32.mxu0 0.0
        %618 = vmatmul.mubr.f32.gmra.mrb[0].mxu0 %v549
        %v619 = vpop.f32.mrb[0].mxu0
        %v620 = vadd.f32 0.0, %v619
        %v621 = vpop.f32.mrb[0].mxu0
        %622 = vdwg.mxu0
        %v623 = vmul.f32 %v620, 0.35355338
        %v624 = vsel %vm210, %v623, -inf
        %625 = vmax.xlane.f32.xlu0 %v624
        %v626 = vpop.xlane.xlu0 %625
        %v627 = vsub.f32 %v623, %v626
        %v628 = vmul.f32 %v627, 1.442695
        %v629 = vpow.pop %v628
        %v630 = vsel %vm210, %v629, 0.0
        %631 = vadd.xlane.f32.xlu0 %v630
        %v632 = vpop.xlane.xlu0 %631
        %v633 = vrcp.pop %v632
        %v634 = vmul.f32 %v629, %v633
        %v635 = vadd.f32 %v634, %v544
        %636 = vrot.lane.b32.xlu0 %v205, 48
        %v637 = vpop.permute.xlu0 %636
        %v640 = vsel %vm210, %v635, 0
        %642 = vmatprep.subr.mxu0 0.0
        %643 = vmatpush1.msra.mxu0 %v637
        %644 = vmatprep.subr.mxu0 0.0
        %645 = vmatpush1.msra.mxu0 0.0
        %646 = vmatprep.subr.mxu0 0.0
        %647 = vmatpush1.msra.mxu0 0.0
        %648 = vmatprep.subr.mxu0 0.0
        %649 = vmatpush1.msra.mxu0 0.0
        %650 = vmatprep.subr.mxu0 0.0
        %651 = vmatpush1.msra.mxu0 0.0
        %652 = vmatprep.subr.mxu0 0.0
        %653 = vmatpush1.msra.mxu0 0.0
        %654 = vmatprep.subr.mxu0 0.0
        %655 = vmatpush1.msra.mxu0 0.0
        %656 = vmatprep.subr.mxu0 0.0
        %657 = vmatpush1.msra.mxu0 0.0
        %658 = vmatprep.subr.mxu0 0.0
        %659 = vmatpush1.msra.mxu0 0.0
        %660 = vmatprep.subr.mxu0 0.0
        %661 = vmatpush1.msra.mxu0 0.0
        %662 = vmatprep.subr.mxu0 0.0
        %663 = vmatpush1.msra.mxu0 0.0
        %664 = vmatprep.subr.mxu0 0.0
        %665 = vmatpush1.msra.mxu0 0.0
        %666 = vmatprep.subr.mxu0 0.0
        %667 = vmatpush1.msra.mxu0 0.0
        %668 = vmatprep.subr.mxu0 0.0
        %669 = vmatpush1.msra.mxu0 0.0
        %670 = vmatprep.subr.mxu0 0.0
        %671 = vmatpush1.msra.mxu0 0.0
        %672 = vmatprep.subr.mxu0 0.0
        %673 = vmatpush1.msra.mxu0 0.0
        %674 = vmatprep.subr.mxu0 0.0
        %675 = vmatpush1.msra.mxu0 0.0
        %676 = vmatprep.subr.mxu0 0.0
        %677 = vmatpush1.msra.mxu0 0.0
        %678 = vmatprep.subr.mxu0 0.0
        %679 = vmatpush1.msra.mxu0 0.0
        %680 = vmatprep.subr.mxu0 0.0
        %681 = vmatpush1.msra.mxu0 0.0
        %682 = vmatprep.subr.mxu0 0.0
        %683 = vmatpush1.msra.mxu0 0.0
        %684 = vmatprep.subr.mxu0 0.0
        %685 = vmatpush1.msra.mxu0 0.0
        %686 = vmatprep.subr.mxu0 0.0
        %687 = vmatpush1.msra.mxu0 0.0
        %688 = vmatprep.subr.mxu0 0.0
        %689 = vmatpush1.msra.mxu0 0.0
        %690 = vmatprep.subr.mxu0 0.0
        %691 = vmatpush1.msra.mxu0 0.0
        %692 = vmatprep.subr.mxu0 0.0
        %693 = vmatpush1.msra.mxu0 0.0
        %694 = vmatprep.subr.mxu0 0.0
        %695 = vmatpush1.msra.mxu0 0.0
        %696 = vmatprep.subr.mxu0 0.0
        %697 = vmatpush1.msra.mxu0 0.0
        %698 = vmatprep.subr.mxu0 0.0
        %699 = vmatpush1.msra.mxu0 0.0
        %700 = vmatprep.subr.mxu0 0.0
        %701 = vmatpush1.msra.mxu0 0.0
        %702 = vmatprep.subr.mxu0 0.0
        %703 = vmatpush1.msra.mxu0 0.0
        %704 = vmatprep.subr.mxu0 0.0
        %705 = vmatpush1.msra.mxu0 0.0
        %706 = vmatprep.mubr.f32.mxu0 0.0
        %707 = vmatmul.mubr.f32.gmra.mrb[0].mxu0 %v640
        %v708 = vpop.f32.mrb[0].mxu0
        %v709 = vadd.f32 0.0, %v708
        %v710 = vpop.f32.mrb[0].mxu0
        %711 = vdwg.mxu0
        %s712 = scalar_lea.vmem %s175, 24 [#allocation2]
        %v713 = vld [vmem:[%s712] sm:$0xff]
        %714 = vrot.lane.b32.xlu0 %v205, 104
        %v715 = vpop.permute.xlu0 %714
        %716 = vrot.lane.b32.xlu0 %v205, 72
        %v717 = vpop.permute.xlu0 %716
        %v718 = vsel %vm210, %v715, 0
        %v720 = vsel %vm210, %v717, 0
        %722 = vmatprep.subr.mxu0 0.0
        %723 = vmatpush1.xpose.msra.mxu0 %v720
        %724 = vmatprep.subr.mxu0 0.0
        %725 = vmatpush1.xpose.msra.mxu0 0.0
        %726 = vmatprep.subr.mxu0 0.0
        %727 = vmatpush1.xpose.msra.mxu0 0.0
        %728 = vmatprep.subr.mxu0 0.0
        %729 = vmatpush1.xpose.msra.mxu0 0.0
        %730 = vmatprep.subr.mxu0 0.0
        %731 = vmatpush1.xpose.msra.mxu0 0.0
        %732 = vmatprep.subr.mxu0 0.0
        %733 = vmatpush1.xpose.msra.mxu0 0.0
        %734 = vmatprep.subr.mxu0 0.0
        %735 = vmatpush1.xpose.msra.mxu0 0.0
        %736 = vmatprep.subr.mxu0 0.0
        %737 = vmatpush1.xpose.msra.mxu0 0.0
        %738 = vmatprep.subr.mxu0 0.0
        %739 = vmatpush1.xpose.msra.mxu0 0.0
        %740 = vmatprep.subr.mxu0 0.0
        %741 = vmatpush1.xpose.msra.mxu0 0.0
        %742 = vmatprep.subr.mxu0 0.0
        %743 = vmatpush1.xpose.msra.mxu0 0.0
        %744 = vmatprep.subr.mxu0 0.0
        %745 = vmatpush1.xpose.msra.mxu0 0.0
        %746 = vmatprep.subr.mxu0 0.0
        %747 = vmatpush1.xpose.msra.mxu0 0.0
        %748 = vmatprep.subr.mxu0 0.0
        %749 = vmatpush1.xpose.msra.mxu0 0.0
        %750 = vmatprep.subr.mxu0 0.0
        %751 = vmatpush1.xpose.msra.mxu0 0.0
        %752 = vmatprep.subr.mxu0 0.0
        %753 = vmatpush1.xpose.msra.mxu0 0.0
        %754 = vmatprep.subr.mxu0 0.0
        %755 = vmatpush1.xpose.msra.mxu0 0.0
        %756 = vmatprep.subr.mxu0 0.0
        %757 = vmatpush1.xpose.msra.mxu0 0.0
        %758 = vmatprep.subr.mxu0 0.0
        %759 = vmatpush1.xpose.msra.mxu0 0.0
        %760 = vmatprep.subr.mxu0 0.0
        %761 = vmatpush1.xpose.msra.mxu0 0.0
        %762 = vmatprep.subr.mxu0 0.0
        %763 = vmatpush1.xpose.msra.mxu0 0.0
        %764 = vmatprep.subr.mxu0 0.0
        %765 = vmatpush1.xpose.msra.mxu0 0.0
        %766 = vmatprep.subr.mxu0 0.0
        %767 = vmatpush1.xpose.msra.mxu0 0.0
        %768 = vmatprep.subr.mxu0 0.0
        %769 = vmatpush1.xpose.msra.mxu0 0.0
        %770 = vmatprep.subr.mxu0 0.0
        %771 = vmatpush1.xpose.msra.mxu0 0.0
        %772 = vmatprep.subr.mxu0 0.0
        %773 = vmatpush1.xpose.msra.mxu0 0.0
        %774 = vmatprep.subr.mxu0 0.0
        %775 = vmatpush1.xpose.msra.mxu0 0.0
        %776 = vmatprep.subr.mxu0 0.0
        %777 = vmatpush1.xpose.msra.mxu0 0.0
        %778 = vmatprep.subr.mxu0 0.0
        %779 = vmatpush1.xpose.msra.mxu0 0.0
        %780 = vmatprep.subr.mxu0 0.0
        %781 = vmatpush1.xpose.msra.mxu0 0.0
        %782 = vmatprep.subr.mxu0 0.0
        %783 = vmatpush1.xpose.msra.mxu0 0.0
        %784 = vmatprep.subr.mxu0 0.0
        %785 = vmatpush1.xpose.msra.mxu0 0.0
        %786 = vmatprep.mubr.f32.mxu0 0.0
        %787 = vmatmul.mubr.f32.gmra.mrb[0].mxu0 %v718
        %v788 = vpop.f32.mrb[0].mxu0
        %v789 = vadd.f32 0.0, %v788
        %v790 = vpop.f32.mrb[0].mxu0
        %791 = vdwg.mxu0
        %v792 = vmul.f32 %v789, 0.35355338
        %v793 = vsel %vm210, %v792, -inf
        %794 = vmax.xlane.f32.xlu0 %v793
        %v795 = vpop.xlane.xlu0 %794
        %v796 = vsub.f32 %v792, %v795
        %v797 = vmul.f32 %v796, 1.442695
        %v798 = vpow.pop %v797
        %v799 = vsel %vm210, %v798, 0.0
        %800 = vadd.xlane.f32.xlu0 %v799
        %v801 = vpop.xlane.xlu0 %800
        %v802 = vrcp.pop %v801
        %v803 = vmul.f32 %v798, %v802
        %v804 = vadd.f32 %v803, %v713
        %805 = vrot.lane.b32.xlu0 %v205, 40
        %v806 = vpop.permute.xlu0 %805
        %v809 = vsel %vm210, %v804, 0
        %811 = vmatprep.subr.mxu0 0.0
        %812 = vmatpush1.msra.mxu0 %v806
        %813 = vmatprep.subr.mxu0 0.0
        %814 = vmatpush1.msra.mxu0 0.0
        %815 = vmatprep.subr.mxu0 0.0
        %816 = vmatpush1.msra.mxu0 0.0
        %817 = vmatprep.subr.mxu0 0.0
        %818 = vmatpush1.msra.mxu0 0.0
        %819 = vmatprep.subr.mxu0 0.0
        %820 = vmatpush1.msra.mxu0 0.0
        %821 = vmatprep.subr.mxu0 0.0
        %822 = vmatpush1.msra.mxu0 0.0
        %823 = vmatprep.subr.mxu0 0.0
        %824 = vmatpush1.msra.mxu0 0.0
        %825 = vmatprep.subr.mxu0 0.0
        %826 = vmatpush1.msra.mxu0 0.0
        %827 = vmatprep.subr.mxu0 0.0
        %828 = vmatpush1.msra.mxu0 0.0
        %829 = vmatprep.subr.mxu0 0.0
        %830 = vmatpush1.msra.mxu0 0.0
        %831 = vmatprep.subr.mxu0 0.0
        %832 = vmatpush1.msra.mxu0 0.0
        %833 = vmatprep.subr.mxu0 0.0
        %834 = vmatpush1.msra.mxu0 0.0
        %835 = vmatprep.subr.mxu0 0.0
        %836 = vmatpush1.msra.mxu0 0.0
        %837 = vmatprep.subr.mxu0 0.0
        %838 = vmatpush1.msra.mxu0 0.0
        %839 = vmatprep.subr.mxu0 0.0
        %840 = vmatpush1.msra.mxu0 0.0
        %841 = vmatprep.subr.mxu0 0.0
        %842 = vmatpush1.msra.mxu0 0.0
        %843 = vmatprep.subr.mxu0 0.0
        %844 = vmatpush1.msra.mxu0 0.0
        %845 = vmatprep.subr.mxu0 0.0
        %846 = vmatpush1.msra.mxu0 0.0
        %847 = vmatprep.subr.mxu0 0.0
        %848 = vmatpush1.msra.mxu0 0.0
        %849 = vmatprep.subr.mxu0 0.0
        %850 = vmatpush1.msra.mxu0 0.0
        %851 = vmatprep.subr.mxu0 0.0
        %852 = vmatpush1.msra.mxu0 0.0
        %853 = vmatprep.subr.mxu0 0.0
        %854 = vmatpush1.msra.mxu0 0.0
        %855 = vmatprep.subr.mxu0 0.0
        %856 = vmatpush1.msra.mxu0 0.0
        %857 = vmatprep.subr.mxu0 0.0
        %858 = vmatpush1.msra.mxu0 0.0
        %859 = vmatprep.subr.mxu0 0.0
        %860 = vmatpush1.msra.mxu0 0.0
        %861 = vmatprep.subr.mxu0 0.0
        %862 = vmatpush1.msra.mxu0 0.0
        %863 = vmatprep.subr.mxu0 0.0
        %864 = vmatpush1.msra.mxu0 0.0
        %865 = vmatprep.subr.mxu0 0.0
        %866 = vmatpush1.msra.mxu0 0.0
        %867 = vmatprep.subr.mxu0 0.0
        %868 = vmatpush1.msra.mxu0 0.0
        %869 = vmatprep.subr.mxu0 0.0
        %870 = vmatpush1.msra.mxu0 0.0
        %871 = vmatprep.subr.mxu0 0.0
        %872 = vmatpush1.msra.mxu0 0.0
        %873 = vmatprep.subr.mxu0 0.0
        %874 = vmatpush1.msra.mxu0 0.0
        %875 = vmatprep.mubr.f32.mxu0 0.0
        %876 = vmatmul.mubr.f32.gmra.mrb[0].mxu0 %v809
        %v877 = vpop.f32.mrb[0].mxu0
        %v878 = vadd.f32 0.0, %v877
        %v879 = vpop.f32.mrb[0].mxu0
        %880 = vdwg.mxu0
        %882 = vrot.lane.b32.xlu0 %v540, 8
        %v883 = vpop.permute.xlu0 %882
        %886 = vrot.lane.b32.xlu0 %v709, 16
        %v887 = vpop.permute.xlu0 %886
        %890 = vrot.lane.b32.xlu0 %v878, 24
        %v891 = vpop.permute.xlu0 %890
        %v893 = vsel %vm210, %v371, %v883
        %vm894 = vcmask 130048
        %v895 = vsel %vm894, %v893, %v887
        %vm896 = vcmask 195584
        %v897 = vsel %vm896, %v895, %v891
        %vm898 = vcmask 261120
        %899 = vst.msk [vmem:[%s204] sm:$0xff] %vm898, %v897
        %p900 = scmp.lt.s32.totalorder %s13, 1
        %s901 = scalar_select %p900, %s13, 1
        %s902 = smul.addr %s901, 8
        %s903 = scalar_lea.vmem %s2, %s902
        // Predicated region
        $region67: #{_lambda_.18} parent=61 // pred_check
          %p904 = pneg %p83
        $region68: #{_lambda_.18} parent=61 // pred_check_branch
          %906 = sbr.rel (%p904) target = $region70
        $region69: #{_lambda_.18} parent=61 // pred_region
          _
        $region70: #{_lambda_.18} parent=61 // pred_fallthru
          _
      $region62: #{_lambda_.18} parent=5 // pred_fallthru
        _
      %p907 = scmp.le.s32.totalorder 2, %s8
      // Predicated region
      $region71: #{_lambda_.18} parent=5 // pred_check
        %p908 = pneg %p907
      $region72: #{_lambda_.18} parent=5 // pred_check_branch
        %910 = sbr.rel (%p908) target = $region74
      $region73: #{_lambda_.18} parent=5 // pred_region
        %s911 = ssub.s32 %s8, 2
        // Predicated region
        $region75: #{_lambda_.18} parent=73 // pred_check
          %p912 = pneg %p89
        $region76: #{_lambda_.18} parent=73 // pred_check_branch
          %914 = sbr.rel (%p912) target = $region78
        $region77: #{_lambda_.18} parent=73 // pred_region
          %p915 = scmp.lt.s32.totalorder %s14, 1
          %s916 = scalar_select %p915, %s14, 1
          %s917 = smul.addr %s916, 8
          %s918 = scalar_lea.vmem %s2, %s917
        $region78: #{_lambda_.18} parent=73 // pred_fallthru
          _
      $region74: #{_lambda_.18} parent=5 // pred_fallthru
        _
    $region6: #{_lambda_.18} parent=1 // loop_footer
      %s12 = sadd.s32 1, %s8
    $region7: #{_lambda_.18} parent=1 // loop_footer_branch
      %7 = sbr.rel target = $region3
    $region8: #{_lambda_.18} parent=1 // loop_exit
      _

// kernel: _lambda_.17
$region0: #{_lambda_.17}
  #allocation0 [shape = 'u32[]', space=smem, size = 0x4, offset = 0x4, fixed_abs, tag = 'smem constant byte address 0x4 - core index']
  #allocation1 [shape = 'u32[144,128]{1,0:T(1,128)}', space=vmem, size = 0x12000, scoped, tag = 'internal scratch']
  %s0 = inlined_call_operand.hbm [shape: f32[2,8], index: 0, kind: input, shape index: {}]
  %s1 = inlined_call_operand.hbm [shape: f32[4,8,1024], index: 1, kind: input, shape index: {}]
  %s2 = inlined_call_operand.hbm [shape: f32[4,1,1024], index: 2, kind: input, shape index: {}]
  %s3 = inlined_call_operand.hbm [shape: f32[4,1024,64], index: 3, kind: input, shape index: {}]
  %s4 = inlined_call_operand.hbm [shape: f32[4,1,64], index: 4, kind: input, shape index: {}]
  %s5 = inlined_call_operand.vmem [shape: f32[4,2,64], index: 5, kind: output, shape index: {0}]
  %s6 = inlined_call_operand.vmem [shape: f32[4,1,1], index: 6, kind: output, shape index: {1}]
  %7 = xla_tuple %s5, %s6
  %s8 = sld [smem:[#allocation0]]
  $region81: #{_lambda_.17} parent=0
    _
  %s10 = ssub.s32 1, %s8
  %s11 = scalar_select 0, %s10, %s8
  $region1: #{_lambda_.17} parent=0
    #allocation2 [shape = 'u8[1024]{0}', space=vmem, size = 0x400, scoped, tag = 'input window, operand 0, single buffered']
    #allocation3 [shape = 's32[2]{0}', space=sflag, size = 0x8, scoped, tag = 'scoped memory for _lambda_.17']
    #allocation4 [shape = 'u8[65536]{0}', space=vmem, size = 0x10000, scoped, tag = 'input window, operand 1']
    #allocation5 [shape = 's32[2]{0}', space=sflag, size = 0x8, scoped, tag = 'scoped memory for _lambda_.17']
    #allocation6 [shape = 'u8[8192]{0}', space=vmem, size = 0x2000, scoped, tag = 'input window, operand 2']
    #allocation7 [shape = 'u8[1048576]{0}', space=vmem, size = 0x100000, scoped, tag = 'input window, operand 3']
    #allocation8 [shape = 's32[2]{0}', space=sflag, size = 0x8, scoped, tag = 'scoped memory for _lambda_.17']
    #allocation9 [shape = 'u8[1024]{0}', space=vmem, size = 0x400, scoped, tag = 'input window, operand 4']
    %12 = vsyncpa [#allocation3], 0
    %13 = vsyncpa [#allocation5], 0
    %s14 = scalar_lea.sflag [#allocation5], 1
    %15 = vsyncpa %s14, 0
    %16 = vsyncpa [#allocation8], 0
    %s17 = scalar_lea.sflag [#allocation8], 1
    %18 = vsyncpa %s17, 0
    loop: start=0, step=1, limit=6
    $region2: #{_lambda_.17} parent=1 // loop_pre_header
      _
    $region3: #{_lambda_.17} parent=1 // loop_header
      %s20 = sphi 0, %s24
      %p21 = scmp.ge.s32.totalorder %s20, 6
      %s28 = sphi 0, %s28
      %s30 = sphi 0, %s28
      %s31 = sphi 0, %s30
      %s45 = sphi 0, %s31
      %s51 = sphi 0, %s53
      %s54 = sphi 0, %s51
      %s55 = sphi 0, %s54
      %s71 = sphi 0, %s55
      %s77 = sphi 0, %s79
      %s80 = sphi 0, %s77
      %s81 = sphi 0, %s80
      %s97 = sphi 0, %s81
      %s103 = sphi 0, %s105
      %s106 = sphi 0, %s103
      %s107 = sphi 0, %s106
      %s123 = sphi 0, %s107
      %s129 = sphi 0, %s131
      %s132 = sphi 0, %s129
      %s133 = sphi 0, %s132
      %s149 = sphi 0, %s133
      %s155 = sphi 0, %s157
      %s158 = sphi 0, %s155
      %s159 = sphi 0, %s158
      %s175 = sphi 0, %s159
      %s181 = sphi 0, %s183
      %s184 = sphi 0, %s181
      %s185 = sphi 0, %s184
      %s201 = sphi 0, %s185
    $region4: #{_lambda_.17} parent=1 // loop_header_branch
      %23 = sbr.rel (%p21) target = $region8
    $region5: #{_lambda_.17} parent=1 // loop_body
      %s25 = ssub.s32 %s20, 1
      %s26 = ssub.s32 %s20, 2
      %s27 = sadd.s32 %s20, 1
      %s29 = sadd.s32 %s28, 1
      %p32 = scmp.eq.s32.totalorder %s20, 3
      %p33 = scmp.ne.s32.totalorder %s28, %s30
      %p34 = scmp.eq.s32.totalorder %s20, 0
      %p35 = por %p33, %p34
      %p36 = scmp.ne.s32.totalorder %s28, %s30
      %p37 = scmp.eq.s32.totalorder %s25, 3
      %p38 = por %p36, %p37
      %p39 = scmp.ne.s32.totalorder %s30, %s31
      %p40 = scmp.eq.s32.totalorder %s25, 0
      %p41 = por %p39, %p40
      %p42 = scmp.ne.s32.totalorder %s30, %s31
      %p43 = scmp.eq.s32.totalorder %s26, 3
      %p44 = por %p42, %p43
      %p46 = scmp.ne.s32.totalorder %s31, %s45
      %p47 = scmp.eq.s32.totalorder %s26, 0
      %p48 = por %p46, %p47
      %s49 = ssub.s32 %s20, %s27
      %p50 = scmp.eq.s32.totalorder %s49, 0
      %s52 = sadd.s32 %s51, 1
      %s53 = scalar_select %p50, %s51, %s52
      %p56 = pneg %p50
      %p57 = scmp.eq.s32.totalorder %s20, 3
      %p58 = por %p56, %p57
      %p59 = scmp.ne.s32.totalorder %s51, %s54
      %p60 = scmp.eq.s32.totalorder %s20, 0
      %p61 = por %p59, %p60
      %p62 = scmp.ne.s32.totalorder %s51, %s54
      %p63 = scmp.eq.s32.totalorder %s25, 3
      %p64 = por %p62, %p63
      %p65 = scmp.ne.s32.totalorder %s54, %s55
      %p66 = scmp.eq.s32.totalorder %s25, 0
      %p67 = por %p65, %p66
      %p68 = scmp.ne.s32.totalorder %s54, %s55
      %p69 = scmp.eq.s32.totalorder %s26, 3
      %p70 = por %p68, %p69
      %p72 = scmp.ne.s32.totalorder %s55, %s71
      %p73 = scmp.eq.s32.totalorder %s26, 0
      %p74 = por %p72, %p73
      %s75 = ssub.s32 %s20, %s27
      %p76 = scmp.eq.s32.totalorder %s75, 0
      %s78 = sadd.s32 %s77, 1
      %s79 = scalar_select %p76, %s77, %s78
      %p82 = pneg %p76
      %p83 = scmp.eq.s32.totalorder %s20, 3
      %p84 = por %p82, %p83
      %p85 = scmp.ne.s32.totalorder %s77, %s80
      %p86 = scmp.eq.s32.totalorder %s20, 0
      %p87 = por %p85, %p86
      %p88 = scmp.ne.s32.totalorder %s77, %s80
      %p89 = scmp.eq.s32.totalorder %s25, 3
      %p90 = por %p88, %p89
      %p91 = scmp.ne.s32.totalorder %s80, %s81
      %p92 = scmp.eq.s32.totalorder %s25, 0
      %p93 = por %p91, %p92
      %p94 = scmp.ne.s32.totalorder %s80, %s81
      %p95 = scmp.eq.s32.totalorder %s26, 3
      %p96 = por %p94, %p95
      %p98 = scmp.ne.s32.totalorder %s81, %s97
      %p99 = scmp.eq.s32.totalorder %s26, 0
      %p100 = por %p98, %p99
      %s101 = ssub.s32 %s20, %s27
      %p102 = scmp.eq.s32.totalorder %s101, 0
      %s104 = sadd.s32 %s103, 1
      %s105 = scalar_select %p102, %s103, %s104
      %p108 = pneg %p102
      %p109 = scmp.eq.s32.totalorder %s20, 3
      %p110 = por %p108, %p109
      %p111 = scmp.ne.s32.totalorder %s103, %s106
      %p112 = scmp.eq.s32.totalorder %s20, 0
      %p113 = por %p111, %p112
      %p114 = scmp.ne.s32.totalorder %s103, %s106
      %p115 = scmp.eq.s32.totalorder %s25, 3
      %p116 = por %p114, %p115
      %p117 = scmp.ne.s32.totalorder %s106, %s107
      %p118 = scmp.eq.s32.totalorder %s25, 0
      %p119 = por %p117, %p118
      %p120 = scmp.ne.s32.totalorder %s106, %s107
      %p121 = scmp.eq.s32.totalorder %s26, 3
      %p122 = por %p120, %p121
      %p124 = scmp.ne.s32.totalorder %s107, %s123
      %p125 = scmp.eq.s32.totalorder %s26, 0
      %p126 = por %p124, %p125
      %s127 = ssub.s32 %s20, %s27
      %p128 = scmp.eq.s32.totalorder %s127, 0
      %s130 = sadd.s32 %s129, 1
      %s131 = scalar_select %p128, %s129, %s130
      %p134 = pneg %p128
      %p135 = scmp.eq.s32.totalorder %s20, 3
      %p136 = por %p134, %p135
      %p137 = scmp.ne.s32.totalorder %s129, %s132
      %p138 = scmp.eq.s32.totalorder %s20, 0
      %p139 = por %p137, %p138
      %p140 = scmp.ne.s32.totalorder %s129, %s132
      %p141 = scmp.eq.s32.totalorder %s25, 3
      %p142 = por %p140, %p141
      %p143 = scmp.ne.s32.totalorder %s132, %s133
      %p144 = scmp.eq.s32.totalorder %s25, 0
      %p145 = por %p143, %p144
      %p146 = scmp.ne.s32.totalorder %s132, %s133
      %p147 = scmp.eq.s32.totalorder %s26, 3
      %p148 = por %p146, %p147
      %p150 = scmp.ne.s32.totalorder %s133, %s149
      %p151 = scmp.eq.s32.totalorder %s26, 0
      %p152 = por %p150, %p151
      %s153 = ssub.s32 %s20, %s27
      %p154 = scmp.eq.s32.totalorder %s153, 0
      %s156 = sadd.s32 %s155, 1
      %s157 = scalar_select %p154, %s155, %s156
      %p160 = pneg %p154
      %p161 = scmp.eq.s32.totalorder %s20, 3
      %p162 = por %p160, %p161
      %p163 = scmp.ne.s32.totalorder %s155, %s158
      %p164 = scmp.eq.s32.totalorder %s20, 0
      %p165 = por %p163, %p164
      %p166 = scmp.ne.s32.totalorder %s155, %s158
      %p167 = scmp.eq.s32.totalorder %s25, 3
      %p168 = por %p166, %p167
      %p169 = scmp.ne.s32.totalorder %s158, %s159
      %p170 = scmp.eq.s32.totalorder %s25, 0
      %p171 = por %p169, %p170
      %p172 = scmp.ne.s32.totalorder %s158, %s159
      %p173 = scmp.eq.s32.totalorder %s26, 3
      %p174 = por %p172, %p173
      %p176 = scmp.ne.s32.totalorder %s159, %s175
      %p177 = scmp.eq.s32.totalorder %s26, 0
      %p178 = por %p176, %p177
      %s179 = ssub.s32 %s20, %s27
      %p180 = scmp.eq.s32.totalorder %s179, 0
      %s182 = sadd.s32 %s181, 1
      %s183 = scalar_select %p180, %s181, %s182
      %p186 = pneg %p180
      %p187 = scmp.eq.s32.totalorder %s20, 3
      %p188 = por %p186, %p187
      %p189 = scmp.ne.s32.totalorder %s181, %s184
      %p190 = scmp.eq.s32.totalorder %s20, 0
      %p191 = por %p189, %p190
      %p192 = scmp.ne.s32.totalorder %s181, %s184
      %p193 = scmp.eq.s32.totalorder %s25, 3
      %p194 = por %p192, %p193
      %p195 = scmp.ne.s32.totalorder %s184, %s185
      %p196 = scmp.eq.s32.totalorder %s25, 0
      %p197 = por %p195, %p196
      %p198 = scmp.ne.s32.totalorder %s184, %s185
      %p199 = scmp.eq.s32.totalorder %s26, 3
      %p200 = por %p198, %p199
      %p202 = scmp.ne.s32.totalorder %s185, %s201
      %p203 = scmp.eq.s32.totalorder %s26, 0
      %p204 = por %p202, %p203
      %p205 = scmp.le.s32.totalorder 1, %s20
      %p206 = scmp.lt.s32.totalorder %s20, 5
      %p207 = pnand %p205, %p206
      %p208 = pneg %p207
      // Predicated region
      $region9: #{_lambda_.17} parent=5 // pred_check
        _
      $region10: #{_lambda_.17} parent=5 // pred_check_branch
        %210 = sbr.rel (%p207) target = $region12
      $region11: #{_lambda_.17} parent=5 // pred_region
        %s211 = ssub.s32 %s20, 1
        // Predicated region
        $region13: #{_lambda_.17} parent=11 // pred_check
          %p212 = pneg %p41
        $region14: #{_lambda_.17} parent=11 // pred_check_branch
          %214 = sbr.rel (%p212) target = $region16
        $region15: #{_lambda_.17} parent=11 // pred_region
          %s216 = ssub.s32 32, 32
          %217 = vsyncadd [#allocation3], %s216
          %s219 = sshll.u32 [#allocation2], 4
          %s220 = int_to_ptr.vmem [resolvable:$true] %s219
          %222 = dma.hbm_to_vmem [thread:$0]  %s0, 32, %s220, [#allocation3]
        $region16: #{_lambda_.17} parent=11 // pred_fallthru
          _
      $region12: #{_lambda_.17} parent=5 // pred_fallthru
        _
      %p223 = scmp.lt.s32.totalorder %s20, 4
      // Predicated region
      $region17: #{_lambda_.17} parent=5 // pred_check
        %p224 = pneg %p223
      $region18: #{_lambda_.17} parent=5 // pred_check_branch
        %226 = sbr.rel (%p224) target = $region20
      $region19: #{_lambda_.17} parent=5 // pred_region
        // Predicated region
        $region21: #{_lambda_.17} parent=19 // pred_check
          %p227 = pneg %p61
        $region22: #{_lambda_.17} parent=19 // pred_check_branch
          %229 = sbr.rel (%p227) target = $region24
        $region23: #{_lambda_.17} parent=19 // pred_region
          %s230 = sand.u32 %s20, 1
          %s231 = scalar_lea.sflag [#allocation5], %s230
          %s232 = sand.u32 %s51, 1
          %s233 = smul.addr %s232, 64
          %s234 = scalar_lea.vmem [#allocation4], %s233
          %s236 = ssub.s32 1024, 1024
          %237 = vsyncadd %s231, %s236
          %s238 = smul.addr %s20, 8
          %s239 = smul.addr %s238, 128
          %s240 = scalar_lea.hbm %s1, %s239
          %s242 = sshll.u32 %s234, 4
          %s243 = int_to_ptr.vmem [resolvable:$true] %s242
          %245 = dma.hbm_to_vmem [thread:$0]  %s240, 1024, %s243, %s231
        $region24: #{_lambda_.17} parent=19 // pred_fallthru
          _
        // Predicated region
        $region25: #{_lambda_.17} parent=19 // pred_check
          %p246 = pneg %p87
        $region26: #{_lambda_.17} parent=19 // pred_check_branch
          %248 = sbr.rel (%p246) target = $region28
        $region27: #{_lambda_.17} parent=19 // pred_region
          %s249 = sand.u32 %s20, 1
          %s250 = scalar_lea.sflag [#allocation5], %s249
          %s251 = sand.u32 %s77, 1
          %s252 = smul.addr %s251, 8
          %s253 = scalar_lea.vmem [#allocation6], %s252
          %s255 = ssub.s32 128, 128
          %256 = vsyncadd %s250, %s255
          %s257 = smul.addr %s20, 8
          %s258 = smul.addr %s257, 16
          %s259 = scalar_lea.hbm %s2, %s258
          %s261 = sshll.u32 %s253, 4
          %s262 = int_to_ptr.vmem [resolvable:$true] %s261
          %264 = dma.hbm_to_vmem [thread:$0]  %s259, 128, %s262, %s250
        $region28: #{_lambda_.17} parent=19 // pred_fallthru
          _
        // Predicated region
        $region29: #{_lambda_.17} parent=19 // pred_check
          %p265 = pneg %p113
        $region30: #{_lambda_.17} parent=19 // pred_check_branch
          %267 = sbr.rel (%p265) target = $region32
        $region31: #{_lambda_.17} parent=19 // pred_region
          %s268 = sand.u32 %s20, 1
          %s269 = scalar_lea.sflag [#allocation8], %s268
          %s270 = sand.u32 %s103, 1
          %s271 = smul.addr %s270, 1024
          %s272 = scalar_lea.vmem [#allocation7], %s271
          %s274 = ssub.s32 16384, 16384
          %275 = vsyncadd %s269, %s274
          %s276 = smul.addr %s20, 128
          %s277 = smul.addr %s276, 128
          %s278 = scalar_lea.hbm %s3, %s277
          %s279 = sshll.u32 %s272, 4
          %s280 = int_to_ptr.vmem [resolvable:$true] %s279
          %285 = dma.hbm_to_vmem [thread:$0]  %s278, 16384, %s280, %s269, 128, 128, 8
        $region32: #{_lambda_.17} parent=19 // pred_fallthru
          _
        // Predicated region
        $region33: #{_lambda_.17} parent=19 // pred_check
          %p286 = pneg %p139
        $region34: #{_lambda_.17} parent=19 // pred_check_branch
          %288 = sbr.rel (%p286) target = $region36
        $region35: #{_lambda_.17} parent=19 // pred_region
          %s289 = sand.u32 %s20, 1
          %s290 = scalar_lea.sflag [#allocation8], %s289
          %s291 = sand.u32 %s129, 1
          %s292 = scalar_lea.vmem [#allocation9], %s291
          %s294 = ssub.s32 16, 16
          %295 = vsyncadd %s290, %s294
          %s296 = smul.addr %s20, 16
          %s297 = scalar_lea.hbm %s4, %s296
          %s299 = sshll.u32 %s292, 4
          %s300 = int_to_ptr.vmem [resolvable:$true] %s299
          %302 = dma.hbm_to_vmem [thread:$0]  %s297, 16, %s300, %s290
        $region36: #{_lambda_.17} parent=19 // pred_fallthru
          _
      $region20: #{_lambda_.17} parent=5 // pred_fallthru
        _
      %p303 = scmp.le.s32.totalorder 1, %s20
      %p304 = scmp.lt.s32.totalorder %s20, 5
      %p305 = pnand %p303, %p304
      %p306 = pneg %p305
      // Predicated region
      $region37: #{_lambda_.17} parent=5 // pred_check
        _
      $region38: #{_lambda_.17} parent=5 // pred_check_branch
        %308 = sbr.rel (%p305) target = $region40
      $region39: #{_lambda_.17} parent=5 // pred_region
        %s309 = ssub.s32 %s20, 1
        // Predicated region
        $region41: #{_lambda_.17} parent=39 // pred_check
          %p310 = pneg %p41
        $region42: #{_lambda_.17} parent=39 // pred_check_branch
          %312 = sbr.rel (%p310) target = $region44
        $region43: #{_lambda_.17} parent=39 // pred_region
          %313 = dma.done [#allocation3], 32
        $region44: #{_lambda_.17} parent=39 // pred_fallthru
          _
        %s314 = sand.u32 %s25, 1
        %s315 = scalar_lea.sflag [#allocation5], %s314
        %s316 = sand.u32 %s54, 1
        %s317 = smul.addr %s316, 64
        %s318 = scalar_lea.vmem [#allocation4], %s317
        // Predicated region
        $region45: #{_lambda_.17} parent=39 // pred_check
          %p319 = pneg %p67
        $region46: #{_lambda_.17} parent=39 // pred_check_branch
          %321 = sbr.rel (%p319) target = $region48
        $region47: #{_lambda_.17} parent=39 // pred_region
          %322 = dma.done %s315, 1024
        $region48: #{_lambda_.17} parent=39 // pred_fallthru
          _
        %s323 = sand.u32 %s25, 1
        %s324 = scalar_lea.sflag [#allocation5], %s323
        %s325 = sand.u32 %s80, 1
        %s326 = smul.addr %s325, 8
        %s327 = scalar_lea.vmem [#allocation6], %s326
        // Predicated region
        $region49: #{_lambda_.17} parent=39 // pred_check
          %p328 = pneg %p93
        $region50: #{_lambda_.17} parent=39 // pred_check_branch
          %330 = sbr.rel (%p328) target = $region52
        $region51: #{_lambda_.17} parent=39 // pred_region
          %331 = dma.done %s324, 128
        $region52: #{_lambda_.17} parent=39 // pred_fallthru
          _
        %s332 = sand.u32 %s25, 1
        %s333 = scalar_lea.sflag [#allocation8], %s332
        %s334 = sand.u32 %s106, 1
        %s335 = smul.addr %s334, 1024
        %s336 = scalar_lea.vmem [#allocation7], %s335
        // Predicated region
        $region53: #{_lambda_.17} parent=39 // pred_check
          %p337 = pneg %p119
        $region54: #{_lambda_.17} parent=39 // pred_check_branch
          %339 = sbr.rel (%p337) target = $region56
        $region55: #{_lambda_.17} parent=39 // pred_region
          %340 = dma.done %s333, 16384
        $region56: #{_lambda_.17} parent=39 // pred_fallthru
          _
        %s341 = sand.u32 %s25, 1
        %s342 = scalar_lea.sflag [#allocation8], %s341
        %s343 = sand.u32 %s132, 1
        %s344 = scalar_lea.vmem [#allocation9], %s343
        // Predicated region
        $region57: #{_lambda_.17} parent=39 // pred_check
          %p345 = pneg %p145
        $region58: #{_lambda_.17} parent=39 // pred_check_branch
          %347 = sbr.rel (%p345) target = $region60
        $region59: #{_lambda_.17} parent=39 // pred_region
          %348 = dma.done %s342, 16
        $region60: #{_lambda_.17} parent=39 // pred_fallthru
          _
        %p349 = pneg %p41
        %p350 = pneg %p38
        %s351 = sand.u32 %s25, 1
        %s352 = scalar_lea.sflag [#allocation5], %s351
        %s353 = sand.u32 %s54, 1
        %s354 = smul.addr %s353, 64
        %s355 = scalar_lea.vmem [#allocation4], %s354
        %p356 = pneg %p67
        %p357 = pneg %p64
        %s358 = sand.u32 %s25, 1
        %s359 = scalar_lea.sflag [#allocation5], %s358
        %s360 = sand.u32 %s80, 1
        %s361 = smul.addr %s360, 8
        %s362 = scalar_lea.vmem [#allocation6], %s361
        %p363 = pneg %p93
        %p364 = pneg %p90
        %s365 = sand.u32 %s25, 1
        %s366 = scalar_lea.sflag [#allocation8], %s365
        %s367 = sand.u32 %s106, 1
        %s368 = smul.addr %s367, 1024
        %s369 = scalar_lea.vmem [#allocation7], %s368
        %p370 = pneg %p119
        %p371 = pneg %p116
        %s372 = sand.u32 %s25, 1
        %s373 = scalar_lea.sflag [#allocation8], %s372
        %s374 = sand.u32 %s132, 1
        %s375 = scalar_lea.vmem [#allocation9], %s374
        %p376 = pneg %p145
        %p377 = pneg %p142
        %p378 = pneg %p171
        %p379 = pneg %p168
        %p380 = scmp.lt.s32.totalorder %s25, 3
        %s381 = scalar_select %p380, %s25, 3
        %s382 = smul.addr %s381, 2
        %s383 = scalar_lea.vmem %s5, %s382
        %p384 = pneg %p197
        %p385 = pneg %p194
        %p386 = scmp.lt.s32.totalorder %s25, 3
        %s387 = scalar_select %p386, %s25, 3
        %s388 = scalar_lea.vmem %s6, %s387
        %p389 = scmp.lt.s32.totalorder %s25, 3
        %s390 = scalar_select %p389, %s25, 3
        %s391 = smul.addr %s390, 2
        %s392 = scalar_lea.vmem %s5, %s391
        %p393 = scmp.lt.s32.totalorder %s25, 3
        %s394 = scalar_select %p393, %s25, 3
        %s395 = scalar_lea.vmem %s6, %s394
        %v396 = vld [vmem:[#allocation2] sm:$0x3]
        %v397 = vld [vmem:[%s318] sm:$0xff]
        %v398 = vld [vmem:[%s318 + $0x8] sm:$0xff]
        %v399 = vld [vmem:[%s318 + $0x10] sm:$0xff]
        %v400 = vld [vmem:[%s318 + $0x18] sm:$0xff]
        %v401 = vld [vmem:[%s318 + $0x20] sm:$0xff]
        %v402 = vld [vmem:[%s318 + $0x28] sm:$0xff]
        %v403 = vld [vmem:[%s318 + $0x30] sm:$0xff]
        %v404 = vld [vmem:[%s318 + $0x38] sm:$0xff]
        %v405 = vld [vmem:[%s327] sm:$0xff]
        %v407 = vlaneseq
        %v408 = vshrl.u32 %v407, 7
        %v409 = vsub.s32 0, %v408
        %v410 = vrot.slane %v405, %v409
        %v411 = vlaneseq
        %v412 = vshrl.u32 %v411, 7
        %v413 = vsub.s32 1, %v412
        %v414 = vrot.slane %v405, %v413
        %v415 = vlaneseq
        %v416 = vshrl.u32 %v415, 7
        %v417 = vsub.s32 2, %v416
        %v418 = vrot.slane %v405, %v417
        %v419 = vlaneseq
        %v420 = vshrl.u32 %v419, 7
        %v421 = vsub.s32 3, %v420
        %v422 = vrot.slane %v405, %v421
        %v423 = vlaneseq
        %v424 = vshrl.u32 %v423, 7
        %v425 = vsub.s32 4, %v424
        %v426 = vrot.slane %v405, %v425
        %v427 = vlaneseq
        %v428 = vshrl.u32 %v427, 7
        %v429 = vsub.s32 5, %v428
        %v430 = vrot.slane %v405, %v429
        %v431 = vlaneseq
        %v432 = vshrl.u32 %v431, 7
        %v433 = vsub.s32 6, %v432
        %v434 = vrot.slane %v405, %v433
        %v435 = vlaneseq
        %v436 = vshrl.u32 %v435, 7
        %v437 = vsub.s32 7, %v436
        %v438 = vrot.slane %v405, %v437
        %vm447 = vcmask 64512
        %v449 = vsel %vm447, %v396, 0
        %451 = vmatprep.subr.mxu0 %v398
        %452 = vmatpush1.msra.mxu0 %v397
        %453 = vmatprep.subr.mxu0 0.0
        %454 = vmatpush1.msra.mxu0 0.0
        %455 = vmatprep.subr.mxu0 0.0
        %456 = vmatpush1.msra.mxu0 0.0
        %457 = vmatprep.subr.mxu0 0.0
        %458 = vmatpush1.msra.mxu0 0.0
        %459 = vmatprep.subr.mxu0 0.0
        %460 = vmatpush1.msra.mxu0 0.0
        %461 = vmatprep.subr.mxu0 0.0
        %462 = vmatpush1.msra.mxu0 0.0
        %463 = vmatprep.subr.mxu0 0.0
        %464 = vmatpush1.msra.mxu0 0.0
        %465 = vmatprep.subr.mxu0 0.0
        %466 = vmatpush1.msra.mxu0 0.0
        %467 = vmatprep.subr.mxu0 0.0
        %468 = vmatpush1.msra.mxu0 0.0
        %469 = vmatprep.subr.mxu0 0.0
        %470 = vmatpush1.msra.mxu0 0.0
        %471 = vmatprep.subr.mxu0 0.0
        %472 = vmatpush1.msra.mxu0 0.0
        %473 = vmatprep.subr.mxu0 0.0
        %474 = vmatpush1.msra.mxu0 0.0
        %475 = vmatprep.subr.mxu0 0.0
        %476 = vmatpush1.msra.mxu0 0.0
        %477 = vmatprep.subr.mxu0 0.0
        %478 = vmatpush1.msra.mxu0 0.0
        %479 = vmatprep.subr.mxu0 0.0
        %480 = vmatpush1.msra.mxu0 0.0
        %481 = vmatprep.subr.mxu0 0.0
        %482 = vmatpush1.msra.mxu0 0.0
        %483 = vmatprep.subr.mxu0 0.0
        %484 = vmatpush1.msra.mxu0 0.0
        %485 = vmatprep.subr.mxu0 0.0
        %486 = vmatpush1.msra.mxu0 0.0
        %487 = vmatprep.subr.mxu0 0.0
        %488 = vmatpush1.msra.mxu0 0.0
        %489 = vmatprep.subr.mxu0 0.0
        %490 = vmatpush1.msra.mxu0 0.0
        %491 = vmatprep.subr.mxu0 0.0
        %492 = vmatpush1.msra.mxu0 0.0
        %493 = vmatprep.subr.mxu0 0.0
        %494 = vmatpush1.msra.mxu0 0.0
        %495 = vmatprep.subr.mxu0 0.0
        %496 = vmatpush1.msra.mxu0 0.0
        %497 = vmatprep.subr.mxu0 0.0
        %498 = vmatpush1.msra.mxu0 0.0
        %499 = vmatprep.subr.mxu0 0.0
        %500 = vmatpush1.msra.mxu0 0.0
        %501 = vmatprep.subr.mxu0 0.0
        %502 = vmatpush1.msra.mxu0 0.0
        %503 = vmatprep.subr.mxu0 0.0
        %504 = vmatpush1.msra.mxu0 0.0
        %505 = vmatprep.subr.mxu0 0.0
        %506 = vmatpush1.msra.mxu0 0.0
        %507 = vmatprep.subr.mxu0 0.0
        %508 = vmatpush1.msra.mxu0 0.0
        %509 = vmatprep.subr.mxu0 0.0
        %510 = vmatpush1.msra.mxu0 0.0
        %511 = vmatprep.subr.mxu0 0.0
        %512 = vmatpush1.msra.mxu0 0.0
        %513 = vmatprep.subr.mxu0 0.0
        %514 = vmatpush1.msra.mxu0 0.0
        %515 = vmatprep.mubr.f32.mxu0 0.0
        %516 = vmatmul.mubr.f32.gmra.mrb[0].mxu0 %v449
        %v517 = vpop.f32.mrb[0].mxu0
        %v518 = vadd.f32 %v410, %v517
        %v519 = vpop.f32.mrb[0].mxu0
        %v520 = vadd.f32 %v414, %v519
        %521 = vdwg.mxu0
        %522 = vmatprep.subr.mxu0 %v400
        %523 = vmatpush1.msra.mxu0 %v399
        %524 = vmatprep.subr.mxu0 0.0
        %525 = vmatpush1.msra.mxu0 0.0
        %526 = vmatprep.subr.mxu0 0.0
        %527 = vmatpush1.msra.mxu0 0.0
        %528 = vmatprep.subr.mxu0 0.0
        %529 = vmatpush1.msra.mxu0 0.0
        %530 = vmatprep.subr.mxu0 0.0
        %531 = vmatpush1.msra.mxu0 0.0
        %532 = vmatprep.subr.mxu0 0.0
        %533 = vmatpush1.msra.mxu0 0.0
        %534 = vmatprep.subr.mxu0 0.0
        %535 = vmatpush1.msra.mxu0 0.0
        %536 = vmatprep.subr.mxu0 0.0
        %537 = vmatpush1.msra.mxu0 0.0
        %538 = vmatprep.subr.mxu0 0.0
        %539 = vmatpush1.msra.mxu0 0.0
        %540 = vmatprep.subr.mxu0 0.0
        %541 = vmatpush1.msra.mxu0 0.0
        %542 = vmatprep.subr.mxu0 0.0
        %543 = vmatpush1.msra.mxu0 0.0
        %544 = vmatprep.subr.mxu0 0.0
        %545 = vmatpush1.msra.mxu0 0.0
        %546 = vmatprep.subr.mxu0 0.0
        %547 = vmatpush1.msra.mxu0 0.0
        %548 = vmatprep.subr.mxu0 0.0
        %549 = vmatpush1.msra.mxu0 0.0
        %550 = vmatprep.subr.mxu0 0.0
        %551 = vmatpush1.msra.mxu0 0.0
        %552 = vmatprep.subr.mxu0 0.0
        %553 = vmatpush1.msra.mxu0 0.0
        %554 = vmatprep.subr.mxu0 0.0
        %555 = vmatpush1.msra.mxu0 0.0
        %556 = vmatprep.subr.mxu0 0.0
        %557 = vmatpush1.msra.mxu0 0.0
        %558 = vmatprep.subr.mxu0 0.0
        %559 = vmatpush1.msra.mxu0 0.0
        %560 = vmatprep.subr.mxu0 0.0
        %561 = vmatpush1.msra.mxu0 0.0
        %562 = vmatprep.subr.mxu0 0.0
        %563 = vmatpush1.msra.mxu0 0.0
        %564 = vmatprep.subr.mxu0 0.0
        %565 = vmatpush1.msra.mxu0 0.0
        %566 = vmatprep.subr.mxu0 0.0
        %567 = vmatpush1.msra.mxu0 0.0
        %568 = vmatprep.subr.mxu0 0.0
        %569 = vmatpush1.msra.mxu0 0.0
        %570 = vmatprep.subr.mxu0 0.0
        %571 = vmatpush1.msra.mxu0 0.0
        %572 = vmatprep.subr.mxu0 0.0
        %573 = vmatpush1.msra.mxu0 0.0
        %574 = vmatprep.subr.mxu0 0.0
        %575 = vmatpush1.msra.mxu0 0.0
        %576 = vmatprep.subr.mxu0 0.0
        %577 = vmatpush1.msra.mxu0 0.0
        %578 = vmatprep.subr.mxu0 0.0
        %579 = vmatpush1.msra.mxu0 0.0
        %580 = vmatprep.subr.mxu0 0.0
        %581 = vmatpush1.msra.mxu0 0.0
        %582 = vmatprep.subr.mxu0 0.0
        %583 = vmatpush1.msra.mxu0 0.0
        %584 = vmatprep.subr.mxu0 0.0
        %585 = vmatpush1.msra.mxu0 0.0
        %586 = vmatprep.mubr.f32.mxu0 0.0
        %587 = vmatmul.mubr.f32.gmra.mrb[0].mxu0 %v449
        %v588 = vpop.f32.mrb[0].mxu0
        %v589 = vadd.f32 %v418, %v588
        %v590 = vpop.f32.mrb[0].mxu0
        %v591 = vadd.f32 %v422, %v590
        %592 = vdwg.mxu0
        %593 = vmatprep.subr.mxu0 %v402
        %594 = vmatpush1.msra.mxu0 %v401
        %595 = vmatprep.subr.mxu0 0.0
        %596 = vmatpush1.msra.mxu0 0.0
        %597 = vmatprep.subr.mxu0 0.0
        %598 = vmatpush1.msra.mxu0 0.0
        %599 = vmatprep.subr.mxu0 0.0
        %600 = vmatpush1.msra.mxu0 0.0
        %601 = vmatprep.subr.mxu0 0.0
        %602 = vmatpush1.msra.mxu0 0.0
        %603 = vmatprep.subr.mxu0 0.0
        %604 = vmatpush1.msra.mxu0 0.0
        %605 = vmatprep.subr.mxu0 0.0
        %606 = vmatpush1.msra.mxu0 0.0
        %607 = vmatprep.subr.mxu0 0.0
        %608 = vmatpush1.msra.mxu0 0.0
        %609 = vmatprep.subr.mxu0 0.0
        %610 = vmatpush1.msra.mxu0 0.0
        %611 = vmatprep.subr.mxu0 0.0
        %612 = vmatpush1.msra.mxu0 0.0
        %613 = vmatprep.subr.mxu0 0.0
        %614 = vmatpush1.msra.mxu0 0.0
        %615 = vmatprep.subr.mxu0 0.0
        %616 = vmatpush1.msra.mxu0 0.0
        %617 = vmatprep.subr.mxu0 0.0
        %618 = vmatpush1.msra.mxu0 0.0
        %619 = vmatprep.subr.mxu0 0.0
        %620 = vmatpush1.msra.mxu0 0.0
        %621 = vmatprep.subr.mxu0 0.0
        %622 = vmatpush1.msra.mxu0 0.0
        %623 = vmatprep.subr.mxu0 0.0
        %624 = vmatpush1.msra.mxu0 0.0
        %625 = vmatprep.subr.mxu0 0.0
        %626 = vmatpush1.msra.mxu0 0.0
        %627 = vmatprep.subr.mxu0 0.0
        %628 = vmatpush1.msra.mxu0 0.0
        %629 = vmatprep.subr.mxu0 0.0
        %630 = vmatpush1.msra.mxu0 0.0
        %631 = vmatprep.subr.mxu0 0.0
        %632 = vmatpush1.msra.mxu0 0.0
        %633 = vmatprep.subr.mxu0 0.0
        %634 = vmatpush1.msra.mxu0 0.0
        %635 = vmatprep.subr.mxu0 0.0
        %636 = vmatpush1.msra.mxu0 0.0
        %637 = vmatprep.subr.mxu0 0.0
        %638 = vmatpush1.msra.mxu0 0.0
        %639 = vmatprep.subr.mxu0 0.0
        %640 = vmatpush1.msra.mxu0 0.0
        %641 = vmatprep.subr.mxu0 0.0
        %642 = vmatpush1.msra.mxu0 0.0
        %643 = vmatprep.subr.mxu0 0.0
        %644 = vmatpush1.msra.mxu0 0.0
        %645 = vmatprep.subr.mxu0 0.0
        %646 = vmatpush1.msra.mxu0 0.0
        %647 = vmatprep.subr.mxu0 0.0
        %648 = vmatpush1.msra.mxu0 0.0
        %649 = vmatprep.subr.mxu0 0.0
        %650 = vmatpush1.msra.mxu0 0.0
        %651 = vmatprep.subr.mxu0 0.0
        %652 = vmatpush1.msra.mxu0 0.0
        %653 = vmatprep.subr.mxu0 0.0
        %654 = vmatpush1.msra.mxu0 0.0
        %655 = vmatprep.subr.mxu0 0.0
        %656 = vmatpush1.msra.mxu0 0.0
        %657 = vmatprep.mubr.f32.mxu0 0.0
        %658 = vmatmul.mubr.f32.gmra.mrb[0].mxu0 %v449
        %v659 = vpop.f32.mrb[0].mxu0
        %v660 = vadd.f32 %v426, %v659
        %v661 = vpop.f32.mrb[0].mxu0
        %v662 = vadd.f32 %v430, %v661
        %663 = vdwg.mxu0
        %664 = vmatprep.subr.mxu0 %v404
        %665 = vmatpush1.msra.mxu0 %v403
        %666 = vmatprep.subr.mxu0 0.0
        %667 = vmatpush1.msra.mxu0 0.0
        %668 = vmatprep.subr.mxu0 0.0
        %669 = vmatpush1.msra.mxu0 0.0
        %670 = vmatprep.subr.mxu0 0.0
        %671 = vmatpush1.msra.mxu0 0.0
        %672 = vmatprep.subr.mxu0 0.0
        %673 = vmatpush1.msra.mxu0 0.0
        %674 = vmatprep.subr.mxu0 0.0
        %675 = vmatpush1.msra.mxu0 0.0
        %676 = vmatprep.subr.mxu0 0.0
        %677 = vmatpush1.msra.mxu0 0.0
        %678 = vmatprep.subr.mxu0 0.0
        %679 = vmatpush1.msra.mxu0 0.0
        %680 = vmatprep.subr.mxu0 0.0
        %681 = vmatpush1.msra.mxu0 0.0
        %682 = vmatprep.subr.mxu0 0.0
        %683 = vmatpush1.msra.mxu0 0.0
        %684 = vmatprep.subr.mxu0 0.0
        %685 = vmatpush1.msra.mxu0 0.0
        %686 = vmatprep.subr.mxu0 0.0
        %687 = vmatpush1.msra.mxu0 0.0
        %688 = vmatprep.subr.mxu0 0.0
        %689 = vmatpush1.msra.mxu0 0.0
        %690 = vmatprep.subr.mxu0 0.0
        %691 = vmatpush1.msra.mxu0 0.0
        %692 = vmatprep.subr.mxu0 0.0
        %693 = vmatpush1.msra.mxu0 0.0
        %694 = vmatprep.subr.mxu0 0.0
        %695 = vmatpush1.msra.mxu0 0.0
        %696 = vmatprep.subr.mxu0 0.0
        %697 = vmatpush1.msra.mxu0 0.0
        %698 = vmatprep.subr.mxu0 0.0
        %699 = vmatpush1.msra.mxu0 0.0
        %700 = vmatprep.subr.mxu0 0.0
        %701 = vmatpush1.msra.mxu0 0.0
        %702 = vmatprep.subr.mxu0 0.0
        %703 = vmatpush1.msra.mxu0 0.0
        %704 = vmatprep.subr.mxu0 0.0
        %705 = vmatpush1.msra.mxu0 0.0
        %706 = vmatprep.subr.mxu0 0.0
        %707 = vmatpush1.msra.mxu0 0.0
        %708 = vmatprep.subr.mxu0 0.0
        %709 = vmatpush1.msra.mxu0 0.0
        %710 = vmatprep.subr.mxu0 0.0
        %711 = vmatpush1.msra.mxu0 0.0
        %712 = vmatprep.subr.mxu0 0.0
        %713 = vmatpush1.msra.mxu0 0.0
        %714 = vmatprep.subr.mxu0 0.0
        %715 = vmatpush1.msra.mxu0 0.0
        %716 = vmatprep.subr.mxu0 0.0
        %717 = vmatpush1.msra.mxu0 0.0
        %718 = vmatprep.subr.mxu0 0.0
        %719 = vmatpush1.msra.mxu0 0.0
        %720 = vmatprep.subr.mxu0 0.0
        %721 = vmatpush1.msra.mxu0 0.0
        %722 = vmatprep.subr.mxu0 0.0
        %723 = vmatpush1.msra.mxu0 0.0
        %724 = vmatprep.subr.mxu0 0.0
        %725 = vmatpush1.msra.mxu0 0.0
        %726 = vmatprep.subr.mxu0 0.0
        %727 = vmatpush1.msra.mxu0 0.0
        %728 = vmatprep.mubr.f32.mxu0 0.0
        %729 = vmatmul.mubr.f32.gmra.mrb[0].mxu0 %v449
        %v730 = vpop.f32.mrb[0].mxu0
        %v731 = vadd.f32 %v434, %v730
        %v732 = vpop.f32.mrb[0].mxu0
        %v733 = vadd.f32 %v438, %v732
        %734 = vdwg.mxu0
        %v735 = vmax.f32 %v518, 0.0
        %v736 = vmax.f32 %v520, 0.0
        %v737 = vmax.f32 %v589, 0.0
        %v738 = vmax.f32 %v591, 0.0
        %v739 = vmax.f32 %v660, 0.0
        %v740 = vmax.f32 %v662, 0.0
        %v741 = vmax.f32 %v731, 0.0
        %v742 = vmax.f32 %v733, 0.0
        %v743 = vld [vmem:[%s336] sm:$0xff]
        %v744 = vld [vmem:[%s336 + $0x8] sm:$0xff]
        %v745 = vld [vmem:[%s336 + $0x10] sm:$0xff]
        %v746 = vld [vmem:[%s336 + $0x18] sm:$0xff]
        %v747 = vld [vmem:[%s336 + $0x20] sm:$0xff]
        %v748 = vld [vmem:[%s336 + $0x28] sm:$0xff]
        %v749 = vld [vmem:[%s336 + $0x30] sm:$0xff]
        %v750 = vld [vmem:[%s336 + $0x38] sm:$0xff]
        %v751 = vld [vmem:[%s336 + $0x40] sm:$0xff]
        %v752 = vld [vmem:[%s336 + $0x48] sm:$0xff]
        %v753 = vld [vmem:[%s336 + $0x50] sm:$0xff]
        %v754 = vld [vmem:[%s336 + $0x58] sm:$0xff]
        %v755 = vld [vmem:[%s336 + $0x60] sm:$0xff]
        %v756 = vld [vmem:[%s336 + $0x68] sm:$0xff]
        %v757 = vld [vmem:[%s336 + $0x70] sm:$0xff]
        %v758 = vld [vmem:[%s336 + $0x78] sm:$0xff]
        %v759 = vld [vmem:[%s336 + $0x80] sm:$0xff]
        %v760 = vld [vmem:[%s336 + $0x88] sm:$0xff]
        %v761 = vld [vmem:[%s336 + $0x90] sm:$0xff]
        %v762 = vld [vmem:[%s336 + $0x98] sm:$0xff]
        %v763 = vld [vmem:[%s336 + $0xa0] sm:$0xff]
        %v764 = vld [vmem:[%s336 + $0xa8] sm:$0xff]
        %v765 = vld [vmem:[%s336 + $0xb0] sm:$0xff]
        %v766 = vld [vmem:[%s336 + $0xb8] sm:$0xff]
        %v767 = vld [vmem:[%s336 + $0xc0] sm:$0xff]
        %v768 = vld [vmem:[%s336 + $0xc8] sm:$0xff]
        %v769 = vld [vmem:[%s336 + $0xd0] sm:$0xff]
        %v770 = vld [vmem:[%s336 + $0xd8] sm:$0xff]
        %v771 = vld [vmem:[%s336 + $0xe0] sm:$0xff]
        %v772 = vld [vmem:[%s336 + $0xe8] sm:$0xff]
        %v773 = vld [vmem:[%s336 + $0xf0] sm:$0xff]
        %v774 = vld [vmem:[%s336 + $0xf8] sm:$0xff]
        %v775 = vld [vmem:[%s336 + $0x100] sm:$0xff]
        %v776 = vld [vmem:[%s336 + $0x108] sm:$0xff]
        %v777 = vld [vmem:[%s336 + $0x110] sm:$0xff]
        %v778 = vld [vmem:[%s336 + $0x118] sm:$0xff]
        %v779 = vld [vmem:[%s336 + $0x120] sm:$0xff]
        %v780 = vld [vmem:[%s336 + $0x128] sm:$0xff]
        %v781 = vld [vmem:[%s336 + $0x130] sm:$0xff]
        %v782 = vld [vmem:[%s336 + $0x138] sm:$0xff]
        %v783 = vld [vmem:[%s336 + $0x140] sm:$0xff]
        %v784 = vld [vmem:[%s336 + $0x148] sm:$0xff]
        %v785 = vld [vmem:[%s336 + $0x150] sm:$0xff]
        %v786 = vld [vmem:[%s336 + $0x158] sm:$0xff]
        %v787 = vld [vmem:[%s336 + $0x160] sm:$0xff]
        %v788 = vld [vmem:[%s336 + $0x168] sm:$0xff]
        %v789 = vld [vmem:[%s336 + $0x170] sm:$0xff]
        %v790 = vld [vmem:[%s336 + $0x178] sm:$0xff]
        %v791 = vld [vmem:[%s336 + $0x180] sm:$0xff]
        %v792 = vld [vmem:[%s336 + $0x188] sm:$0xff]
        %v793 = vld [vmem:[%s336 + $0x190] sm:$0xff]
        %v794 = vld [vmem:[%s336 + $0x198] sm:$0xff]
        %v795 = vld [vmem:[%s336 + $0x1a0] sm:$0xff]
        %v796 = vld [vmem:[%s336 + $0x1a8] sm:$0xff]
        %v797 = vld [vmem:[%s336 + $0x1b0] sm:$0xff]
        %v798 = vld [vmem:[%s336 + $0x1b8] sm:$0xff]
        %v799 = vld [vmem:[%s336 + $0x1c0] sm:$0xff]
        %v800 = vld [vmem:[%s336 + $0x1c8] sm:$0xff]
        %v801 = vld [vmem:[%s336 + $0x1d0] sm:$0xff]
        %v802 = vld [vmem:[%s336 + $0x1d8] sm:$0xff]
        %v803 = vld [vmem:[%s336 + $0x1e0] sm:$0xff]
        %v804 = vld [vmem:[%s336 + $0x1e8] sm:$0xff]
        %v805 = vld [vmem:[%s336 + $0x1f0] sm:$0xff]
        %v806 = vld [vmem:[%s336 + $0x1f8] sm:$0xff]
        %v807 = vld [vmem:[%s336 + $0x200] sm:$0xff]
        %v808 = vld [vmem:[%s336 + $0x208] sm:$0xff]
        %v809 = vld [vmem:[%s336 + $0x210] sm:$0xff]
        %v810 = vld [vmem:[%s336 + $0x218] sm:$0xff]
        %v811 = vld [vmem:[%s336 + $0x220] sm:$0xff]
        %v812 = vld [vmem:[%s336 + $0x228] sm:$0xff]
        %v813 = vld [vmem:[%s336 + $0x230] sm:$0xff]
        %v814 = vld [vmem:[%s336 + $0x238] sm:$0xff]
        %v815 = vld [vmem:[%s336 + $0x240] sm:$0xff]
        %v816 = vld [vmem:[%s336 + $0x248] sm:$0xff]
        %v817 = vld [vmem:[%s336 + $0x250] sm:$0xff]
        %v818 = vld [vmem:[%s336 + $0x258] sm:$0xff]
        %v819 = vld [vmem:[%s336 + $0x260] sm:$0xff]
        %v820 = vld [vmem:[%s336 + $0x268] sm:$0xff]
        %v821 = vld [vmem:[%s336 + $0x270] sm:$0xff]
        %v822 = vld [vmem:[%s336 + $0x278] sm:$0xff]
        %v823 = vld [vmem:[%s336 + $0x280] sm:$0xff]
        %v824 = vld [vmem:[%s336 + $0x288] sm:$0xff]
        %v825 = vld [vmem:[%s336 + $0x290] sm:$0xff]
        %v826 = vld [vmem:[%s336 + $0x298] sm:$0xff]
        %v827 = vld [vmem:[%s336 + $0x2a0] sm:$0xff]
        %v828 = vld [vmem:[%s336 + $0x2a8] sm:$0xff]
        %v829 = vld [vmem:[%s336 + $0x2b0] sm:$0xff]
        %v830 = vld [vmem:[%s336 + $0x2b8] sm:$0xff]
        %v831 = vld [vmem:[%s336 + $0x2c0] sm:$0xff]
        %v832 = vld [vmem:[%s336 + $0x2c8] sm:$0xff]
        %v833 = vld [vmem:[%s336 + $0x2d0] sm:$0xff]
        %v834 = vld [vmem:[%s336 + $0x2d8] sm:$0xff]
        %v835 = vld [vmem:[%s336 + $0x2e0] sm:$0xff]
        %v836 = vld [vmem:[%s336 + $0x2e8] sm:$0xff]
        %v837 = vld [vmem:[%s336 + $0x2f0] sm:$0xff]
        %v838 = vld [vmem:[%s336 + $0x2f8] sm:$0xff]
        %v839 = vld [vmem:[%s336 + $0x300] sm:$0xff]
        %v840 = vld [vmem:[%s336 + $0x308] sm:$0xff]
        %v841 = vld [vmem:[%s336 + $0x310] sm:$0xff]
        %v842 = vld [vmem:[%s336 + $0x318] sm:$0xff]
        %v843 = vld [vmem:[%s336 + $0x320] sm:$0xff]
        %v844 = vld [vmem:[%s336 + $0x328] sm:$0xff]
        %v845 = vld [vmem:[%s336 + $0x330] sm:$0xff]
        %v846 = vld [vmem:[%s336 + $0x338] sm:$0xff]
        %v847 = vld [vmem:[%s336 + $0x340] sm:$0xff]
        %v848 = vld [vmem:[%s336 + $0x348] sm:$0xff]
        %v849 = vld [vmem:[%s336 + $0x350] sm:$0xff]
        %v850 = vld [vmem:[%s336 + $0x358] sm:$0xff]
        %v851 = vld [vmem:[%s336 + $0x360] sm:$0xff]
        %v852 = vld [vmem:[%s336 + $0x368] sm:$0xff]
        %v853 = vld [vmem:[%s336 + $0x370] sm:$0xff]
        %v854 = vld [vmem:[%s336 + $0x378] sm:$0xff]
        %v855 = vld [vmem:[%s336 + $0x380] sm:$0xff]
        %v856 = vld [vmem:[%s336 + $0x388] sm:$0xff]
        %v857 = vld [vmem:[%s336 + $0x390] sm:$0xff]
        %v858 = vld [vmem:[%s336 + $0x398] sm:$0xff]
        %v859 = vld [vmem:[%s336 + $0x3a0] sm:$0xff]
        %v860 = vld [vmem:[%s336 + $0x3a8] sm:$0xff]
        %v861 = vld [vmem:[%s336 + $0x3b0] sm:$0xff]
        %v862 = vld [vmem:[%s336 + $0x3b8] sm:$0xff]
        %v863 = vld [vmem:[%s336 + $0x3c0] sm:$0xff]
        %v864 = vld [vmem:[%s336 + $0x3c8] sm:$0xff]
        %v865 = vld [vmem:[%s336 + $0x3d0] sm:$0xff]
        %v866 = vld [vmem:[%s336 + $0x3d8] sm:$0xff]
        %v867 = vld [vmem:[%s336 + $0x3e0] sm:$0xff]
        %v868 = vld [vmem:[%s336 + $0x3e8] sm:$0xff]
        %v869 = vld [vmem:[%s336 + $0x3f0] sm:$0xff]
        %v870 = vld [vmem:[%s336 + $0x3f8] sm:$0xff]
        %v871 = vld [vmem:[%s344] sm:$0x1]
        %v873 = vlaneseq
        %v874 = vshrl.u32 %v873, 7
        %v875 = vsub.s32 0, %v874
        %v876 = vrot.slane %v871, %v875
        %878 = vmatprep.subr.mxu0 0.0
        %879 = vmatpush1.msra.mxu0 %v743
        %880 = vmatprep.subr.mxu0 0.0
        %881 = vmatpush1.msra.mxu0 %v744
        %882 = vmatprep.subr.mxu0 0.0
        %883 = vmatpush1.msra.mxu0 %v745
        %884 = vmatprep.subr.mxu0 0.0
        %885 = vmatpush1.msra.mxu0 %v746
        %886 = vmatprep.subr.mxu0 0.0
        %887 = vmatpush1.msra.mxu0 %v747
        %888 = vmatprep.subr.mxu0 0.0
        %889 = vmatpush1.msra.mxu0 %v748
        %890 = vmatprep.subr.mxu0 0.0
        %891 = vmatpush1.msra.mxu0 %v749
        %892 = vmatprep.subr.mxu0 0.0
        %893 = vmatpush1.msra.mxu0 %v750
        %894 = vmatprep.subr.mxu0 0.0
        %895 = vmatpush1.msra.mxu0 %v751
        %896 = vmatprep.subr.mxu0 0.0
        %897 = vmatpush1.msra.mxu0 %v752
        %898 = vmatprep.subr.mxu0 0.0
        %899 = vmatpush1.msra.mxu0 %v753
        %900 = vmatprep.subr.mxu0 0.0
        %901 = vmatpush1.msra.mxu0 %v754
        %902 = vmatprep.subr.mxu0 0.0
        %903 = vmatpush1.msra.mxu0 %v755
        %904 = vmatprep.subr.mxu0 0.0
        %905 = vmatpush1.msra.mxu0 %v756
        %906 = vmatprep.subr.mxu0 0.0
        %907 = vmatpush1.msra.mxu0 %v757
        %908 = vmatprep.subr.mxu0 0.0
        %909 = vmatpush1.msra.mxu0 %v758
        %910 = vmatprep.subr.mxu0 0.0
        %911 = vmatpush1.msra.mxu0 %v759
        %912 = vmatprep.subr.mxu0 0.0
        %913 = vmatpush1.msra.mxu0 %v760
        %914 = vmatprep.subr.mxu0 0.0
        %915 = vmatpush1.msra.mxu0 %v761
        %916 = vmatprep.subr.mxu0 0.0
        %917 = vmatpush1.msra.mxu0 %v762
        %918 = vmatprep.subr.mxu0 0.0
        %919 = vmatpush1.msra.mxu0 %v763
        %920 = vmatprep.subr.mxu0 0.0
        %921 = vmatpush1.msra.mxu0 %v764
        %922 = vmatprep.subr.mxu0 0.0
        %923 = vmatpush1.msra.mxu0 %v765
        %924 = vmatprep.subr.mxu0 0.0
        %925 = vmatpush1.msra.mxu0 %v766
        %926 = vmatprep.subr.mxu0 0.0
        %927 = vmatpush1.msra.mxu0 %v767
        %928 = vmatprep.subr.mxu0 0.0
        %929 = vmatpush1.msra.mxu0 %v768
        %930 = vmatprep.subr.mxu0 0.0
        %931 = vmatpush1.msra.mxu0 %v769
        %932 = vmatprep.subr.mxu0 0.0
        %933 = vmatpush1.msra.mxu0 %v770
        %934 = vmatprep.subr.mxu0 0.0
        %935 = vmatpush1.msra.mxu0 %v771
        %936 = vmatprep.subr.mxu0 0.0
        %937 = vmatpush1.msra.mxu0 %v772
        %938 = vmatprep.subr.mxu0 0.0
        %939 = vmatpush1.msra.mxu0 %v773
        %940 = vmatprep.subr.mxu0 0.0
        %941 = vmatpush1.msra.mxu0 %v774
        %942 = vmatprep.mubr.f32.mxu0 %v736
        %943 = vmatmul.mubr.f32.gmra.mrb[0].mxu0 %v735
        %v944 = vpop.f32.mrb[0].mxu0
        %v945 = vadd.f32 %v876, %v944
        %v946 = vpop.f32.mrb[0].mxu0
        %947 = vdwg.mxu0
        %948 = vmatprep.subr.mxu0 0.0
        %949 = vmatpush1.msra.mxu0 %v775
        %950 = vmatprep.subr.mxu0 0.0
        %951 = vmatpush1.msra.mxu0 %v776
        %952 = vmatprep.subr.mxu0 0.0
        %953 = vmatpush1.msra.mxu0 %v777
        %954 = vmatprep.subr.mxu0 0.0
        %955 = vmatpush1.msra.mxu0 %v778
        %956 = vmatprep.subr.mxu0 0.0
        %957 = vmatpush1.msra.mxu0 %v779
        %958 = vmatprep.subr.mxu0 0.0
        %959 = vmatpush1.msra.mxu0 %v780
        %960 = vmatprep.subr.mxu0 0.0
        %961 = vmatpush1.msra.mxu0 %v781
        %962 = vmatprep.subr.mxu0 0.0
        %963 = vmatpush1.msra.mxu0 %v782
        %964 = vmatprep.subr.mxu0 0.0
        %965 = vmatpush1.msra.mxu0 %v783
        %966 = vmatprep.subr.mxu0 0.0
        %967 = vmatpush1.msra.mxu0 %v784
        %968 = vmatprep.subr.mxu0 0.0
        %969 = vmatpush1.msra.mxu0 %v785
        %970 = vmatprep.subr.mxu0 0.0
        %971 = vmatpush1.msra.mxu0 %v786
        %972 = vmatprep.subr.mxu0 0.0
        %973 = vmatpush1.msra.mxu0 %v787
        %974 = vmatprep.subr.mxu0 0.0
        %975 = vmatpush1.msra.mxu0 %v788
        %976 = vmatprep.subr.mxu0 0.0
        %977 = vmatpush1.msra.mxu0 %v789
        %978 = vmatprep.subr.mxu0 0.0
        %979 = vmatpush1.msra.mxu0 %v790
        %980 = vmatprep.subr.mxu0 0.0
        %981 = vmatpush1.msra.mxu0 %v791
        %982 = vmatprep.subr.mxu0 0.0
        %983 = vmatpush1.msra.mxu0 %v792
        %984 = vmatprep.subr.mxu0 0.0
        %985 = vmatpush1.msra.mxu0 %v793
        %986 = vmatprep.subr.mxu0 0.0
        %987 = vmatpush1.msra.mxu0 %v794
        %988 = vmatprep.subr.mxu0 0.0
        %989 = vmatpush1.msra.mxu0 %v795
        %990 = vmatprep.subr.mxu0 0.0
        %991 = vmatpush1.msra.mxu0 %v796
        %992 = vmatprep.subr.mxu0 0.0
        %993 = vmatpush1.msra.mxu0 %v797
        %994 = vmatprep.subr.mxu0 0.0
        %995 = vmatpush1.msra.mxu0 %v798
        %996 = vmatprep.subr.mxu0 0.0
        %997 = vmatpush1.msra.mxu0 %v799
        %998 = vmatprep.subr.mxu0 0.0
        %999 = vmatpush1.msra.mxu0 %v800
        %1000 = vmatprep.subr.mxu0 0.0
        %1001 = vmatpush1.msra.mxu0 %v801
        %1002 = vmatprep.subr.mxu0 0.0
        %1003 = vmatpush1.msra.mxu0 %v802
        %1004 = vmatprep.subr.mxu0 0.0
        %1005 = vmatpush1.msra.mxu0 %v803
        %1006 = vmatprep.subr.mxu0 0.0
        %1007 = vmatpush1.msra.mxu0 %v804
        %1008 = vmatprep.subr.mxu0 0.0
        %1009 = vmatpush1.msra.mxu0 %v805
        %1010 = vmatprep.subr.mxu0 0.0
        %1011 = vmatpush1.msra.mxu0 %v806
        %1012 = vmatprep.mubr.f32.mxu0 %v738
        %1013 = vmatmul.mubr.f32.gmra.mrb[0].mxu0 %v737
        %v1014 = vpop.f32.mrb[0].mxu0
        %v1015 = vadd.f32 %v945, %v1014
        %v1016 = vpop.f32.mrb[0].mxu0
        %1017 = vdwg.mxu0
        %1018 = vmatprep.subr.mxu0 0.0
        %1019 = vmatpush1.msra.mxu0 %v807
        %1020 = vmatprep.subr.mxu0 0.0
        %1021 = vmatpush1.msra.mxu0 %v808
        %1022 = vmatprep.subr.mxu0 0.0
        %1023 = vmatpush1.msra.mxu0 %v809
        %1024 = vmatprep.subr.mxu0 0.0
        %1025 = vmatpush1.msra.mxu0 %v810
        %1026 = vmatprep.subr.mxu0 0.0
        %1027 = vmatpush1.msra.mxu0 %v811
        %1028 = vmatprep.subr.mxu0 0.0
        %1029 = vmatpush1.msra.mxu0 %v812
        %1030 = vmatprep.subr.mxu0 0.0
        %1031 = vmatpush1.msra.mxu0 %v813
        %1032 = vmatprep.subr.mxu0 0.0
        %1033 = vmatpush1.msra.mxu0 %v814
        %1034 = vmatprep.subr.mxu0 0.0
        %1035 = vmatpush1.msra.mxu0 %v815
        %1036 = vmatprep.subr.mxu0 0.0
        %1037 = vmatpush1.msra.mxu0 %v816
        %1038 = vmatprep.subr.mxu0 0.0
        %1039 = vmatpush1.msra.mxu0 %v817
        %1040 = vmatprep.subr.mxu0 0.0
        %1041 = vmatpush1.msra.mxu0 %v818
        %1042 = vmatprep.subr.mxu0 0.0
        %1043 = vmatpush1.msra.mxu0 %v819
        %1044 = vmatprep.subr.mxu0 0.0
        %1045 = vmatpush1.msra.mxu0 %v820
        %1046 = vmatprep.subr.mxu0 0.0
        %1047 = vmatpush1.msra.mxu0 %v821
        %1048 = vmatprep.subr.mxu0 0.0
        %1049 = vmatpush1.msra.mxu0 %v822
        %1050 = vmatprep.subr.mxu0 0.0
        %1051 = vmatpush1.msra.mxu0 %v823
        %1052 = vmatprep.subr.mxu0 0.0
        %1053 = vmatpush1.msra.mxu0 %v824
        %1054 = vmatprep.subr.mxu0 0.0
        %1055 = vmatpush1.msra.mxu0 %v825
        %1056 = vmatprep.subr.mxu0 0.0
        %1057 = vmatpush1.msra.mxu0 %v826
        %1058 = vmatprep.subr.mxu0 0.0
        %1059 = vmatpush1.msra.mxu0 %v827
        %1060 = vmatprep.subr.mxu0 0.0
        %1061 = vmatpush1.msra.mxu0 %v828
        %1062 = vmatprep.subr.mxu0 0.0
        %1063 = vmatpush1.msra.mxu0 %v829
        %1064 = vmatprep.subr.mxu0 0.0
        %1065 = vmatpush1.msra.mxu0 %v830
        %1066 = vmatprep.subr.mxu0 0.0
        %1067 = vmatpush1.msra.mxu0 %v831
        %1068 = vmatprep.subr.mxu0 0.0
        %1069 = vmatpush1.msra.mxu0 %v832
        %1070 = vmatprep.subr.mxu0 0.0
        %1071 = vmatpush1.msra.mxu0 %v833
        %1072 = vmatprep.subr.mxu0 0.0
        %1073 = vmatpush1.msra.mxu0 %v834
        %1074 = vmatprep.subr.mxu0 0.0
        %1075 = vmatpush1.msra.mxu0 %v835
        %1076 = vmatprep.subr.mxu0 0.0
        %1077 = vmatpush1.msra.mxu0 %v836
        %1078 = vmatprep.subr.mxu0 0.0
        %1079 = vmatpush1.msra.mxu0 %v837
        %1080 = vmatprep.subr.mxu0 0.0
        %1081 = vmatpush1.msra.mxu0 %v838
        %1082 = vmatprep.mubr.f32.mxu0 %v740
        %1083 = vmatmul.mubr.f32.gmra.mrb[0].mxu0 %v739
        %v1084 = vpop.f32.mrb[0].mxu0
        %v1085 = vadd.f32 %v1015, %v1084
        %v1086 = vpop.f32.mrb[0].mxu0
        %1087 = vdwg.mxu0
        %1088 = vmatprep.subr.mxu0 0.0
        %1089 = vmatpush1.msra.mxu0 %v839
        %1090 = vmatprep.subr.mxu0 0.0
        %1091 = vmatpush1.msra.mxu0 %v840
        %1092 = vmatprep.subr.mxu0 0.0
        %1093 = vmatpush1.msra.mxu0 %v841
        %1094 = vmatprep.subr.mxu0 0.0
        %1095 = vmatpush1.msra.mxu0 %v842
        %1096 = vmatprep.subr.mxu0 0.0
        %1097 = vmatpush1.msra.mxu0 %v843
        %1098 = vmatprep.subr.mxu0 0.0
        %1099 = vmatpush1.msra.mxu0 %v844
        %1100 = vmatprep.subr.mxu0 0.0
        %1101 = vmatpush1.msra.mxu0 %v845
        %1102 = vmatprep.subr.mxu0 0.0
        %1103 = vmatpush1.msra.mxu0 %v846
        %1104 = vmatprep.subr.mxu0 0.0
        %1105 = vmatpush1.msra.mxu0 %v847
        %1106 = vmatprep.subr.mxu0 0.0
        %1107 = vmatpush1.msra.mxu0 %v848
        %1108 = vmatprep.subr.mxu0 0.0
        %1109 = vmatpush1.msra.mxu0 %v849
        %1110 = vmatprep.subr.mxu0 0.0
        %1111 = vmatpush1.msra.mxu0 %v850
        %1112 = vmatprep.subr.mxu0 0.0
        %1113 = vmatpush1.msra.mxu0 %v851
        %1114 = vmatprep.subr.mxu0 0.0
        %1115 = vmatpush1.msra.mxu0 %v852
        %1116 = vmatprep.subr.mxu0 0.0
        %1117 = vmatpush1.msra.mxu0 %v853
        %1118 = vmatprep.subr.mxu0 0.0
        %1119 = vmatpush1.msra.mxu0 %v854
        %1120 = vmatprep.subr.mxu0 0.0
        %1121 = vmatpush1.msra.mxu0 %v855
        %1122 = vmatprep.subr.mxu0 0.0
        %1123 = vmatpush1.msra.mxu0 %v856
        %1124 = vmatprep.subr.mxu0 0.0
        %1125 = vmatpush1.msra.mxu0 %v857
        %1126 = vmatprep.subr.mxu0 0.0
        %1127 = vmatpush1.msra.mxu0 %v858
        %1128 = vmatprep.subr.mxu0 0.0
        %1129 = vmatpush1.msra.mxu0 %v859
        %1130 = vmatprep.subr.mxu0 0.0
        %1131 = vmatpush1.msra.mxu0 %v860
        %1132 = vmatprep.subr.mxu0 0.0
        %1133 = vmatpush1.msra.mxu0 %v861
        %1134 = vmatprep.subr.mxu0 0.0
        %1135 = vmatpush1.msra.mxu0 %v862
        %1136 = vmatprep.subr.mxu0 0.0
        %1137 = vmatpush1.msra.mxu0 %v863
        %1138 = vmatprep.subr.mxu0 0.0
        %1139 = vmatpush1.msra.mxu0 %v864
        %1140 = vmatprep.subr.mxu0 0.0
        %1141 = vmatpush1.msra.mxu0 %v865
        %1142 = vmatprep.subr.mxu0 0.0
        %1143 = vmatpush1.msra.mxu0 %v866
        %1144 = vmatprep.subr.mxu0 0.0
        %1145 = vmatpush1.msra.mxu0 %v867
        %1146 = vmatprep.subr.mxu0 0.0
        %1147 = vmatpush1.msra.mxu0 %v868
        %1148 = vmatprep.subr.mxu0 0.0
        %1149 = vmatpush1.msra.mxu0 %v869
        %1150 = vmatprep.subr.mxu0 0.0
        %1151 = vmatpush1.msra.mxu0 %v870
        %1152 = vmatprep.mubr.f32.mxu0 %v742
        %1153 = vmatmul.mubr.f32.gmra.mrb[0].mxu0 %v741
        %v1154 = vpop.f32.mrb[0].mxu0
        %v1155 = vadd.f32 %v1085, %v1154
        %v1156 = vpop.f32.mrb[0].mxu0
        %1157 = vdwg.mxu0
        %vm1158 = vcmask 517120
        %1159 = vst.msk [vmem:[%s392] sm:$0x3] %vm1158, %v1155
        %1161 = vrot.lane.b32.xlu0 %v1155, 8
        %v1162 = vpop.permute.xlu0 %1161
        %v1164 = vsub.f32 %v1155, %v1162
        %v1165 = vand.u32 2147483647, %v1164
        %1166 = vrot.lane.b32.xlu0 %v1155, 1
        %v1167 = vpop.permute.xlu0 %1166
        %v1169 = vsub.f32 %v1155, %v1167
        %v1170 = vand.u32 2147483647, %v1169
        %v1171 = vlaneseq
        %v1172 = vand.u32 %v1171, 127
        %v1173 = vadd.s32 %v1172, 1
        %vm1174 = vcmp.lt.s32.totalorder %v1173, 0
        %v1175 = vsub.s32 0, %v1173
        %v1176 = vsel %vm1174, %v1175, %v1173
        %v1177 = vshrl.u32 %v1176, 3
        %v1178 = vand.u32 %v1176, 7
        %v1179 = vsub.s32 0, %v1178
        %v1180 = vsel %vm1174, %v1179, %v1178
        %vm1181 = vcmp.ne.s32.totalorder %v1180, 0
        %vm1182 = vcmp.lt.s32.totalorder %v1180, 0
        %vm1183 = vmand %vm1182, %vm1181
        %v1184 = vadd.s32 %v1180, 8
        %v1185 = vsel %vm1183, %v1184, %v1180
        %vm1186 = vcmp.ne.s32.totalorder %v1185, 0
        %1188 = vrot.lane.b32.xlu0 %v1165, 120
        %v1189 = vpop.permute.xlu0 %1188
        %vm1191 = vcmask 451584
        %v1192 = vsel %vm1191, %v1189, 0.0
        %1193 = vadd.xlane.f32.xlu0 %v1192
        %v1194 = vpop.xlane.xlu0 %1193
        %vm1195 = vcmask 1041408
        %v1196 = vsel %vm1195, %v1194, 0.0
        %v1197 = vrot.slane %v1196, 4
        %v1198 = vadd.f32 %v1196, %v1197
        %v1199 = vrot.slane %v1198, 2
        %v1200 = vadd.f32 %v1198, %v1199
        %v1201 = vrot.slane %v1200, 1
        %v1202 = vadd.f32 %v1200, %v1201
        %1204 = vrot.lane.b32.xlu0 %v1170, 127
        %v1205 = vpop.permute.xlu0 %1204
        %v1207 = vsel %vm1186, %v1205, 0.0
        %vm1208 = vcmask 508928
        %v1209 = vsel %vm1208, %v1207, 0.0
        %1210 = vadd.xlane.f32.xlu0 %v1209
        %v1211 = vpop.xlane.xlu0 %1210
        %v1212 = vsel %vm1195, %v1211, 0.0
        %v1213 = vrot.slane %v1212, 4
        %v1214 = vadd.f32 %v1212, %v1213
        %v1215 = vrot.slane %v1214, 2
        %v1216 = vadd.f32 %v1214, %v1215
        %v1217 = vrot.slane %v1216, 1
        %v1218 = vadd.f32 %v1216, %v1217
        %v1219 = vadd.f32 %v1202, %v1218
        %vm1220 = vcmask 0
        %1221 = vst.msk [vmem:[%s395] sm:$0x1] %vm1220, %v1219
        %p1222 = scmp.lt.s32.totalorder %s25, 3
        %s1223 = scalar_select %p1222, %s25, 3
        %s1224 = smul.addr %s1223, 2
        %s1225 = scalar_lea.vmem %s5, %s1224
        %p1226 = scmp.lt.s32.totalorder %s25, 3
        %s1227 = scalar_select %p1226, %s25, 3
        %s1228 = scalar_lea.vmem %s6, %s1227
        // Predicated region
        $region61: #{_lambda_.17} parent=39 // pred_check
          %p1229 = pneg %p168
        $region62: #{_lambda_.17} parent=39 // pred_check_branch
          %1231 = sbr.rel (%p1229) target = $region64
        $region63: #{_lambda_.17} parent=39 // pred_region
          _
        $region64: #{_lambda_.17} parent=39 // pred_fallthru
          _
        // Predicated region
        $region65: #{_lambda_.17} parent=39 // pred_check
          %p1232 = pneg %p194
        $region66: #{_lambda_.17} parent=39 // pred_check_branch
          %1234 = sbr.rel (%p1232) target = $region68
        $region67: #{_lambda_.17} parent=39 // pred_region
          _
        $region68: #{_lambda_.17} parent=39 // pred_fallthru
          _
      $region40: #{_lambda_.17} parent=5 // pred_fallthru
        _
      %p1235 = scmp.le.s32.totalorder 2, %s20
      // Predicated region
      $region69: #{_lambda_.17} parent=5 // pred_check
        %p1236 = pneg %p1235
      $region70: #{_lambda_.17} parent=5 // pred_check_branch
        %1238 = sbr.rel (%p1236) target = $region72
      $region71: #{_lambda_.17} parent=5 // pred_region
        %s1239 = ssub.s32 %s20, 2
        // Predicated region
        $region73: #{_lambda_.17} parent=71 // pred_check
          %p1240 = pneg %p174
        $region74: #{_lambda_.17} parent=71 // pred_check_branch
          %1242 = sbr.rel (%p1240) target = $region76
        $region75: #{_lambda_.17} parent=71 // pred_region
          %p1243 = scmp.lt.s32.totalorder %s26, 3
          %s1244 = scalar_select %p1243, %s26, 3
          %s1245 = smul.addr %s1244, 2
          %s1246 = scalar_lea.vmem %s5, %s1245
        $region76: #{_lambda_.17} parent=71 // pred_fallthru
          _
        // Predicated region
        $region77: #{_lambda_.17} parent=71 // pred_check
          %p1247 = pneg %p200
        $region78: #{_lambda_.17} parent=71 // pred_check_branch
          %1249 = sbr.rel (%p1247) target = $region80
        $region79: #{_lambda_.17} parent=71 // pred_region
          %p1250 = scmp.lt.s32.totalorder %s26, 3
          %s1251 = scalar_select %p1250, %s26, 3
          %s1252 = scalar_lea.vmem %s6, %s1251
        $region80: #{_lambda_.17} parent=71 // pred_fallthru
          _
      $region72: #{_lambda_.17} parent=5 // pred_fallthru
        _
    $region6: #{_lambda_.17} parent=1 // loop_footer
      %s24 = sadd.s32 1, %s20
    $region7: #{_lambda_.17} parent=1 // loop_footer_branch
      %19 = sbr.rel target = $region3
    $region8: #{_lambda_.17} parent=1 // loop_exit
      _
    %1253 = vsyncpa [#allocation3], 1
    %s1254 = scalar_lea.sflag [#allocation3], 1
    %1255 = vsyncpa %s1254, 1
    %1256 = vsyncpa [#allocation5], 1
    %s1257 = scalar_lea.sflag [#allocation5], 1
    %1258 = vsyncpa %s1257, 1
    %1259 = vsyncpa [#allocation8], 1
    %s1260 = scalar_lea.sflag [#allocation8], 1
    %1261 = vsyncpa %s1260, 1

// kernel: _lambda_.20
$region0: #{_lambda_.20}
  #allocation0 [shape = 'u32[]', space=smem, size = 0x4, offset = 0x4, fixed_abs, tag = 'smem constant byte address 0x4 - core index']
  #allocation1 [shape = 'u32[144,128]{1,0:T(1,128)}', space=vmem, size = 0x12000, scoped, tag = 'internal scratch']
  %s0 = inlined_call_operand.vmem [shape: f32[16,32], index: 0, kind: input, shape index: {}]
  %s1 = inlined_call_operand.vmem [shape: f32[32,64], index: 1, kind: input, shape index: {}]
  %s2 = inlined_call_operand.vmem [shape: f32[1,64], index: 2, kind: input, shape index: {}]
  %s3 = inlined_call_operand.vmem [shape: f32[64,32], index: 3, kind: input, shape index: {}]
  %s4 = inlined_call_operand.vmem [shape: f32[1,32], index: 4, kind: input, shape index: {}]
  %s5 = inlined_call_operand.vmem [shape: f32[16,32], index: 5, kind: output, shape index: {}]
  %s6 = sld [smem:[#allocation0]]
  $region30: #{_lambda_.20} parent=0
    _
  %s8 = ssub.s32 1, %s6
  %s9 = scalar_select 0, %s8, %s6
  // Predicated region
  $region2: #{_lambda_.20} parent=0 // pred_check
    _
  $region3: #{_lambda_.20} parent=0 // pred_check_branch
    %11 = sbr.rel (0) target = $region5
  $region4: #{_lambda_.20} parent=0 // pred_region
    _
  $region5: #{_lambda_.20} parent=0 // pred_fallthru
    _
  // Predicated region
  $region6: #{_lambda_.20} parent=0 // pred_check
    _
  $region7: #{_lambda_.20} parent=0 // pred_check_branch
    %13 = sbr.rel (0) target = $region9
  $region8: #{_lambda_.20} parent=0 // pred_region
    _
  $region9: #{_lambda_.20} parent=0 // pred_fallthru
    _
  // Predicated region
  $region10: #{_lambda_.20} parent=0 // pred_check
    _
  $region11: #{_lambda_.20} parent=0 // pred_check_branch
    %15 = sbr.rel (0) target = $region13
  $region12: #{_lambda_.20} parent=0 // pred_region
    _
  $region13: #{_lambda_.20} parent=0 // pred_fallthru
    _
  // Predicated region
  $region14: #{_lambda_.20} parent=0 // pred_check
    _
  $region15: #{_lambda_.20} parent=0 // pred_check_branch
    %17 = sbr.rel (0) target = $region17
  $region16: #{_lambda_.20} parent=0 // pred_region
    _
  $region17: #{_lambda_.20} parent=0 // pred_fallthru
    _
  // Predicated region
  $region18: #{_lambda_.20} parent=0 // pred_check
    _
  $region19: #{_lambda_.20} parent=0 // pred_check_branch
    %19 = sbr.rel (0) target = $region21
  $region20: #{_lambda_.20} parent=0 // pred_region
    _
  $region21: #{_lambda_.20} parent=0 // pred_fallthru
    _
  %v20 = vld [vmem:[%s0] sm:$0xff]
  %v21 = vld [vmem:[%s0 + $0x8] sm:$0xff]
  %v22 = vld [vmem:[%s1] sm:$0xff]
  %v23 = vld [vmem:[%s1 + $0x8] sm:$0xff]
  %v24 = vld [vmem:[%s1 + $0x10] sm:$0xff]
  %v25 = vld [vmem:[%s1 + $0x18] sm:$0xff]
  %v26 = vld [vmem:[%s2] sm:$0x1]
  %v28 = vlaneseq
  %v29 = vshrl.u32 %v28, 7
  %v30 = vsub.s32 0, %v29
  %v31 = vrot.slane %v26, %v30
  %vm33 = vcmask 261120
  %v35 = vsel %vm33, %v20, 0
  %v38 = vsel %vm33, %v21, 0
  %40 = vmatprep.subr.mxu0 0.0
  %41 = vmatpush1.msra.mxu0 %v22
  %42 = vmatprep.subr.mxu0 0.0
  %43 = vmatpush1.msra.mxu0 %v23
  %44 = vmatprep.subr.mxu0 0.0
  %45 = vmatpush1.msra.mxu0 %v24
  %46 = vmatprep.subr.mxu0 0.0
  %47 = vmatpush1.msra.mxu0 %v25
  %48 = vmatprep.subr.mxu0 0.0
  %49 = vmatpush1.msra.mxu0 0.0
  %50 = vmatprep.subr.mxu0 0.0
  %51 = vmatpush1.msra.mxu0 0.0
  %52 = vmatprep.subr.mxu0 0.0
  %53 = vmatpush1.msra.mxu0 0.0
  %54 = vmatprep.subr.mxu0 0.0
  %55 = vmatpush1.msra.mxu0 0.0
  %56 = vmatprep.subr.mxu0 0.0
  %57 = vmatpush1.msra.mxu0 0.0
  %58 = vmatprep.subr.mxu0 0.0
  %59 = vmatpush1.msra.mxu0 0.0
  %60 = vmatprep.subr.mxu0 0.0
  %61 = vmatpush1.msra.mxu0 0.0
  %62 = vmatprep.subr.mxu0 0.0
  %63 = vmatpush1.msra.mxu0 0.0
  %64 = vmatprep.subr.mxu0 0.0
  %65 = vmatpush1.msra.mxu0 0.0
  %66 = vmatprep.subr.mxu0 0.0
  %67 = vmatpush1.msra.mxu0 0.0
  %68 = vmatprep.subr.mxu0 0.0
  %69 = vmatpush1.msra.mxu0 0.0
  %70 = vmatprep.subr.mxu0 0.0
  %71 = vmatpush1.msra.mxu0 0.0
  %72 = vmatprep.subr.mxu0 0.0
  %73 = vmatpush1.msra.mxu0 0.0
  %74 = vmatprep.subr.mxu0 0.0
  %75 = vmatpush1.msra.mxu0 0.0
  %76 = vmatprep.subr.mxu0 0.0
  %77 = vmatpush1.msra.mxu0 0.0
  %78 = vmatprep.subr.mxu0 0.0
  %79 = vmatpush1.msra.mxu0 0.0
  %80 = vmatprep.subr.mxu0 0.0
  %81 = vmatpush1.msra.mxu0 0.0
  %82 = vmatprep.subr.mxu0 0.0
  %83 = vmatpush1.msra.mxu0 0.0
  %84 = vmatprep.subr.mxu0 0.0
  %85 = vmatpush1.msra.mxu0 0.0
  %86 = vmatprep.subr.mxu0 0.0
  %87 = vmatpush1.msra.mxu0 0.0
  %88 = vmatprep.subr.mxu0 0.0
  %89 = vmatpush1.msra.mxu0 0.0
  %90 = vmatprep.subr.mxu0 0.0
  %91 = vmatpush1.msra.mxu0 0.0
  %92 = vmatprep.subr.mxu0 0.0
  %93 = vmatpush1.msra.mxu0 0.0
  %94 = vmatprep.subr.mxu0 0.0
  %95 = vmatpush1.msra.mxu0 0.0
  %96 = vmatprep.subr.mxu0 0.0
  %97 = vmatpush1.msra.mxu0 0.0
  %98 = vmatprep.subr.mxu0 0.0
  %99 = vmatpush1.msra.mxu0 0.0
  %100 = vmatprep.subr.mxu0 0.0
  %101 = vmatpush1.msra.mxu0 0.0
  %102 = vmatprep.subr.mxu0 0.0
  %103 = vmatpush1.msra.mxu0 0.0
  %104 = vmatprep.mubr.f32.mxu0 0.0
  %105 = vmatmul.mubr.f32.gmra.mrb[0].mxu0 %v35
  %v106 = vpop.f32.mrb[0].mxu0
  %v107 = vadd.f32 %v31, %v106
  %v108 = vpop.f32.mrb[0].mxu0
  %109 = vmatprep.mubr.f32.mxu0 0.0
  %110 = vmatmul.mubr.f32.gmra.mrb[0].mxu0 %v38
  %v111 = vpop.f32.mrb[0].mxu0
  %v112 = vadd.f32 %v31, %v111
  %v113 = vpop.f32.mrb[0].mxu0
  %114 = vdwg.mxu0
  %v115 = vmax.f32 %v107, 0.0
  %v116 = vmax.f32 %v112, 0.0
  %v117 = vld [vmem:[%s3] sm:$0xff]
  %v118 = vld [vmem:[%s3 + $0x8] sm:$0xff]
  %v119 = vld [vmem:[%s3 + $0x10] sm:$0xff]
  %v120 = vld [vmem:[%s3 + $0x18] sm:$0xff]
  %v121 = vld [vmem:[%s3 + $0x20] sm:$0xff]
  %v122 = vld [vmem:[%s3 + $0x28] sm:$0xff]
  %v123 = vld [vmem:[%s3 + $0x30] sm:$0xff]
  %v124 = vld [vmem:[%s3 + $0x38] sm:$0xff]
  %v125 = vld [vmem:[%s4] sm:$0x1]
  %v127 = vlaneseq
  %v128 = vshrl.u32 %v127, 7
  %v129 = vsub.s32 0, %v128
  %v130 = vrot.slane %v125, %v129
  %vm132 = vcmask 523264
  %v134 = vsel %vm132, %v115, 0
  %v137 = vsel %vm132, %v116, 0
  %139 = vmatprep.subr.mxu0 0.0
  %140 = vmatpush1.msra.mxu0 %v117
  %141 = vmatprep.subr.mxu0 0.0
  %142 = vmatpush1.msra.mxu0 %v118
  %143 = vmatprep.subr.mxu0 0.0
  %144 = vmatpush1.msra.mxu0 %v119
  %145 = vmatprep.subr.mxu0 0.0
  %146 = vmatpush1.msra.mxu0 %v120
  %147 = vmatprep.subr.mxu0 0.0
  %148 = vmatpush1.msra.mxu0 %v121
  %149 = vmatprep.subr.mxu0 0.0
  %150 = vmatpush1.msra.mxu0 %v122
  %151 = vmatprep.subr.mxu0 0.0
  %152 = vmatpush1.msra.mxu0 %v123
  %153 = vmatprep.subr.mxu0 0.0
  %154 = vmatpush1.msra.mxu0 %v124
  %155 = vmatprep.subr.mxu0 0.0
  %156 = vmatpush1.msra.mxu0 0.0
  %157 = vmatprep.subr.mxu0 0.0
  %158 = vmatpush1.msra.mxu0 0.0
  %159 = vmatprep.subr.mxu0 0.0
  %160 = vmatpush1.msra.mxu0 0.0
  %161 = vmatprep.subr.mxu0 0.0
  %162 = vmatpush1.msra.mxu0 0.0
  %163 = vmatprep.subr.mxu0 0.0
  %164 = vmatpush1.msra.mxu0 0.0
  %165 = vmatprep.subr.mxu0 0.0
  %166 = vmatpush1.msra.mxu0 0.0
  %167 = vmatprep.subr.mxu0 0.0
  %168 = vmatpush1.msra.mxu0 0.0
  %169 = vmatprep.subr.mxu0 0.0
  %170 = vmatpush1.msra.mxu0 0.0
  %171 = vmatprep.subr.mxu0 0.0
  %172 = vmatpush1.msra.mxu0 0.0
  %173 = vmatprep.subr.mxu0 0.0
  %174 = vmatpush1.msra.mxu0 0.0
  %175 = vmatprep.subr.mxu0 0.0
  %176 = vmatpush1.msra.mxu0 0.0
  %177 = vmatprep.subr.mxu0 0.0
  %178 = vmatpush1.msra.mxu0 0.0
  %179 = vmatprep.subr.mxu0 0.0
  %180 = vmatpush1.msra.mxu0 0.0
  %181 = vmatprep.subr.mxu0 0.0
  %182 = vmatpush1.msra.mxu0 0.0
  %183 = vmatprep.subr.mxu0 0.0
  %184 = vmatpush1.msra.mxu0 0.0
  %185 = vmatprep.subr.mxu0 0.0
  %186 = vmatpush1.msra.mxu0 0.0
  %187 = vmatprep.subr.mxu0 0.0
  %188 = vmatpush1.msra.mxu0 0.0
  %189 = vmatprep.subr.mxu0 0.0
  %190 = vmatpush1.msra.mxu0 0.0
  %191 = vmatprep.subr.mxu0 0.0
  %192 = vmatpush1.msra.mxu0 0.0
  %193 = vmatprep.subr.mxu0 0.0
  %194 = vmatpush1.msra.mxu0 0.0
  %195 = vmatprep.subr.mxu0 0.0
  %196 = vmatpush1.msra.mxu0 0.0
  %197 = vmatprep.subr.mxu0 0.0
  %198 = vmatpush1.msra.mxu0 0.0
  %199 = vmatprep.subr.mxu0 0.0
  %200 = vmatpush1.msra.mxu0 0.0
  %201 = vmatprep.subr.mxu0 0.0
  %202 = vmatpush1.msra.mxu0 0.0
  %203 = vmatprep.mubr.f32.mxu0 0.0
  %204 = vmatmul.mubr.f32.gmra.mrb[0].mxu0 %v134
  %v205 = vpop.f32.mrb[0].mxu0
  %v206 = vadd.f32 %v130, %v205
  %v207 = vpop.f32.mrb[0].mxu0
  %208 = vmatprep.mubr.f32.mxu0 0.0
  %209 = vmatmul.mubr.f32.gmra.mrb[0].mxu0 %v137
  %v210 = vpop.f32.mrb[0].mxu0
  %v211 = vadd.f32 %v130, %v210
  %v212 = vpop.f32.mrb[0].mxu0
  %213 = vdwg.mxu0
  %214 = vst.msk [vmem:[%s5] sm:$0xff] %vm33, %v206
  %215 = vst.msk [vmem:[%s5 + $0x8] sm:$0xff] %vm33, %v211
  // Predicated region
  $region22: #{_lambda_.20} parent=0 // pred_check
    _
  $region23: #{_lambda_.20} parent=0 // pred_check_branch
    %217 = sbr.rel (0) target = $region25
  $region24: #{_lambda_.20} parent=0 // pred_region
    _
  $region25: #{_lambda_.20} parent=0 // pred_fallthru
    _
  // Predicated region
  $region26: #{_lambda_.20} parent=0 // pred_check
    _
  $region27: #{_lambda_.20} parent=0 // pred_check_branch
    %219 = sbr.rel (0) target = $region29
  $region28: #{_lambda_.20} parent=0 // pred_region
    _
  $region29: #{_lambda_.20} parent=0 // pred_fallthru
    _

// kernel: _lambda_.19
$region0: #{_lambda_.19}
  #allocation0 [shape = 'u32[]', space=smem, size = 0x4, offset = 0x4, fixed_abs, tag = 'smem constant byte address 0x4 - core index']
  #allocation1 [shape = 'u32[144,128]{1,0:T(1,128)}', space=vmem, size = 0x12000, scoped, tag = 'internal scratch']
  %s0 = inlined_call_operand.vmem [shape: f32[16,32], index: 0, kind: input, shape index: {}]
  %s1 = inlined_call_operand.vmem [shape: f32[32,32], index: 1, kind: input, shape index: {}]
  %s2 = inlined_call_operand.vmem [shape: f32[1,32], index: 2, kind: input, shape index: {}]
  %s3 = inlined_call_operand.vmem [shape: f32[16,32], index: 3, kind: output, shape index: {}]
  %s4 = sld [smem:[#allocation0]]
  $region22: #{_lambda_.19} parent=0
    _
  %s6 = ssub.s32 1, %s4
  %s7 = scalar_select 0, %s6, %s4
  // Predicated region
  $region2: #{_lambda_.19} parent=0 // pred_check
    _
  $region3: #{_lambda_.19} parent=0 // pred_check_branch
    %9 = sbr.rel (0) target = $region5
  $region4: #{_lambda_.19} parent=0 // pred_region
    _
  $region5: #{_lambda_.19} parent=0 // pred_fallthru
    _
  // Predicated region
  $region6: #{_lambda_.19} parent=0 // pred_check
    _
  $region7: #{_lambda_.19} parent=0 // pred_check_branch
    %11 = sbr.rel (0) target = $region9
  $region8: #{_lambda_.19} parent=0 // pred_region
    _
  $region9: #{_lambda_.19} parent=0 // pred_fallthru
    _
  // Predicated region
  $region10: #{_lambda_.19} parent=0 // pred_check
    _
  $region11: #{_lambda_.19} parent=0 // pred_check_branch
    %13 = sbr.rel (0) target = $region13
  $region12: #{_lambda_.19} parent=0 // pred_region
    _
  $region13: #{_lambda_.19} parent=0 // pred_fallthru
    _
  %v14 = vld [vmem:[%s0] sm:$0xff]
  %v15 = vld [vmem:[%s0 + $0x8] sm:$0xff]
  %v16 = vld [vmem:[%s1] sm:$0xff]
  %v17 = vld [vmem:[%s1 + $0x8] sm:$0xff]
  %v18 = vld [vmem:[%s1 + $0x10] sm:$0xff]
  %v19 = vld [vmem:[%s1 + $0x18] sm:$0xff]
  %v20 = vld [vmem:[%s2] sm:$0x1]
  %v22 = vlaneseq
  %v23 = vshrl.u32 %v22, 7
  %v24 = vsub.s32 0, %v23
  %v25 = vrot.slane %v20, %v24
  %vm27 = vcmask 261120
  %v29 = vsel %vm27, %v14, 0
  %v32 = vsel %vm27, %v15, 0
  %34 = vmatprep.subr.mxu0 0.0
  %35 = vmatpush1.msra.mxu0 %v16
  %36 = vmatprep.subr.mxu0 0.0
  %37 = vmatpush1.msra.mxu0 %v17
  %38 = vmatprep.subr.mxu0 0.0
  %39 = vmatpush1.msra.mxu0 %v18
  %40 = vmatprep.subr.mxu0 0.0
  %41 = vmatpush1.msra.mxu0 %v19
  %42 = vmatprep.subr.mxu0 0.0
  %43 = vmatpush1.msra.mxu0 0.0
  %44 = vmatprep.subr.mxu0 0.0
  %45 = vmatpush1.msra.mxu0 0.0
  %46 = vmatprep.subr.mxu0 0.0
  %47 = vmatpush1.msra.mxu0 0.0
  %48 = vmatprep.subr.mxu0 0.0
  %49 = vmatpush1.msra.mxu0 0.0
  %50 = vmatprep.subr.mxu0 0.0
  %51 = vmatpush1.msra.mxu0 0.0
  %52 = vmatprep.subr.mxu0 0.0
  %53 = vmatpush1.msra.mxu0 0.0
  %54 = vmatprep.subr.mxu0 0.0
  %55 = vmatpush1.msra.mxu0 0.0
  %56 = vmatprep.subr.mxu0 0.0
  %57 = vmatpush1.msra.mxu0 0.0
  %58 = vmatprep.subr.mxu0 0.0
  %59 = vmatpush1.msra.mxu0 0.0
  %60 = vmatprep.subr.mxu0 0.0
  %61 = vmatpush1.msra.mxu0 0.0
  %62 = vmatprep.subr.mxu0 0.0
  %63 = vmatpush1.msra.mxu0 0.0
  %64 = vmatprep.subr.mxu0 0.0
  %65 = vmatpush1.msra.mxu0 0.0
  %66 = vmatprep.subr.mxu0 0.0
  %67 = vmatpush1.msra.mxu0 0.0
  %68 = vmatprep.subr.mxu0 0.0
  %69 = vmatpush1.msra.mxu0 0.0
  %70 = vmatprep.subr.mxu0 0.0
  %71 = vmatpush1.msra.mxu0 0.0
  %72 = vmatprep.subr.mxu0 0.0
  %73 = vmatpush1.msra.mxu0 0.0
  %74 = vmatprep.subr.mxu0 0.0
  %75 = vmatpush1.msra.mxu0 0.0
  %76 = vmatprep.subr.mxu0 0.0
  %77 = vmatpush1.msra.mxu0 0.0
  %78 = vmatprep.subr.mxu0 0.0
  %79 = vmatpush1.msra.mxu0 0.0
  %80 = vmatprep.subr.mxu0 0.0
  %81 = vmatpush1.msra.mxu0 0.0
  %82 = vmatprep.subr.mxu0 0.0
  %83 = vmatpush1.msra.mxu0 0.0
  %84 = vmatprep.subr.mxu0 0.0
  %85 = vmatpush1.msra.mxu0 0.0
  %86 = vmatprep.subr.mxu0 0.0
  %87 = vmatpush1.msra.mxu0 0.0
  %88 = vmatprep.subr.mxu0 0.0
  %89 = vmatpush1.msra.mxu0 0.0
  %90 = vmatprep.subr.mxu0 0.0
  %91 = vmatpush1.msra.mxu0 0.0
  %92 = vmatprep.subr.mxu0 0.0
  %93 = vmatpush1.msra.mxu0 0.0
  %94 = vmatprep.subr.mxu0 0.0
  %95 = vmatpush1.msra.mxu0 0.0
  %96 = vmatprep.subr.mxu0 0.0
  %97 = vmatpush1.msra.mxu0 0.0
  %98 = vmatprep.mubr.f32.mxu0 0.0
  %99 = vmatmul.mubr.f32.gmra.mrb[0].mxu0 %v29
  %v100 = vpop.f32.mrb[0].mxu0
  %v101 = vadd.f32 %v25, %v100
  %v102 = vpop.f32.mrb[0].mxu0
  %103 = vmatprep.mubr.f32.mxu0 0.0
  %104 = vmatmul.mubr.f32.gmra.mrb[0].mxu0 %v32
  %v105 = vpop.f32.mrb[0].mxu0
  %v106 = vadd.f32 %v25, %v105
  %v107 = vpop.f32.mrb[0].mxu0
  %108 = vdwg.mxu0
  %109 = vst.msk [vmem:[%s3] sm:$0xff] %vm27, %v101
  %110 = vst.msk [vmem:[%s3 + $0x8] sm:$0xff] %vm27, %v106
  // Predicated region
  $region14: #{_lambda_.19} parent=0 // pred_check
    _
  $region15: #{_lambda_.19} parent=0 // pred_check_branch
    %112 = sbr.rel (0) target = $region17
  $region16: #{_lambda_.19} parent=0 // pred_region
    _
  $region17: #{_lambda_.19} parent=0 // pred_fallthru
    _
  // Predicated region
  $region18: #{_lambda_.19} parent=0 // pred_check
    _
  $region19: #{_lambda_.19} parent=0 // pred_check_branch
    %114 = sbr.rel (0) target = $region21
  $region20: #{_lambda_.19} parent=0 // pred_region
    _
  $region21: #{_lambda_.19} parent=0 // pred_fallthru
    _

// kernel: _lambda_.21
$region0: #{_lambda_.21}
  #allocation0 [shape = 'u32[]', space=smem, size = 0x4, offset = 0x4, fixed_abs, tag = 'smem constant byte address 0x4 - core index']
  #allocation1 [shape = 'u32[144,128]{1,0:T(1,128)}', space=vmem, size = 0x12000, scoped, tag = 'internal scratch']
  %s0 = inlined_call_operand.vmem [shape: f32[16,32], index: 0, kind: input, shape index: {}]
  %s1 = inlined_call_operand.vmem [shape: f32[32,96], index: 1, kind: input, shape index: {}]
  %s2 = inlined_call_operand.vmem [shape: f32[1,96], index: 2, kind: input, shape index: {}]
  %s3 = inlined_call_operand.vmem [shape: f32[16,96], index: 3, kind: output, shape index: {}]
  %s4 = sld [smem:[#allocation0]]
  $region22: #{_lambda_.21} parent=0
    _
  %s6 = ssub.s32 1, %s4
  %s7 = scalar_select 0, %s6, %s4
  // Predicated region
  $region2: #{_lambda_.21} parent=0 // pred_check
    _
  $region3: #{_lambda_.21} parent=0 // pred_check_branch
    %9 = sbr.rel (0) target = $region5
  $region4: #{_lambda_.21} parent=0 // pred_region
    _
  $region5: #{_lambda_.21} parent=0 // pred_fallthru
    _
  // Predicated region
  $region6: #{_lambda_.21} parent=0 // pred_check
    _
  $region7: #{_lambda_.21} parent=0 // pred_check_branch
    %11 = sbr.rel (0) target = $region9
  $region8: #{_lambda_.21} parent=0 // pred_region
    _
  $region9: #{_lambda_.21} parent=0 // pred_fallthru
    _
  // Predicated region
  $region10: #{_lambda_.21} parent=0 // pred_check
    _
  $region11: #{_lambda_.21} parent=0 // pred_check_branch
    %13 = sbr.rel (0) target = $region13
  $region12: #{_lambda_.21} parent=0 // pred_region
    _
  $region13: #{_lambda_.21} parent=0 // pred_fallthru
    _
  %v14 = vld [vmem:[%s0] sm:$0xff]
  %v15 = vld [vmem:[%s0 + $0x8] sm:$0xff]
  %v16 = vld [vmem:[%s1] sm:$0xff]
  %v17 = vld [vmem:[%s1 + $0x8] sm:$0xff]
  %v18 = vld [vmem:[%s1 + $0x10] sm:$0xff]
  %v19 = vld [vmem:[%s1 + $0x18] sm:$0xff]
  %v20 = vld [vmem:[%s2] sm:$0x1]
  %v22 = vlaneseq
  %v23 = vshrl.u32 %v22, 7
  %v24 = vsub.s32 0, %v23
  %v25 = vrot.slane %v20, %v24
  %vm27 = vcmask 261120
  %v29 = vsel %vm27, %v14, 0
  %v32 = vsel %vm27, %v15, 0
  %34 = vmatprep.subr.mxu0 0.0
  %35 = vmatpush1.msra.mxu0 %v16
  %36 = vmatprep.subr.mxu0 0.0
  %37 = vmatpush1.msra.mxu0 %v17
  %38 = vmatprep.subr.mxu0 0.0
  %39 = vmatpush1.msra.mxu0 %v18
  %40 = vmatprep.subr.mxu0 0.0
  %41 = vmatpush1.msra.mxu0 %v19
  %42 = vmatprep.subr.mxu0 0.0
  %43 = vmatpush1.msra.mxu0 0.0
  %44 = vmatprep.subr.mxu0 0.0
  %45 = vmatpush1.msra.mxu0 0.0
  %46 = vmatprep.subr.mxu0 0.0
  %47 = vmatpush1.msra.mxu0 0.0
  %48 = vmatprep.subr.mxu0 0.0
  %49 = vmatpush1.msra.mxu0 0.0
  %50 = vmatprep.subr.mxu0 0.0
  %51 = vmatpush1.msra.mxu0 0.0
  %52 = vmatprep.subr.mxu0 0.0
  %53 = vmatpush1.msra.mxu0 0.0
  %54 = vmatprep.subr.mxu0 0.0
  %55 = vmatpush1.msra.mxu0 0.0
  %56 = vmatprep.subr.mxu0 0.0
  %57 = vmatpush1.msra.mxu0 0.0
  %58 = vmatprep.subr.mxu0 0.0
  %59 = vmatpush1.msra.mxu0 0.0
  %60 = vmatprep.subr.mxu0 0.0
  %61 = vmatpush1.msra.mxu0 0.0
  %62 = vmatprep.subr.mxu0 0.0
  %63 = vmatpush1.msra.mxu0 0.0
  %64 = vmatprep.subr.mxu0 0.0
  %65 = vmatpush1.msra.mxu0 0.0
  %66 = vmatprep.subr.mxu0 0.0
  %67 = vmatpush1.msra.mxu0 0.0
  %68 = vmatprep.subr.mxu0 0.0
  %69 = vmatpush1.msra.mxu0 0.0
  %70 = vmatprep.subr.mxu0 0.0
  %71 = vmatpush1.msra.mxu0 0.0
  %72 = vmatprep.subr.mxu0 0.0
  %73 = vmatpush1.msra.mxu0 0.0
  %74 = vmatprep.subr.mxu0 0.0
  %75 = vmatpush1.msra.mxu0 0.0
  %76 = vmatprep.subr.mxu0 0.0
  %77 = vmatpush1.msra.mxu0 0.0
  %78 = vmatprep.subr.mxu0 0.0
  %79 = vmatpush1.msra.mxu0 0.0
  %80 = vmatprep.subr.mxu0 0.0
  %81 = vmatpush1.msra.mxu0 0.0
  %82 = vmatprep.subr.mxu0 0.0
  %83 = vmatpush1.msra.mxu0 0.0
  %84 = vmatprep.subr.mxu0 0.0
  %85 = vmatpush1.msra.mxu0 0.0
  %86 = vmatprep.subr.mxu0 0.0
  %87 = vmatpush1.msra.mxu0 0.0
  %88 = vmatprep.subr.mxu0 0.0
  %89 = vmatpush1.msra.mxu0 0.0
  %90 = vmatprep.subr.mxu0 0.0
  %91 = vmatpush1.msra.mxu0 0.0
  %92 = vmatprep.subr.mxu0 0.0
  %93 = vmatpush1.msra.mxu0 0.0
  %94 = vmatprep.subr.mxu0 0.0
  %95 = vmatpush1.msra.mxu0 0.0
  %96 = vmatprep.subr.mxu0 0.0
  %97 = vmatpush1.msra.mxu0 0.0
  %98 = vmatprep.mubr.f32.mxu0 0.0
  %99 = vmatmul.mubr.f32.gmra.mrb[0].mxu0 %v29
  %v100 = vpop.f32.mrb[0].mxu0
  %v101 = vadd.f32 %v25, %v100
  %v102 = vpop.f32.mrb[0].mxu0
  %103 = vmatprep.mubr.f32.mxu0 0.0
  %104 = vmatmul.mubr.f32.gmra.mrb[0].mxu0 %v32
  %v105 = vpop.f32.mrb[0].mxu0
  %v106 = vadd.f32 %v25, %v105
  %v107 = vpop.f32.mrb[0].mxu0
  %108 = vdwg.mxu0
  %vm109 = vcmask 785408
  %110 = vst.msk [vmem:[%s3] sm:$0xff] %vm109, %v101
  %111 = vst.msk [vmem:[%s3 + $0x8] sm:$0xff] %vm109, %v106
  // Predicated region
  $region14: #{_lambda_.21} parent=0 // pred_check
    _
  $region15: #{_lambda_.21} parent=0 // pred_check_branch
    %113 = sbr.rel (0) target = $region17
  $region16: #{_lambda_.21} parent=0 // pred_region
    _
  $region17: #{_lambda_.21} parent=0 // pred_fallthru
    _
  // Predicated region
  $region18: #{_lambda_.21} parent=0 // pred_check
    _
  $region19: #{_lambda_.21} parent=0 // pred_check_branch
    %115 = sbr.rel (0) target = $region21
  $region20: #{_lambda_.21} parent=0 // pred_region
    _
  $region21: #{_lambda_.21} parent=0 // pred_fallthru
    _

// kernel: _lambda_.24
$region0: #{_lambda_.24}
  #allocation0 [shape = 'u32[]', space=smem, size = 0x4, offset = 0x4, fixed_abs, tag = 'smem constant byte address 0x4 - core index']
  #allocation1 [shape = 'u32[144,128]{1,0:T(1,128)}', space=vmem, size = 0x12000, scoped, tag = 'internal scratch']
  %s0 = inlined_call_operand.vmem [shape: f32[16,32], index: 0, kind: input, shape index: {}]
  %s1 = inlined_call_operand.vmem [shape: f32[32,32], index: 1, kind: input, shape index: {}]
  %s2 = inlined_call_operand.vmem [shape: f32[1,32], index: 2, kind: input, shape index: {}]
  %s3 = inlined_call_operand.vmem [shape: f32[16,32], index: 3, kind: input, shape index: {}]
  %s4 = inlined_call_operand.vmem [shape: f32[1,32], index: 4, kind: input, shape index: {}]
  %s5 = inlined_call_operand.vmem [shape: f32[1,32], index: 5, kind: input, shape index: {}]
  %s6 = inlined_call_operand.vmem [shape: f32[16,32], index: 6, kind: output, shape index: {}]
  %s7 = sld [smem:[#allocation0]]
  $region34: #{_lambda_.24} parent=0
    _
  %s9 = ssub.s32 1, %s7
  %s10 = scalar_select 0, %s9, %s7
  // Predicated region
  $region2: #{_lambda_.24} parent=0 // pred_check
    _
  $region3: #{_lambda_.24} parent=0 // pred_check_branch
    %12 = sbr.rel (0) target = $region5
  $region4: #{_lambda_.24} parent=0 // pred_region
    _
  $region5: #{_lambda_.24} parent=0 // pred_fallthru
    _
  // Predicated region
  $region6: #{_lambda_.24} parent=0 // pred_check
    _
  $region7: #{_lambda_.24} parent=0 // pred_check_branch
    %14 = sbr.rel (0) target = $region9
  $region8: #{_lambda_.24} parent=0 // pred_region
    _
  $region9: #{_lambda_.24} parent=0 // pred_fallthru
    _
  // Predicated region
  $region10: #{_lambda_.24} parent=0 // pred_check
    _
  $region11: #{_lambda_.24} parent=0 // pred_check_branch
    %16 = sbr.rel (0) target = $region13
  $region12: #{_lambda_.24} parent=0 // pred_region
    _
  $region13: #{_lambda_.24} parent=0 // pred_fallthru
    _
  // Predicated region
  $region14: #{_lambda_.24} parent=0 // pred_check
    _
  $region15: #{_lambda_.24} parent=0 // pred_check_branch
    %18 = sbr.rel (0) target = $region17
  $region16: #{_lambda_.24} parent=0 // pred_region
    _
  $region17: #{_lambda_.24} parent=0 // pred_fallthru
    _
  // Predicated region
  $region18: #{_lambda_.24} parent=0 // pred_check
    _
  $region19: #{_lambda_.24} parent=0 // pred_check_branch
    %20 = sbr.rel (0) target = $region21
  $region20: #{_lambda_.24} parent=0 // pred_region
    _
  $region21: #{_lambda_.24} parent=0 // pred_fallthru
    _
  // Predicated region
  $region22: #{_lambda_.24} parent=0 // pred_check
    _
  $region23: #{_lambda_.24} parent=0 // pred_check_branch
    %22 = sbr.rel (0) target = $region25
  $region24: #{_lambda_.24} parent=0 // pred_region
    _
  $region25: #{_lambda_.24} parent=0 // pred_fallthru
    _
  %v23 = vld [vmem:[%s0] sm:$0xff]
  %v24 = vld [vmem:[%s0 + $0x8] sm:$0xff]
  %v25 = vld [vmem:[%s1] sm:$0xff]
  %v26 = vld [vmem:[%s1 + $0x8] sm:$0xff]
  %v27 = vld [vmem:[%s1 + $0x10] sm:$0xff]
  %v28 = vld [vmem:[%s1 + $0x18] sm:$0xff]
  %v29 = vld [vmem:[%s2] sm:$0x1]
  %v31 = vlaneseq
  %v32 = vshrl.u32 %v31, 7
  %v33 = vsub.s32 0, %v32
  %v34 = vrot.slane %v29, %v33
  %vm36 = vcmask 261120
  %v38 = vsel %vm36, %v23, 0
  %v41 = vsel %vm36, %v24, 0
  %43 = vmatprep.subr.mxu0 0.0
  %44 = vmatpush1.msra.mxu0 %v25
  %45 = vmatprep.subr.mxu0 0.0
  %46 = vmatpush1.msra.mxu0 %v26
  %47 = vmatprep.subr.mxu0 0.0
  %48 = vmatpush1.msra.mxu0 %v27
  %49 = vmatprep.subr.mxu0 0.0
  %50 = vmatpush1.msra.mxu0 %v28
  %51 = vmatprep.subr.mxu0 0.0
  %52 = vmatpush1.msra.mxu0 0.0
  %53 = vmatprep.subr.mxu0 0.0
  %54 = vmatpush1.msra.mxu0 0.0
  %55 = vmatprep.subr.mxu0 0.0
  %56 = vmatpush1.msra.mxu0 0.0
  %57 = vmatprep.subr.mxu0 0.0
  %58 = vmatpush1.msra.mxu0 0.0
  %59 = vmatprep.subr.mxu0 0.0
  %60 = vmatpush1.msra.mxu0 0.0
  %61 = vmatprep.subr.mxu0 0.0
  %62 = vmatpush1.msra.mxu0 0.0
  %63 = vmatprep.subr.mxu0 0.0
  %64 = vmatpush1.msra.mxu0 0.0
  %65 = vmatprep.subr.mxu0 0.0
  %66 = vmatpush1.msra.mxu0 0.0
  %67 = vmatprep.subr.mxu0 0.0
  %68 = vmatpush1.msra.mxu0 0.0
  %69 = vmatprep.subr.mxu0 0.0
  %70 = vmatpush1.msra.mxu0 0.0
  %71 = vmatprep.subr.mxu0 0.0
  %72 = vmatpush1.msra.mxu0 0.0
  %73 = vmatprep.subr.mxu0 0.0
  %74 = vmatpush1.msra.mxu0 0.0
  %75 = vmatprep.subr.mxu0 0.0
  %76 = vmatpush1.msra.mxu0 0.0
  %77 = vmatprep.subr.mxu0 0.0
  %78 = vmatpush1.msra.mxu0 0.0
  %79 = vmatprep.subr.mxu0 0.0
  %80 = vmatpush1.msra.mxu0 0.0
  %81 = vmatprep.subr.mxu0 0.0
  %82 = vmatpush1.msra.mxu0 0.0
  %83 = vmatprep.subr.mxu0 0.0
  %84 = vmatpush1.msra.mxu0 0.0
  %85 = vmatprep.subr.mxu0 0.0
  %86 = vmatpush1.msra.mxu0 0.0
  %87 = vmatprep.subr.mxu0 0.0
  %88 = vmatpush1.msra.mxu0 0.0
  %89 = vmatprep.subr.mxu0 0.0
  %90 = vmatpush1.msra.mxu0 0.0
  %91 = vmatprep.subr.mxu0 0.0
  %92 = vmatpush1.msra.mxu0 0.0
  %93 = vmatprep.subr.mxu0 0.0
  %94 = vmatpush1.msra.mxu0 0.0
  %95 = vmatprep.subr.mxu0 0.0
  %96 = vmatpush1.msra.mxu0 0.0
  %97 = vmatprep.subr.mxu0 0.0
  %98 = vmatpush1.msra.mxu0 0.0
  %99 = vmatprep.subr.mxu0 0.0
  %100 = vmatpush1.msra.mxu0 0.0
  %101 = vmatprep.subr.mxu0 0.0
  %102 = vmatpush1.msra.mxu0 0.0
  %103 = vmatprep.subr.mxu0 0.0
  %104 = vmatpush1.msra.mxu0 0.0
  %105 = vmatprep.subr.mxu0 0.0
  %106 = vmatpush1.msra.mxu0 0.0
  %107 = vmatprep.mubr.f32.mxu0 0.0
  %108 = vmatmul.mubr.f32.gmra.mrb[0].mxu0 %v38
  %v109 = vpop.f32.mrb[0].mxu0
  %v110 = vadd.f32 %v34, %v109
  %v111 = vpop.f32.mrb[0].mxu0
  %112 = vmatprep.mubr.f32.mxu0 0.0
  %113 = vmatmul.mubr.f32.gmra.mrb[0].mxu0 %v41
  %v114 = vpop.f32.mrb[0].mxu0
  %v115 = vadd.f32 %v34, %v114
  %v116 = vpop.f32.mrb[0].mxu0
  %117 = vdwg.mxu0
  %v118 = vld [vmem:[%s3] sm:$0xff]
  %v119 = vld [vmem:[%s3 + $0x8] sm:$0xff]
  %v120 = vadd.f32 %v118, %v110
  %v121 = vadd.f32 %v119, %v115
  %v122 = vld [vmem:[%s4] sm:$0x1]
  %v123 = vld [vmem:[%s5] sm:$0x1]
  %v124 = vsel %vm36, %v120, 0.0
  %125 = vadd.xlane.f32.xlu0 %v124
  %v126 = vpop.xlane.xlu0 %125
  %v127 = vsel %vm36, %v121, 0.0
  %128 = vadd.xlane.f32.xlu0 %v127
  %v129 = vpop.xlane.xlu0 %128
  %v130 = vrcp.pop 32.0
  %v131 = vmul.f32 %v126, %v130
  %v132 = vmul.f32 %v129, %v130
  %v133 = vsub.f32 %v120, %v131
  %v134 = vsub.f32 %v121, %v132
  %v135 = vmul.f32 %v133, %v133
  %v136 = vmul.f32 %v134, %v134
  %v137 = vsel %vm36, %v135, 0.0
  %138 = vadd.xlane.f32.xlu0 %v137
  %v139 = vpop.xlane.xlu0 %138
  %v140 = vsel %vm36, %v136, 0.0
  %141 = vadd.xlane.f32.xlu0 %v140
  %v142 = vpop.xlane.xlu0 %141
  %v143 = vmul.f32 %v139, %v130
  %v144 = vmul.f32 %v142, %v130
  %v145 = vadd.f32 %v143, 1e-05
  %v146 = vadd.f32 %v144, 1e-05
  %v147 = vrsqrt.pop %v145
  %v148 = vrsqrt.pop %v146
  %v149 = vmul.f32 %v133, %v147
  %v150 = vmul.f32 %v134, %v148
  %v152 = vlaneseq
  %v153 = vshrl.u32 %v152, 7
  %v154 = vsub.s32 0, %v153
  %v155 = vrot.slane %v122, %v154
  %v157 = vmul.f32 %v149, %v155
  %v158 = vmul.f32 %v150, %v155
  %v160 = vlaneseq
  %v161 = vshrl.u32 %v160, 7
  %v162 = vsub.s32 0, %v161
  %v163 = vrot.slane %v123, %v162
  %v165 = vadd.f32 %v157, %v163
  %v166 = vadd.f32 %v158, %v163
  %167 = vst.msk [vmem:[%s6] sm:$0xff] %vm36, %v165
  %168 = vst.msk [vmem:[%s6 + $0x8] sm:$0xff] %vm36, %v166
  // Predicated region
  $region26: #{_lambda_.24} parent=0 // pred_check
    _
  $region27: #{_lambda_.24} parent=0 // pred_check_branch
    %170 = sbr.rel (0) target = $region29
  $region28: #{_lambda_.24} parent=0 // pred_region
    _
  $region29: #{_lambda_.24} parent=0 // pred_fallthru
    _
  // Predicated region
  $region30: #{_lambda_.24} parent=0 // pred_check
    _
  $region31: #{_lambda_.24} parent=0 // pred_check_branch
    %172 = sbr.rel (0) target = $region33
  $region32: #{_lambda_.24} parent=0 // pred_region
    _
  $region33: #{_lambda_.24} parent=0 // pred_fallthru
    _

// kernel: _lambda_.25
$region0: #{_lambda_.25}
  #allocation0 [shape = 'u32[]', space=smem, size = 0x4, offset = 0x4, fixed_abs, tag = 'smem constant byte address 0x4 - core index']
  #allocation1 [shape = 'u32[144,128]{1,0:T(1,128)}', space=vmem, size = 0x12000, scoped, tag = 'internal scratch']
  %s0 = inlined_call_operand.vmem [shape: f32[16,32], index: 0, kind: input, shape index: {}]
  %s1 = inlined_call_operand.vmem [shape: f32[32,64], index: 1, kind: input, shape index: {}]
  %s2 = inlined_call_operand.vmem [shape: f32[1,64], index: 2, kind: input, shape index: {}]
  %s3 = inlined_call_operand.vmem [shape: f32[64,32], index: 3, kind: input, shape index: {}]
  %s4 = inlined_call_operand.vmem [shape: f32[1,32], index: 4, kind: input, shape index: {}]
  %s5 = inlined_call_operand.vmem [shape: f32[1,32], index: 5, kind: input, shape index: {}]
  %s6 = inlined_call_operand.vmem [shape: f32[1,32], index: 6, kind: input, shape index: {}]
  %s7 = inlined_call_operand.vmem [shape: f32[16,32], index: 7, kind: output, shape index: {}]
  %s8 = sld [smem:[#allocation0]]
  $region38: #{_lambda_.25} parent=0
    _
  %s10 = ssub.s32 1, %s8
  %s11 = scalar_select 0, %s10, %s8
  // Predicated region
  $region2: #{_lambda_.25} parent=0 // pred_check
    _
  $region3: #{_lambda_.25} parent=0 // pred_check_branch
    %13 = sbr.rel (0) target = $region5
  $region4: #{_lambda_.25} parent=0 // pred_region
    _
  $region5: #{_lambda_.25} parent=0 // pred_fallthru
    _
  // Predicated region
  $region6: #{_lambda_.25} parent=0 // pred_check
    _
  $region7: #{_lambda_.25} parent=0 // pred_check_branch
    %15 = sbr.rel (0) target = $region9
  $region8: #{_lambda_.25} parent=0 // pred_region
    _
  $region9: #{_lambda_.25} parent=0 // pred_fallthru
    _
  // Predicated region
  $region10: #{_lambda_.25} parent=0 // pred_check
    _
  $region11: #{_lambda_.25} parent=0 // pred_check_branch
    %17 = sbr.rel (0) target = $region13
  $region12: #{_lambda_.25} parent=0 // pred_region
    _
  $region13: #{_lambda_.25} parent=0 // pred_fallthru
    _
  // Predicated region
  $region14: #{_lambda_.25} parent=0 // pred_check
    _
  $region15: #{_lambda_.25} parent=0 // pred_check_branch
    %19 = sbr.rel (0) target = $region17
  $region16: #{_lambda_.25} parent=0 // pred_region
    _
  $region17: #{_lambda_.25} parent=0 // pred_fallthru
    _
  // Predicated region
  $region18: #{_lambda_.25} parent=0 // pred_check
    _
  $region19: #{_lambda_.25} parent=0 // pred_check_branch
    %21 = sbr.rel (0) target = $region21
  $region20: #{_lambda_.25} parent=0 // pred_region
    _
  $region21: #{_lambda_.25} parent=0 // pred_fallthru
    _
  // Predicated region
  $region22: #{_lambda_.25} parent=0 // pred_check
    _
  $region23: #{_lambda_.25} parent=0 // pred_check_branch
    %23 = sbr.rel (0) target = $region25
  $region24: #{_lambda_.25} parent=0 // pred_region
    _
  $region25: #{_lambda_.25} parent=0 // pred_fallthru
    _
  // Predicated region
  $region26: #{_lambda_.25} parent=0 // pred_check
    _
  $region27: #{_lambda_.25} parent=0 // pred_check_branch
    %25 = sbr.rel (0) target = $region29
  $region28: #{_lambda_.25} parent=0 // pred_region
    _
  $region29: #{_lambda_.25} parent=0 // pred_fallthru
    _
  %v26 = vld [vmem:[%s0] sm:$0xff]
  %v27 = vld [vmem:[%s0 + $0x8] sm:$0xff]
  %v28 = vld [vmem:[%s1] sm:$0xff]
  %v29 = vld [vmem:[%s1 + $0x8] sm:$0xff]
  %v30 = vld [vmem:[%s1 + $0x10] sm:$0xff]
  %v31 = vld [vmem:[%s1 + $0x18] sm:$0xff]
  %v32 = vld [vmem:[%s2] sm:$0x1]
  %v34 = vlaneseq
  %v35 = vshrl.u32 %v34, 7
  %v36 = vsub.s32 0, %v35
  %v37 = vrot.slane %v32, %v36
  %vm39 = vcmask 261120
  %v41 = vsel %vm39, %v26, 0
  %v44 = vsel %vm39, %v27, 0
  %46 = vmatprep.subr.mxu0 0.0
  %47 = vmatpush1.msra.mxu0 %v28
  %48 = vmatprep.subr.mxu0 0.0
  %49 = vmatpush1.msra.mxu0 %v29
  %50 = vmatprep.subr.mxu0 0.0
  %51 = vmatpush1.msra.mxu0 %v30
  %52 = vmatprep.subr.mxu0 0.0
  %53 = vmatpush1.msra.mxu0 %v31
  %54 = vmatprep.subr.mxu0 0.0
  %55 = vmatpush1.msra.mxu0 0.0
  %56 = vmatprep.subr.mxu0 0.0
  %57 = vmatpush1.msra.mxu0 0.0
  %58 = vmatprep.subr.mxu0 0.0
  %59 = vmatpush1.msra.mxu0 0.0
  %60 = vmatprep.subr.mxu0 0.0
  %61 = vmatpush1.msra.mxu0 0.0
  %62 = vmatprep.subr.mxu0 0.0
  %63 = vmatpush1.msra.mxu0 0.0
  %64 = vmatprep.subr.mxu0 0.0
  %65 = vmatpush1.msra.mxu0 0.0
  %66 = vmatprep.subr.mxu0 0.0
  %67 = vmatpush1.msra.mxu0 0.0
  %68 = vmatprep.subr.mxu0 0.0
  %69 = vmatpush1.msra.mxu0 0.0
  %70 = vmatprep.subr.mxu0 0.0
  %71 = vmatpush1.msra.mxu0 0.0
  %72 = vmatprep.subr.mxu0 0.0
  %73 = vmatpush1.msra.mxu0 0.0
  %74 = vmatprep.subr.mxu0 0.0
  %75 = vmatpush1.msra.mxu0 0.0
  %76 = vmatprep.subr.mxu0 0.0
  %77 = vmatpush1.msra.mxu0 0.0
  %78 = vmatprep.subr.mxu0 0.0
  %79 = vmatpush1.msra.mxu0 0.0
  %80 = vmatprep.subr.mxu0 0.0
  %81 = vmatpush1.msra.mxu0 0.0
  %82 = vmatprep.subr.mxu0 0.0
  %83 = vmatpush1.msra.mxu0 0.0
  %84 = vmatprep.subr.mxu0 0.0
  %85 = vmatpush1.msra.mxu0 0.0
  %86 = vmatprep.subr.mxu0 0.0
  %87 = vmatpush1.msra.mxu0 0.0
  %88 = vmatprep.subr.mxu0 0.0
  %89 = vmatpush1.msra.mxu0 0.0
  %90 = vmatprep.subr.mxu0 0.0
  %91 = vmatpush1.msra.mxu0 0.0
  %92 = vmatprep.subr.mxu0 0.0
  %93 = vmatpush1.msra.mxu0 0.0
  %94 = vmatprep.subr.mxu0 0.0
  %95 = vmatpush1.msra.mxu0 0.0
  %96 = vmatprep.subr.mxu0 0.0
  %97 = vmatpush1.msra.mxu0 0.0
  %98 = vmatprep.subr.mxu0 0.0
  %99 = vmatpush1.msra.mxu0 0.0
  %100 = vmatprep.subr.mxu0 0.0
  %101 = vmatpush1.msra.mxu0 0.0
  %102 = vmatprep.subr.mxu0 0.0
  %103 = vmatpush1.msra.mxu0 0.0
  %104 = vmatprep.subr.mxu0 0.0
  %105 = vmatpush1.msra.mxu0 0.0
  %106 = vmatprep.subr.mxu0 0.0
  %107 = vmatpush1.msra.mxu0 0.0
  %108 = vmatprep.subr.mxu0 0.0
  %109 = vmatpush1.msra.mxu0 0.0
  %110 = vmatprep.mubr.f32.mxu0 0.0
  %111 = vmatmul.mubr.f32.gmra.mrb[0].mxu0 %v41
  %v112 = vpop.f32.mrb[0].mxu0
  %v113 = vadd.f32 %v37, %v112
  %v114 = vpop.f32.mrb[0].mxu0
  %115 = vmatprep.mubr.f32.mxu0 0.0
  %116 = vmatmul.mubr.f32.gmra.mrb[0].mxu0 %v44
  %v117 = vpop.f32.mrb[0].mxu0
  %v118 = vadd.f32 %v37, %v117
  %v119 = vpop.f32.mrb[0].mxu0
  %120 = vdwg.mxu0
  %v121 = vmax.f32 %v113, 0.0
  %v122 = vmax.f32 %v118, 0.0
  %v123 = vld [vmem:[%s3] sm:$0xff]
  %v124 = vld [vmem:[%s3 + $0x8] sm:$0xff]
  %v125 = vld [vmem:[%s3 + $0x10] sm:$0xff]
  %v126 = vld [vmem:[%s3 + $0x18] sm:$0xff]
  %v127 = vld [vmem:[%s3 + $0x20] sm:$0xff]
  %v128 = vld [vmem:[%s3 + $0x28] sm:$0xff]
  %v129 = vld [vmem:[%s3 + $0x30] sm:$0xff]
  %v130 = vld [vmem:[%s3 + $0x38] sm:$0xff]
  %v131 = vld [vmem:[%s4] sm:$0x1]
  %v133 = vlaneseq
  %v134 = vshrl.u32 %v133, 7
  %v135 = vsub.s32 0, %v134
  %v136 = vrot.slane %v131, %v135
  %vm138 = vcmask 523264
  %v140 = vsel %vm138, %v121, 0
  %v143 = vsel %vm138, %v122, 0
  %145 = vmatprep.subr.mxu0 0.0
  %146 = vmatpush1.msra.mxu0 %v123
  %147 = vmatprep.subr.mxu0 0.0
  %148 = vmatpush1.msra.mxu0 %v124
  %149 = vmatprep.subr.mxu0 0.0
  %150 = vmatpush1.msra.mxu0 %v125
  %151 = vmatprep.subr.mxu0 0.0
  %152 = vmatpush1.msra.mxu0 %v126
  %153 = vmatprep.subr.mxu0 0.0
  %154 = vmatpush1.msra.mxu0 %v127
  %155 = vmatprep.subr.mxu0 0.0
  %156 = vmatpush1.msra.mxu0 %v128
  %157 = vmatprep.subr.mxu0 0.0
  %158 = vmatpush1.msra.mxu0 %v129
  %159 = vmatprep.subr.mxu0 0.0
  %160 = vmatpush1.msra.mxu0 %v130
  %161 = vmatprep.subr.mxu0 0.0
  %162 = vmatpush1.msra.mxu0 0.0
  %163 = vmatprep.subr.mxu0 0.0
  %164 = vmatpush1.msra.mxu0 0.0
  %165 = vmatprep.subr.mxu0 0.0
  %166 = vmatpush1.msra.mxu0 0.0
  %167 = vmatprep.subr.mxu0 0.0
  %168 = vmatpush1.msra.mxu0 0.0
  %169 = vmatprep.subr.mxu0 0.0
  %170 = vmatpush1.msra.mxu0 0.0
  %171 = vmatprep.subr.mxu0 0.0
  %172 = vmatpush1.msra.mxu0 0.0
  %173 = vmatprep.subr.mxu0 0.0
  %174 = vmatpush1.msra.mxu0 0.0
  %175 = vmatprep.subr.mxu0 0.0
  %176 = vmatpush1.msra.mxu0 0.0
  %177 = vmatprep.subr.mxu0 0.0
  %178 = vmatpush1.msra.mxu0 0.0
  %179 = vmatprep.subr.mxu0 0.0
  %180 = vmatpush1.msra.mxu0 0.0
  %181 = vmatprep.subr.mxu0 0.0
  %182 = vmatpush1.msra.mxu0 0.0
  %183 = vmatprep.subr.mxu0 0.0
  %184 = vmatpush1.msra.mxu0 0.0
  %185 = vmatprep.subr.mxu0 0.0
  %186 = vmatpush1.msra.mxu0 0.0
  %187 = vmatprep.subr.mxu0 0.0
  %188 = vmatpush1.msra.mxu0 0.0
  %189 = vmatprep.subr.mxu0 0.0
  %190 = vmatpush1.msra.mxu0 0.0
  %191 = vmatprep.subr.mxu0 0.0
  %192 = vmatpush1.msra.mxu0 0.0
  %193 = vmatprep.subr.mxu0 0.0
  %194 = vmatpush1.msra.mxu0 0.0
  %195 = vmatprep.subr.mxu0 0.0
  %196 = vmatpush1.msra.mxu0 0.0
  %197 = vmatprep.subr.mxu0 0.0
  %198 = vmatpush1.msra.mxu0 0.0
  %199 = vmatprep.subr.mxu0 0.0
  %200 = vmatpush1.msra.mxu0 0.0
  %201 = vmatprep.subr.mxu0 0.0
  %202 = vmatpush1.msra.mxu0 0.0
  %203 = vmatprep.subr.mxu0 0.0
  %204 = vmatpush1.msra.mxu0 0.0
  %205 = vmatprep.subr.mxu0 0.0
  %206 = vmatpush1.msra.mxu0 0.0
  %207 = vmatprep.subr.mxu0 0.0
  %208 = vmatpush1.msra.mxu0 0.0
  %209 = vmatprep.mubr.f32.mxu0 0.0
  %210 = vmatmul.mubr.f32.gmra.mrb[0].mxu0 %v140
  %v211 = vpop.f32.mrb[0].mxu0
  %v212 = vadd.f32 %v136, %v211
  %v213 = vpop.f32.mrb[0].mxu0
  %214 = vmatprep.mubr.f32.mxu0 0.0
  %215 = vmatmul.mubr.f32.gmra.mrb[0].mxu0 %v143
  %v216 = vpop.f32.mrb[0].mxu0
  %v217 = vadd.f32 %v136, %v216
  %v218 = vpop.f32.mrb[0].mxu0
  %219 = vdwg.mxu0
  %v220 = vadd.f32 %v26, %v212
  %v221 = vadd.f32 %v27, %v217
  %v222 = vld [vmem:[%s5] sm:$0x1]
  %v223 = vld [vmem:[%s6] sm:$0x1]
  %v224 = vsel %vm39, %v220, 0.0
  %225 = vadd.xlane.f32.xlu0 %v224
  %v226 = vpop.xlane.xlu0 %225
  %v227 = vsel %vm39, %v221, 0.0
  %228 = vadd.xlane.f32.xlu0 %v227
  %v229 = vpop.xlane.xlu0 %228
  %v230 = vrcp.pop 32.0
  %v231 = vmul.f32 %v226, %v230
  %v232 = vmul.f32 %v229, %v230
  %v233 = vsub.f32 %v220, %v231
  %v234 = vsub.f32 %v221, %v232
  %v235 = vmul.f32 %v233, %v233
  %v236 = vmul.f32 %v234, %v234
  %v237 = vsel %vm39, %v235, 0.0
  %238 = vadd.xlane.f32.xlu0 %v237
  %v239 = vpop.xlane.xlu0 %238
  %v240 = vsel %vm39, %v236, 0.0
  %241 = vadd.xlane.f32.xlu0 %v240
  %v242 = vpop.xlane.xlu0 %241
  %v243 = vmul.f32 %v239, %v230
  %v244 = vmul.f32 %v242, %v230
  %v245 = vadd.f32 %v243, 1e-05
  %v246 = vadd.f32 %v244, 1e-05
  %v247 = vrsqrt.pop %v245
  %v248 = vrsqrt.pop %v246
  %v249 = vmul.f32 %v233, %v247
  %v250 = vmul.f32 %v234, %v248
  %v252 = vlaneseq
  %v253 = vshrl.u32 %v252, 7
  %v254 = vsub.s32 0, %v253
  %v255 = vrot.slane %v222, %v254
  %v257 = vmul.f32 %v249, %v255
  %v258 = vmul.f32 %v250, %v255
  %v260 = vlaneseq
  %v261 = vshrl.u32 %v260, 7
  %v262 = vsub.s32 0, %v261
  %v263 = vrot.slane %v223, %v262
  %v265 = vadd.f32 %v257, %v263
  %v266 = vadd.f32 %v258, %v263
  %267 = vst.msk [vmem:[%s7] sm:$0xff] %vm39, %v265
  %268 = vst.msk [vmem:[%s7 + $0x8] sm:$0xff] %vm39, %v266
  // Predicated region
  $region30: #{_lambda_.25} parent=0 // pred_check
    _
  $region31: #{_lambda_.25} parent=0 // pred_check_branch
    %270 = sbr.rel (0) target = $region33
  $region32: #{_lambda_.25} parent=0 // pred_region
    _
  $region33: #{_lambda_.25} parent=0 // pred_fallthru
    _
  // Predicated region
  $region34: #{_lambda_.25} parent=0 // pred_check
    _
  $region35: #{_lambda_.25} parent=0 // pred_check_branch
    %272 = sbr.rel (0) target = $region37
  $region36: #{_lambda_.25} parent=0 // pred_region
    _
  $region37: #{_lambda_.25} parent=0 // pred_fallthru
    _

// kernel: _lambda_.31
$region0: #{_lambda_.31}
  #allocation0 [shape = 'u32[]', space=smem, size = 0x4, offset = 0x4, fixed_abs, tag = 'smem constant byte address 0x4 - core index']
  #allocation1 [shape = 'u32[144,128]{1,0:T(1,128)}', space=vmem, size = 0x12000, scoped, tag = 'internal scratch']
  #allocation2 [shape = 'f32[1,1]{1,0:T(1,128)S(1)}', space=vmem, size = 0x200, scoped, tag = 'scoped memory for _lambda_.31']
  %s0 = inlined_call_operand.vmem [shape: f32[2,8], index: 0, kind: input, shape index: {}]
  %s1 = inlined_call_operand.vmem [shape: f32[8,32], index: 1, kind: input, shape index: {}]
  %s2 = inlined_call_operand.vmem [shape: f32[1,32], index: 2, kind: input, shape index: {}]
  %s3 = inlined_call_operand.vmem [shape: f32[32,8], index: 3, kind: input, shape index: {}]
  %s4 = inlined_call_operand.vmem [shape: f32[1,8], index: 4, kind: input, shape index: {}]
  %s5 = inlined_call_operand.vmem [shape: f32[2,8,32], index: 5, kind: input, shape index: {}]
  %s6 = inlined_call_operand.vmem [shape: f32[32,1], index: 6, kind: input, shape index: {}]
  %s7 = inlined_call_operand.<no memory space> [shape: f32[1,1], index: 7, kind: input, shape index: {}]
  %s8 = inlined_call_operand.vmem [shape: f32[2,1], index: 8, kind: output, shape index: {0}]
  %s9 = inlined_call_operand.hbm [shape: f32[1,1], index: 9, kind: output, shape index: {1}]
  %10 = xla_tuple %s8, %s9
  %s11 = sld [smem:[#allocation0]]
  $region50: #{_lambda_.31} parent=0
    _
  %s13 = ssub.s32 1, %s11
  %s14 = scalar_select 0, %s13, %s11
  %v15 = vstv %s7
  %16 = vst [vmem:[#allocation2] sm:$0x1] %v15
  $region1: #{_lambda_.31} parent=0
    #allocation3 [shape = 'u8[512]{0}', space=vmem, size = 0x400, scoped, tag = 'output window, operand 1, single buffered']
    #allocation4 [shape = 's32[1]{0}', space=sflag, size = 0x4, scoped, tag = 'scoped memory for _lambda_.31']
    %17 = vsyncpa [#allocation4], 0
    // Predicated region
    $region2: #{_lambda_.31} parent=1 // pred_check
      _
    $region3: #{_lambda_.31} parent=1 // pred_check_branch
      %19 = sbr.rel (0) target = $region5
    $region4: #{_lambda_.31} parent=1 // pred_region
      _
    $region5: #{_lambda_.31} parent=1 // pred_fallthru
      _
    // Predicated region
    $region6: #{_lambda_.31} parent=1 // pred_check
      _
    $region7: #{_lambda_.31} parent=1 // pred_check_branch
      %21 = sbr.rel (0) target = $region9
    $region8: #{_lambda_.31} parent=1 // pred_region
      _
    $region9: #{_lambda_.31} parent=1 // pred_fallthru
      _
    // Predicated region
    $region10: #{_lambda_.31} parent=1 // pred_check
      _
    $region11: #{_lambda_.31} parent=1 // pred_check_branch
      %23 = sbr.rel (0) target = $region13
    $region12: #{_lambda_.31} parent=1 // pred_region
      _
    $region13: #{_lambda_.31} parent=1 // pred_fallthru
      _
    // Predicated region
    $region14: #{_lambda_.31} parent=1 // pred_check
      _
    $region15: #{_lambda_.31} parent=1 // pred_check_branch
      %25 = sbr.rel (0) target = $region17
    $region16: #{_lambda_.31} parent=1 // pred_region
      _
    $region17: #{_lambda_.31} parent=1 // pred_fallthru
      _
    // Predicated region
    $region18: #{_lambda_.31} parent=1 // pred_check
      _
    $region19: #{_lambda_.31} parent=1 // pred_check_branch
      %27 = sbr.rel (0) target = $region21
    $region20: #{_lambda_.31} parent=1 // pred_region
      _
    $region21: #{_lambda_.31} parent=1 // pred_fallthru
      _
    // Predicated region
    $region22: #{_lambda_.31} parent=1 // pred_check
      _
    $region23: #{_lambda_.31} parent=1 // pred_check_branch
      %29 = sbr.rel (0) target = $region25
    $region24: #{_lambda_.31} parent=1 // pred_region
      _
    $region25: #{_lambda_.31} parent=1 // pred_fallthru
      _
    // Predicated region
    $region26: #{_lambda_.31} parent=1 // pred_check
      _
    $region27: #{_lambda_.31} parent=1 // pred_check_branch
      %31 = sbr.rel (0) target = $region29
    $region28: #{_lambda_.31} parent=1 // pred_region
      _
    $region29: #{_lambda_.31} parent=1 // pred_fallthru
      _
    // Predicated region
    $region30: #{_lambda_.31} parent=1 // pred_check
      _
    $region31: #{_lambda_.31} parent=1 // pred_check_branch
      %33 = sbr.rel (0) target = $region33
    $region32: #{_lambda_.31} parent=1 // pred_region
      _
    $region33: #{_lambda_.31} parent=1 // pred_fallthru
      _
    %v34 = vld [vmem:[%s0] sm:$0x3]
    %v35 = vld [vmem:[%s1] sm:$0xff]
    %v36 = vld [vmem:[%s2] sm:$0x1]
    %v38 = vlaneseq
    %v39 = vshrl.u32 %v38, 7
    %v40 = vsub.s32 0, %v39
    %v41 = vrot.slane %v36, %v40
    %vm43 = vcmask 64512
    %v45 = vsel %vm43, %v34, 0
    %47 = vmatprep.subr.mxu0 0.0
    %48 = vmatpush1.msra.mxu0 %v35
    %49 = vmatprep.subr.mxu0 0.0
    %50 = vmatpush1.msra.mxu0 0.0
    %51 = vmatprep.subr.mxu0 0.0
    %52 = vmatpush1.msra.mxu0 0.0
    %53 = vmatprep.subr.mxu0 0.0
    %54 = vmatpush1.msra.mxu0 0.0
    %55 = vmatprep.subr.mxu0 0.0
    %56 = vmatpush1.msra.mxu0 0.0
    %57 = vmatprep.subr.mxu0 0.0
    %58 = vmatpush1.msra.mxu0 0.0
    %59 = vmatprep.subr.mxu0 0.0
    %60 = vmatpush1.msra.mxu0 0.0
    %61 = vmatprep.subr.mxu0 0.0
    %62 = vmatpush1.msra.mxu0 0.0
    %63 = vmatprep.subr.mxu0 0.0
    %64 = vmatpush1.msra.mxu0 0.0
    %65 = vmatprep.subr.mxu0 0.0
    %66 = vmatpush1.msra.mxu0 0.0
    %67 = vmatprep.subr.mxu0 0.0
    %68 = vmatpush1.msra.mxu0 0.0
    %69 = vmatprep.subr.mxu0 0.0
    %70 = vmatpush1.msra.mxu0 0.0
    %71 = vmatprep.subr.mxu0 0.0
    %72 = vmatpush1.msra.mxu0 0.0
    %73 = vmatprep.subr.mxu0 0.0
    %74 = vmatpush1.msra.mxu0 0.0
    %75 = vmatprep.subr.mxu0 0.0
    %76 = vmatpush1.msra.mxu0 0.0
    %77 = vmatprep.subr.mxu0 0.0
    %78 = vmatpush1.msra.mxu0 0.0
    %79 = vmatprep.subr.mxu0 0.0
    %80 = vmatpush1.msra.mxu0 0.0
    %81 = vmatprep.subr.mxu0 0.0
    %82 = vmatpush1.msra.mxu0 0.0
    %83 = vmatprep.subr.mxu0 0.0
    %84 = vmatpush1.msra.mxu0 0.0
    %85 = vmatprep.subr.mxu0 0.0
    %86 = vmatpush1.msra.mxu0 0.0
    %87 = vmatprep.subr.mxu0 0.0
    %88 = vmatpush1.msra.mxu0 0.0
    %89 = vmatprep.subr.mxu0 0.0
    %90 = vmatpush1.msra.mxu0 0.0
    %91 = vmatprep.subr.mxu0 0.0
    %92 = vmatpush1.msra.mxu0 0.0
    %93 = vmatprep.subr.mxu0 0.0
    %94 = vmatpush1.msra.mxu0 0.0
    %95 = vmatprep.subr.mxu0 0.0
    %96 = vmatpush1.msra.mxu0 0.0
    %97 = vmatprep.subr.mxu0 0.0
    %98 = vmatpush1.msra.mxu0 0.0
    %99 = vmatprep.subr.mxu0 0.0
    %100 = vmatpush1.msra.mxu0 0.0
    %101 = vmatprep.subr.mxu0 0.0
    %102 = vmatpush1.msra.mxu0 0.0
    %103 = vmatprep.subr.mxu0 0.0
    %104 = vmatpush1.msra.mxu0 0.0
    %105 = vmatprep.subr.mxu0 0.0
    %106 = vmatpush1.msra.mxu0 0.0
    %107 = vmatprep.subr.mxu0 0.0
    %108 = vmatpush1.msra.mxu0 0.0
    %109 = vmatprep.subr.mxu0 0.0
    %110 = vmatpush1.msra.mxu0 0.0
    %111 = vmatprep.mubr.f32.mxu0 0.0
    %112 = vmatmul.mubr.f32.gmra.mrb[0].mxu0 %v45
    %v113 = vpop.f32.mrb[0].mxu0
    %v114 = vadd.f32 %v41, %v113
    %v115 = vpop.f32.mrb[0].mxu0
    %116 = vdwg.mxu0
    %v117 = vmax.f32 %v114, 0.0
    %v118 = vld [vmem:[%s3] sm:$0xff]
    %v119 = vld [vmem:[%s3 + $0x8] sm:$0xff]
    %v120 = vld [vmem:[%s3 + $0x10] sm:$0xff]
    %v121 = vld [vmem:[%s3 + $0x18] sm:$0xff]
    %v122 = vld [vmem:[%s4] sm:$0x1]
    %v124 = vlaneseq
    %v125 = vshrl.u32 %v124, 7
    %v126 = vsub.s32 0, %v125
    %v127 = vrot.slane %v122, %v126
    %vm129 = vcmask 261120
    %v131 = vsel %vm129, %v117, 0
    %133 = vmatprep.subr.mxu0 0.0
    %134 = vmatpush1.msra.mxu0 %v118
    %135 = vmatprep.subr.mxu0 0.0
    %136 = vmatpush1.msra.mxu0 %v119
    %137 = vmatprep.subr.mxu0 0.0
    %138 = vmatpush1.msra.mxu0 %v120
    %139 = vmatprep.subr.mxu0 0.0
    %140 = vmatpush1.msra.mxu0 %v121
    %141 = vmatprep.subr.mxu0 0.0
    %142 = vmatpush1.msra.mxu0 0.0
    %143 = vmatprep.subr.mxu0 0.0
    %144 = vmatpush1.msra.mxu0 0.0
    %145 = vmatprep.subr.mxu0 0.0
    %146 = vmatpush1.msra.mxu0 0.0
    %147 = vmatprep.subr.mxu0 0.0
    %148 = vmatpush1.msra.mxu0 0.0
    %149 = vmatprep.subr.mxu0 0.0
    %150 = vmatpush1.msra.mxu0 0.0
    %151 = vmatprep.subr.mxu0 0.0
    %152 = vmatpush1.msra.mxu0 0.0
    %153 = vmatprep.subr.mxu0 0.0
    %154 = vmatpush1.msra.mxu0 0.0
    %155 = vmatprep.subr.mxu0 0.0
    %156 = vmatpush1.msra.mxu0 0.0
    %157 = vmatprep.subr.mxu0 0.0
    %158 = vmatpush1.msra.mxu0 0.0
    %159 = vmatprep.subr.mxu0 0.0
    %160 = vmatpush1.msra.mxu0 0.0
    %161 = vmatprep.subr.mxu0 0.0
    %162 = vmatpush1.msra.mxu0 0.0
    %163 = vmatprep.subr.mxu0 0.0
    %164 = vmatpush1.msra.mxu0 0.0
    %165 = vmatprep.subr.mxu0 0.0
    %166 = vmatpush1.msra.mxu0 0.0
    %167 = vmatprep.subr.mxu0 0.0
    %168 = vmatpush1.msra.mxu0 0.0
    %169 = vmatprep.subr.mxu0 0.0
    %170 = vmatpush1.msra.mxu0 0.0
    %171 = vmatprep.subr.mxu0 0.0
    %172 = vmatpush1.msra.mxu0 0.0
    %173 = vmatprep.subr.mxu0 0.0
    %174 = vmatpush1.msra.mxu0 0.0
    %175 = vmatprep.subr.mxu0 0.0
    %176 = vmatpush1.msra.mxu0 0.0
    %177 = vmatprep.subr.mxu0 0.0
    %178 = vmatpush1.msra.mxu0 0.0
    %179 = vmatprep.subr.mxu0 0.0
    %180 = vmatpush1.msra.mxu0 0.0
    %181 = vmatprep.subr.mxu0 0.0
    %182 = vmatpush1.msra.mxu0 0.0
    %183 = vmatprep.subr.mxu0 0.0
    %184 = vmatpush1.msra.mxu0 0.0
    %185 = vmatprep.subr.mxu0 0.0
    %186 = vmatpush1.msra.mxu0 0.0
    %187 = vmatprep.subr.mxu0 0.0
    %188 = vmatpush1.msra.mxu0 0.0
    %189 = vmatprep.subr.mxu0 0.0
    %190 = vmatpush1.msra.mxu0 0.0
    %191 = vmatprep.subr.mxu0 0.0
    %192 = vmatpush1.msra.mxu0 0.0
    %193 = vmatprep.subr.mxu0 0.0
    %194 = vmatpush1.msra.mxu0 0.0
    %195 = vmatprep.subr.mxu0 0.0
    %196 = vmatpush1.msra.mxu0 0.0
    %197 = vmatprep.mubr.f32.mxu0 0.0
    %198 = vmatmul.mubr.f32.gmra.mrb[0].mxu0 %v131
    %v199 = vpop.f32.mrb[0].mxu0
    %v200 = vadd.f32 %v127, %v199
    %v201 = vpop.f32.mrb[0].mxu0
    %202 = vdwg.mxu0
    %204 = vrot.lane.b32.xlu0 %v200, 1
    %v205 = vpop.permute.xlu0 %204
    %v207 = vsub.f32 %v200, %v205
    %v208 = vand.u32 2147483647, %v207
    %210 = vrot.lane.b32.xlu0 %v208, 127
    %v211 = vpop.permute.xlu0 %210
    %vm213 = vcmask 50176
    %v214 = vsel %vm213, %v211, 0.0
    %215 = vadd.xlane.f32.xlu0 %v214
    %v216 = vpop.xlane.xlu0 %215
    %vm217 = vcmask 1041408
    %v218 = vsel %vm217, %v216, 0.0
    %v219 = vrot.slane %v218, 4
    %v220 = vadd.f32 %v218, %v219
    %v221 = vrot.slane %v220, 2
    %v222 = vadd.f32 %v220, %v221
    %v223 = vrot.slane %v222, 1
    %v224 = vadd.f32 %v222, %v223
    %vm225 = vcmask 0
    %226 = vst.msk [vmem:[#allocation3] sm:$0x1] %vm225, %v224
    %v227 = vld [vmem:[%s5] sm:$0xff]
    %v228 = vsel %vm43, %v200, 0
    %230 = vmatprep.subr.mxu0 0.0
    %231 = vmatpush1.msra.mxu0 %v227
    %232 = vmatprep.subr.mxu0 0.0
    %233 = vmatpush1.msra.mxu0 0.0
    %234 = vmatprep.subr.mxu0 0.0
    %235 = vmatpush1.msra.mxu0 0.0
    %236 = vmatprep.subr.mxu0 0.0
    %237 = vmatpush1.msra.mxu0 0.0
    %238 = vmatprep.subr.mxu0 0.0
    %239 = vmatpush1.msra.mxu0 0.0
    %240 = vmatprep.subr.mxu0 0.0
    %241 = vmatpush1.msra.mxu0 0.0
    %242 = vmatprep.subr.mxu0 0.0
    %243 = vmatpush1.msra.mxu0 0.0
    %244 = vmatprep.subr.mxu0 0.0
    %245 = vmatpush1.msra.mxu0 0.0
    %246 = vmatprep.subr.mxu0 0.0
    %247 = vmatpush1.msra.mxu0 0.0
    %248 = vmatprep.subr.mxu0 0.0
    %249 = vmatpush1.msra.mxu0 0.0
    %250 = vmatprep.subr.mxu0 0.0
    %251 = vmatpush1.msra.mxu0 0.0
    %252 = vmatprep.subr.mxu0 0.0
    %253 = vmatpush1.msra.mxu0 0.0
    %254 = vmatprep.subr.mxu0 0.0
    %255 = vmatpush1.msra.mxu0 0.0
    %256 = vmatprep.subr.mxu0 0.0
    %257 = vmatpush1.msra.mxu0 0.0
    %258 = vmatprep.subr.mxu0 0.0
    %259 = vmatpush1.msra.mxu0 0.0
    %260 = vmatprep.subr.mxu0 0.0
    %261 = vmatpush1.msra.mxu0 0.0
    %262 = vmatprep.subr.mxu0 0.0
    %263 = vmatpush1.msra.mxu0 0.0
    %264 = vmatprep.subr.mxu0 0.0
    %265 = vmatpush1.msra.mxu0 0.0
    %266 = vmatprep.subr.mxu0 0.0
    %267 = vmatpush1.msra.mxu0 0.0
    %268 = vmatprep.subr.mxu0 0.0
    %269 = vmatpush1.msra.mxu0 0.0
    %270 = vmatprep.subr.mxu0 0.0
    %271 = vmatpush1.msra.mxu0 0.0
    %272 = vmatprep.subr.mxu0 0.0
    %273 = vmatpush1.msra.mxu0 0.0
    %274 = vmatprep.subr.mxu0 0.0
    %275 = vmatpush1.msra.mxu0 0.0
    %276 = vmatprep.subr.mxu0 0.0
    %277 = vmatpush1.msra.mxu0 0.0
    %278 = vmatprep.subr.mxu0 0.0
    %279 = vmatpush1.msra.mxu0 0.0
    %280 = vmatprep.subr.mxu0 0.0
    %281 = vmatpush1.msra.mxu0 0.0
    %282 = vmatprep.subr.mxu0 0.0
    %283 = vmatpush1.msra.mxu0 0.0
    %284 = vmatprep.subr.mxu0 0.0
    %285 = vmatpush1.msra.mxu0 0.0
    %286 = vmatprep.subr.mxu0 0.0
    %287 = vmatpush1.msra.mxu0 0.0
    %288 = vmatprep.subr.mxu0 0.0
    %289 = vmatpush1.msra.mxu0 0.0
    %290 = vmatprep.subr.mxu0 0.0
    %291 = vmatpush1.msra.mxu0 0.0
    %292 = vmatprep.subr.mxu0 0.0
    %293 = vmatpush1.msra.mxu0 0.0
    %294 = vmatprep.mubr.f32.mxu0 0.0
    %295 = vmatmul.mubr.f32.gmra.mrb[0].mxu0 %v228
    %v296 = vpop.f32.mrb[0].mxu0
    %v297 = vadd.f32 0.0, %v296
    %v298 = vpop.f32.mrb[0].mxu0
    %299 = vdwg.mxu0
    %s300 = scalar_lea.vmem %s5, 8
    %v301 = vld [vmem:[%s300] sm:$0xff]
    %v302 = vrot.slane %v200, 1
    %v303 = vsel %vm43, %v302, 0
    %305 = vmatprep.subr.mxu0 0.0
    %306 = vmatpush1.msra.mxu0 %v301
    %307 = vmatprep.subr.mxu0 0.0
    %308 = vmatpush1.msra.mxu0 0.0
    %309 = vmatprep.subr.mxu0 0.0
    %310 = vmatpush1.msra.mxu0 0.0
    %311 = vmatprep.subr.mxu0 0.0
    %312 = vmatpush1.msra.mxu0 0.0
    %313 = vmatprep.subr.mxu0 0.0
    %314 = vmatpush1.msra.mxu0 0.0
    %315 = vmatprep.subr.mxu0 0.0
    %316 = vmatpush1.msra.mxu0 0.0
    %317 = vmatprep.subr.mxu0 0.0
    %318 = vmatpush1.msra.mxu0 0.0
    %319 = vmatprep.subr.mxu0 0.0
    %320 = vmatpush1.msra.mxu0 0.0
    %321 = vmatprep.subr.mxu0 0.0
    %322 = vmatpush1.msra.mxu0 0.0
    %323 = vmatprep.subr.mxu0 0.0
    %324 = vmatpush1.msra.mxu0 0.0
    %325 = vmatprep.subr.mxu0 0.0
    %326 = vmatpush1.msra.mxu0 0.0
    %327 = vmatprep.subr.mxu0 0.0
    %328 = vmatpush1.msra.mxu0 0.0
    %329 = vmatprep.subr.mxu0 0.0
    %330 = vmatpush1.msra.mxu0 0.0
    %331 = vmatprep.subr.mxu0 0.0
    %332 = vmatpush1.msra.mxu0 0.0
    %333 = vmatprep.subr.mxu0 0.0
    %334 = vmatpush1.msra.mxu0 0.0
    %335 = vmatprep.subr.mxu0 0.0
    %336 = vmatpush1.msra.mxu0 0.0
    %337 = vmatprep.subr.mxu0 0.0
    %338 = vmatpush1.msra.mxu0 0.0
    %339 = vmatprep.subr.mxu0 0.0
    %340 = vmatpush1.msra.mxu0 0.0
    %341 = vmatprep.subr.mxu0 0.0
    %342 = vmatpush1.msra.mxu0 0.0
    %343 = vmatprep.subr.mxu0 0.0
    %344 = vmatpush1.msra.mxu0 0.0
    %345 = vmatprep.subr.mxu0 0.0
    %346 = vmatpush1.msra.mxu0 0.0
    %347 = vmatprep.subr.mxu0 0.0
    %348 = vmatpush1.msra.mxu0 0.0
    %349 = vmatprep.subr.mxu0 0.0
    %350 = vmatpush1.msra.mxu0 0.0
    %351 = vmatprep.subr.mxu0 0.0
    %352 = vmatpush1.msra.mxu0 0.0
    %353 = vmatprep.subr.mxu0 0.0
    %354 = vmatpush1.msra.mxu0 0.0
    %355 = vmatprep.subr.mxu0 0.0
    %356 = vmatpush1.msra.mxu0 0.0
    %357 = vmatprep.subr.mxu0 0.0
    %358 = vmatpush1.msra.mxu0 0.0
    %359 = vmatprep.subr.mxu0 0.0
    %360 = vmatpush1.msra.mxu0 0.0
    %361 = vmatprep.subr.mxu0 0.0
    %362 = vmatpush1.msra.mxu0 0.0
    %363 = vmatprep.subr.mxu0 0.0
    %364 = vmatpush1.msra.mxu0 0.0
    %365 = vmatprep.subr.mxu0 0.0
    %366 = vmatpush1.msra.mxu0 0.0
    %367 = vmatprep.subr.mxu0 0.0
    %368 = vmatpush1.msra.mxu0 0.0
    %369 = vmatprep.mubr.f32.mxu0 0.0
    %370 = vmatmul.mubr.f32.gmra.mrb[0].mxu0 %v303
    %v371 = vpop.f32.mrb[0].mxu0
    %v372 = vadd.f32 0.0, %v371
    %v373 = vpop.f32.mrb[0].mxu0
    %374 = vdwg.mxu0
    %v376 = vrot.slane %v372, 7
    %vm378 = vcmask 1040384
    %v379 = vsel %vm378, %v297, %v376
    %v380 = vmax.f32 %v379, 0.0
    %v381 = vld [vmem:[%s6] sm:$0xff]
    %v382 = vld [vmem:[%s6 + $0x8] sm:$0xff]
    %v383 = vld [vmem:[%s6 + $0x10] sm:$0xff]
    %v384 = vld [vmem:[%s6 + $0x18] sm:$0xff]
    %v385 = vld [vmem:[#allocation2] sm:$0x1]
    %v387 = vlaneseq
    %v388 = vshrl.u32 %v387, 7
    %v389 = vsub.s32 0, %v388
    %v390 = vrot.slane %v385, %v389
    %v393 = vsel %vm129, %v380, 0
    %395 = vmatprep.subr.mxu0 0.0
    %396 = vmatpush1.msra.mxu0 %v381
    %397 = vmatprep.subr.mxu0 0.0
    %398 = vmatpush1.msra.mxu0 %v382
    %399 = vmatprep.subr.mxu0 0.0
    %400 = vmatpush1.msra.mxu0 %v383
    %401 = vmatprep.subr.mxu0 0.0
    %402 = vmatpush1.msra.mxu0 %v384
    %403 = vmatprep.subr.mxu0 0.0
    %404 = vmatpush1.msra.mxu0 0.0
    %405 = vmatprep.subr.mxu0 0.0
    %406 = vmatpush1.msra.mxu0 0.0
    %407 = vmatprep.subr.mxu0 0.0
    %408 = vmatpush1.msra.mxu0 0.0
    %409 = vmatprep.subr.mxu0 0.0
    %410 = vmatpush1.msra.mxu0 0.0
    %411 = vmatprep.subr.mxu0 0.0
    %412 = vmatpush1.msra.mxu0 0.0
    %413 = vmatprep.subr.mxu0 0.0
    %414 = vmatpush1.msra.mxu0 0.0
    %415 = vmatprep.subr.mxu0 0.0
    %416 = vmatpush1.msra.mxu0 0.0
    %417 = vmatprep.subr.mxu0 0.0
    %418 = vmatpush1.msra.mxu0 0.0
    %419 = vmatprep.subr.mxu0 0.0
    %420 = vmatpush1.msra.mxu0 0.0
    %421 = vmatprep.subr.mxu0 0.0
    %422 = vmatpush1.msra.mxu0 0.0
    %423 = vmatprep.subr.mxu0 0.0
    %424 = vmatpush1.msra.mxu0 0.0
    %425 = vmatprep.subr.mxu0 0.0
    %426 = vmatpush1.msra.mxu0 0.0
    %427 = vmatprep.subr.mxu0 0.0
    %428 = vmatpush1.msra.mxu0 0.0
    %429 = vmatprep.subr.mxu0 0.0
    %430 = vmatpush1.msra.mxu0 0.0
    %431 = vmatprep.subr.mxu0 0.0
    %432 = vmatpush1.msra.mxu0 0.0
    %433 = vmatprep.subr.mxu0 0.0
    %434 = vmatpush1.msra.mxu0 0.0
    %435 = vmatprep.subr.mxu0 0.0
    %436 = vmatpush1.msra.mxu0 0.0
    %437 = vmatprep.subr.mxu0 0.0
    %438 = vmatpush1.msra.mxu0 0.0
    %439 = vmatprep.subr.mxu0 0.0
    %440 = vmatpush1.msra.mxu0 0.0
    %441 = vmatprep.subr.mxu0 0.0
    %442 = vmatpush1.msra.mxu0 0.0
    %443 = vmatprep.subr.mxu0 0.0
    %444 = vmatpush1.msra.mxu0 0.0
    %445 = vmatprep.subr.mxu0 0.0
    %446 = vmatpush1.msra.mxu0 0.0
    %447 = vmatprep.subr.mxu0 0.0
    %448 = vmatpush1.msra.mxu0 0.0
    %449 = vmatprep.subr.mxu0 0.0
    %450 = vmatpush1.msra.mxu0 0.0
    %451 = vmatprep.subr.mxu0 0.0
    %452 = vmatpush1.msra.mxu0 0.0
    %453 = vmatprep.subr.mxu0 0.0
    %454 = vmatpush1.msra.mxu0 0.0
    %455 = vmatprep.subr.mxu0 0.0
    %456 = vmatpush1.msra.mxu0 0.0
    %457 = vmatprep.subr.mxu0 0.0
    %458 = vmatpush1.msra.mxu0 0.0
    %459 = vmatprep.mubr.f32.mxu0 0.0
    %460 = vmatmul.mubr.f32.gmra.mrb[0].mxu0 %v393
    %v461 = vpop.f32.mrb[0].mxu0
    %v462 = vadd.f32 %v390, %v461
    %v463 = vpop.f32.mrb[0].mxu0
    %464 = vdwg.mxu0
    %vm465 = vcmask 1024
    %466 = vst.msk [vmem:[%s8] sm:$0x3] %vm465, %v462
    // Predicated region
    $region34: #{_lambda_.31} parent=1 // pred_check
      _
    $region35: #{_lambda_.31} parent=1 // pred_check_branch
      %468 = sbr.rel (0) target = $region37
    $region36: #{_lambda_.31} parent=1 // pred_region
      _
    $region37: #{_lambda_.31} parent=1 // pred_fallthru
      _
    // Predicated region
    $region38: #{_lambda_.31} parent=1 // pred_check
      _
    $region39: #{_lambda_.31} parent=1 // pred_check_branch
      %470 = sbr.rel (0) target = $region41
    $region40: #{_lambda_.31} parent=1 // pred_region
      %s472 = ssub.s32 16, 16
      %473 = vsyncadd [#allocation4], %s472
      %s475 = sshll.u32 [#allocation3], 4
      %s476 = int_to_ptr.vmem [resolvable:$true] %s475
      %478 = dma.vmem_to_hbm [thread:$0]  %s476, 16, %s9, [#allocation4]
    $region41: #{_lambda_.31} parent=1 // pred_fallthru
      _
    // Predicated region
    $region42: #{_lambda_.31} parent=1 // pred_check
      _
    $region43: #{_lambda_.31} parent=1 // pred_check_branch
      %480 = sbr.rel (0) target = $region45
    $region44: #{_lambda_.31} parent=1 // pred_region
      _
    $region45: #{_lambda_.31} parent=1 // pred_fallthru
      _
    // Predicated region
    $region46: #{_lambda_.31} parent=1 // pred_check
      _
    $region47: #{_lambda_.31} parent=1 // pred_check_branch
      %482 = sbr.rel (0) target = $region49
    $region48: #{_lambda_.31} parent=1 // pred_region
      %483 = dma.done [#allocation4], 16
    $region49: #{_lambda_.31} parent=1 // pred_fallthru
      _
    %484 = vsyncpa [#allocation4], 1

// kernel: _lambda_.22
$region0: #{_lambda_.22}
  #allocation0 [shape = 'u32[]', space=smem, size = 0x4, offset = 0x4, fixed_abs, tag = 'smem constant byte address 0x4 - core index']
  #allocation1 [shape = 'u32[144,128]{1,0:T(1,128)}', space=vmem, size = 0x12000, scoped, tag = 'internal scratch']
  %s0 = inlined_call_operand.vmem [shape: f32[2,8], index: 0, kind: input, shape index: {}]
  %s1 = inlined_call_operand.vmem [shape: f32[4,8,1024], index: 1, kind: input, shape index: {}]
  %s2 = inlined_call_operand.vmem [shape: f32[4,1,1024], index: 2, kind: input, shape index: {}]
  %s3 = inlined_call_operand.vmem [shape: f32[4,1024,64], index: 3, kind: input, shape index: {}]
  %s4 = inlined_call_operand.vmem [shape: f32[4,1,64], index: 4, kind: input, shape index: {}]
  %s5 = inlined_call_operand.vmem [shape: f32[4,2,64], index: 5, kind: output, shape index: {0}]
  %s6 = inlined_call_operand.vmem [shape: f32[4,1,1], index: 6, kind: output, shape index: {1}]
  %7 = xla_tuple %s5, %s6
  %s8 = sld [smem:[#allocation0]]
  $region61: #{_lambda_.22} parent=0
    _
  %s10 = ssub.s32 1, %s8
  %s11 = scalar_select 0, %s10, %s8
  loop: start=0, step=1, limit=6
  $region2: #{_lambda_.22} parent=0 // loop_pre_header
    _
  $region3: #{_lambda_.22} parent=0 // loop_header
    %s13 = sphi 0, %s17
    %p14 = scmp.ge.s32.totalorder %s13, 6
    %s21 = sphi 0, %s21
    %s23 = sphi 0, %s21
    %s24 = sphi 0, %s23
    %s38 = sphi 0, %s24
    %s44 = sphi 0, %s46
    %s47 = sphi 0, %s44
    %s48 = sphi 0, %s47
    %s64 = sphi 0, %s48
    %s70 = sphi 0, %s72
    %s73 = sphi 0, %s70
    %s74 = sphi 0, %s73
    %s90 = sphi 0, %s74
    %s96 = sphi 0, %s98
    %s99 = sphi 0, %s96
    %s100 = sphi 0, %s99
    %s116 = sphi 0, %s100
    %s122 = sphi 0, %s124
    %s125 = sphi 0, %s122
    %s126 = sphi 0, %s125
    %s142 = sphi 0, %s126
    %s148 = sphi 0, %s150
    %s151 = sphi 0, %s148
    %s152 = sphi 0, %s151
    %s168 = sphi 0, %s152
    %s174 = sphi 0, %s176
    %s177 = sphi 0, %s174
    %s178 = sphi 0, %s177
    %s194 = sphi 0, %s178
  $region4: #{_lambda_.22} parent=0 // loop_header_branch
    %16 = sbr.rel (%p14) target = $region8
  $region5: #{_lambda_.22} parent=0 // loop_body
    %s18 = ssub.s32 %s13, 1
    %s19 = ssub.s32 %s13, 2
    %s20 = sadd.s32 %s13, 1
    %s22 = sadd.s32 %s21, 1
    %p25 = scmp.eq.s32.totalorder %s13, 3
    %p26 = scmp.ne.s32.totalorder %s21, %s23
    %p27 = scmp.eq.s32.totalorder %s13, 0
    %p28 = por %p26, %p27
    %p29 = scmp.ne.s32.totalorder %s21, %s23
    %p30 = scmp.eq.s32.totalorder %s18, 3
    %p31 = por %p29, %p30
    %p32 = scmp.ne.s32.totalorder %s23, %s24
    %p33 = scmp.eq.s32.totalorder %s18, 0
    %p34 = por %p32, %p33
    %p35 = scmp.ne.s32.totalorder %s23, %s24
    %p36 = scmp.eq.s32.totalorder %s19, 3
    %p37 = por %p35, %p36
    %p39 = scmp.ne.s32.totalorder %s24, %s38
    %p40 = scmp.eq.s32.totalorder %s19, 0
    %p41 = por %p39, %p40
    %s42 = ssub.s32 %s13, %s20
    %p43 = scmp.eq.s32.totalorder %s42, 0
    %s45 = sadd.s32 %s44, 1
    %s46 = scalar_select %p43, %s44, %s45
    %p49 = pneg %p43
    %p50 = scmp.eq.s32.totalorder %s13, 3
    %p51 = por %p49, %p50
    %p52 = scmp.ne.s32.totalorder %s44, %s47
    %p53 = scmp.eq.s32.totalorder %s13, 0
    %p54 = por %p52, %p53
    %p55 = scmp.ne.s32.totalorder %s44, %s47
    %p56 = scmp.eq.s32.totalorder %s18, 3
    %p57 = por %p55, %p56
    %p58 = scmp.ne.s32.totalorder %s47, %s48
    %p59 = scmp.eq.s32.totalorder %s18, 0
    %p60 = por %p58, %p59
    %p61 = scmp.ne.s32.totalorder %s47, %s48
    %p62 = scmp.eq.s32.totalorder %s19, 3
    %p63 = por %p61, %p62
    %p65 = scmp.ne.s32.totalorder %s48, %s64
    %p66 = scmp.eq.s32.totalorder %s19, 0
    %p67 = por %p65, %p66
    %s68 = ssub.s32 %s13, %s20
    %p69 = scmp.eq.s32.totalorder %s68, 0
    %s71 = sadd.s32 %s70, 1
    %s72 = scalar_select %p69, %s70, %s71
    %p75 = pneg %p69
    %p76 = scmp.eq.s32.totalorder %s13, 3
    %p77 = por %p75, %p76
    %p78 = scmp.ne.s32.totalorder %s70, %s73
    %p79 = scmp.eq.s32.totalorder %s13, 0
    %p80 = por %p78, %p79
    %p81 = scmp.ne.s32.totalorder %s70, %s73
    %p82 = scmp.eq.s32.totalorder %s18, 3
    %p83 = por %p81, %p82
    %p84 = scmp.ne.s32.totalorder %s73, %s74
    %p85 = scmp.eq.s32.totalorder %s18, 0
    %p86 = por %p84, %p85
    %p87 = scmp.ne.s32.totalorder %s73, %s74
    %p88 = scmp.eq.s32.totalorder %s19, 3
    %p89 = por %p87, %p88
    %p91 = scmp.ne.s32.totalorder %s74, %s90
    %p92 = scmp.eq.s32.totalorder %s19, 0
    %p93 = por %p91, %p92
    %s94 = ssub.s32 %s13, %s20
    %p95 = scmp.eq.s32.totalorder %s94, 0
    %s97 = sadd.s32 %s96, 1
    %s98 = scalar_select %p95, %s96, %s97
    %p101 = pneg %p95
    %p102 = scmp.eq.s32.totalorder %s13, 3
    %p103 = por %p101, %p102
    %p104 = scmp.ne.s32.totalorder %s96, %s99
    %p105 = scmp.eq.s32.totalorder %s13, 0
    %p106 = por %p104, %p105
    %p107 = scmp.ne.s32.totalorder %s96, %s99
    %p108 = scmp.eq.s32.totalorder %s18, 3
    %p109 = por %p107, %p108
    %p110 = scmp.ne.s32.totalorder %s99, %s100
    %p111 = scmp.eq.s32.totalorder %s18, 0
    %p112 = por %p110, %p111
    %p113 = scmp.ne.s32.totalorder %s99, %s100
    %p114 = scmp.eq.s32.totalorder %s19, 3
    %p115 = por %p113, %p114
    %p117 = scmp.ne.s32.totalorder %s100, %s116
    %p118 = scmp.eq.s32.totalorder %s19, 0
    %p119 = por %p117, %p118
    %s120 = ssub.s32 %s13, %s20
    %p121 = scmp.eq.s32.totalorder %s120, 0
    %s123 = sadd.s32 %s122, 1
    %s124 = scalar_select %p121, %s122, %s123
    %p127 = pneg %p121
    %p128 = scmp.eq.s32.totalorder %s13, 3
    %p129 = por %p127, %p128
    %p130 = scmp.ne.s32.totalorder %s122, %s125
    %p131 = scmp.eq.s32.totalorder %s13, 0
    %p132 = por %p130, %p131
    %p133 = scmp.ne.s32.totalorder %s122, %s125
    %p134 = scmp.eq.s32.totalorder %s18, 3
    %p135 = por %p133, %p134
    %p136 = scmp.ne.s32.totalorder %s125, %s126
    %p137 = scmp.eq.s32.totalorder %s18, 0
    %p138 = por %p136, %p137
    %p139 = scmp.ne.s32.totalorder %s125, %s126
    %p140 = scmp.eq.s32.totalorder %s19, 3
    %p141 = por %p139, %p140
    %p143 = scmp.ne.s32.totalorder %s126, %s142
    %p144 = scmp.eq.s32.totalorder %s19, 0
    %p145 = por %p143, %p144
    %s146 = ssub.s32 %s13, %s20
    %p147 = scmp.eq.s32.totalorder %s146, 0
    %s149 = sadd.s32 %s148, 1
    %s150 = scalar_select %p147, %s148, %s149
    %p153 = pneg %p147
    %p154 = scmp.eq.s32.totalorder %s13, 3
    %p155 = por %p153, %p154
    %p156 = scmp.ne.s32.totalorder %s148, %s151
    %p157 = scmp.eq.s32.totalorder %s13, 0
    %p158 = por %p156, %p157
    %p159 = scmp.ne.s32.totalorder %s148, %s151
    %p160 = scmp.eq.s32.totalorder %s18, 3
    %p161 = por %p159, %p160
    %p162 = scmp.ne.s32.totalorder %s151, %s152
    %p163 = scmp.eq.s32.totalorder %s18, 0
    %p164 = por %p162, %p163
    %p165 = scmp.ne.s32.totalorder %s151, %s152
    %p166 = scmp.eq.s32.totalorder %s19, 3
    %p167 = por %p165, %p166
    %p169 = scmp.ne.s32.totalorder %s152, %s168
    %p170 = scmp.eq.s32.totalorder %s19, 0
    %p171 = por %p169, %p170
    %s172 = ssub.s32 %s13, %s20
    %p173 = scmp.eq.s32.totalorder %s172, 0
    %s175 = sadd.s32 %s174, 1
    %s176 = scalar_select %p173, %s174, %s175
    %p179 = pneg %p173
    %p180 = scmp.eq.s32.totalorder %s13, 3
    %p181 = por %p179, %p180
    %p182 = scmp.ne.s32.totalorder %s174, %s177
    %p183 = scmp.eq.s32.totalorder %s13, 0
    %p184 = por %p182, %p183
    %p185 = scmp.ne.s32.totalorder %s174, %s177
    %p186 = scmp.eq.s32.totalorder %s18, 3
    %p187 = por %p185, %p186
    %p188 = scmp.ne.s32.totalorder %s177, %s178
    %p189 = scmp.eq.s32.totalorder %s18, 0
    %p190 = por %p188, %p189
    %p191 = scmp.ne.s32.totalorder %s177, %s178
    %p192 = scmp.eq.s32.totalorder %s19, 3
    %p193 = por %p191, %p192
    %p195 = scmp.ne.s32.totalorder %s178, %s194
    %p196 = scmp.eq.s32.totalorder %s19, 0
    %p197 = por %p195, %p196
    %p198 = scmp.le.s32.totalorder 1, %s13
    %p199 = scmp.lt.s32.totalorder %s13, 5
    %p200 = pnand %p198, %p199
    %p201 = pneg %p200
    // Predicated region
    $region9: #{_lambda_.22} parent=5 // pred_check
      _
    $region10: #{_lambda_.22} parent=5 // pred_check_branch
      %203 = sbr.rel (%p200) target = $region12
    $region11: #{_lambda_.22} parent=5 // pred_region
      %s204 = ssub.s32 %s13, 1
      // Predicated region
      $region13: #{_lambda_.22} parent=11 // pred_check
        %p205 = pneg %p34
      $region14: #{_lambda_.22} parent=11 // pred_check_branch
        %207 = sbr.rel (%p205) target = $region16
      $region15: #{_lambda_.22} parent=11 // pred_region
        _
      $region16: #{_lambda_.22} parent=11 // pred_fallthru
        _
    $region12: #{_lambda_.22} parent=5 // pred_fallthru
      _
    %p208 = scmp.lt.s32.totalorder %s13, 4
    // Predicated region
    $region17: #{_lambda_.22} parent=5 // pred_check
      %p209 = pneg %p208
    $region18: #{_lambda_.22} parent=5 // pred_check_branch
      %211 = sbr.rel (%p209) target = $region20
    $region19: #{_lambda_.22} parent=5 // pred_region
      // Predicated region
      $region21: #{_lambda_.22} parent=19 // pred_check
        %p212 = pneg %p54
      $region22: #{_lambda_.22} parent=19 // pred_check_branch
        %214 = sbr.rel (%p212) target = $region24
      $region23: #{_lambda_.22} parent=19 // pred_region
        %p215 = scmp.lt.s32.totalorder %s13, 3
        %s216 = scalar_select %p215, %s13, 3
        %s217 = smul.addr %s216, 8
        %s218 = smul.addr %s217, 8
        %s219 = scalar_lea.vmem %s1, %s218
      $region24: #{_lambda_.22} parent=19 // pred_fallthru
        _
      // Predicated region
      $region25: #{_lambda_.22} parent=19 // pred_check
        %p220 = pneg %p80
      $region26: #{_lambda_.22} parent=19 // pred_check_branch
        %222 = sbr.rel (%p220) target = $region28
      $region27: #{_lambda_.22} parent=19 // pred_region
        %p223 = scmp.lt.s32.totalorder %s13, 3
        %s224 = scalar_select %p223, %s13, 3
        %s225 = smul.addr %s224, 8
        %s226 = scalar_lea.vmem %s2, %s225
      $region28: #{_lambda_.22} parent=19 // pred_fallthru
        _
      // Predicated region
      $region29: #{_lambda_.22} parent=19 // pred_check
        %p227 = pneg %p106
      $region30: #{_lambda_.22} parent=19 // pred_check_branch
        %229 = sbr.rel (%p227) target = $region32
      $region31: #{_lambda_.22} parent=19 // pred_region
        %p230 = scmp.lt.s32.totalorder %s13, 3
        %s231 = scalar_select %p230, %s13, 3
        %s232 = smul.addr %s231, 128
        %s233 = smul.addr %s232, 8
        %s234 = scalar_lea.vmem %s3, %s233
      $region32: #{_lambda_.22} parent=19 // pred_fallthru
        _
      // Predicated region
      $region33: #{_lambda_.22} parent=19 // pred_check
        %p235 = pneg %p132
      $region34: #{_lambda_.22} parent=19 // pred_check_branch
        %237 = sbr.rel (%p235) target = $region36
      $region35: #{_lambda_.22} parent=19 // pred_region
        %p238 = scmp.lt.s32.totalorder %s13, 3
        %s239 = scalar_select %p238, %s13, 3
        %s240 = scalar_lea.vmem %s4, %s239
      $region36: #{_lambda_.22} parent=19 // pred_fallthru
        _
    $region20: #{_lambda_.22} parent=5 // pred_fallthru
      _
    %p241 = scmp.le.s32.totalorder 1, %s13
    %p242 = scmp.lt.s32.totalorder %s13, 5
    %p243 = pnand %p241, %p242
    %p244 = pneg %p243
    // Predicated region
    $region37: #{_lambda_.22} parent=5 // pred_check
      _
    $region38: #{_lambda_.22} parent=5 // pred_check_branch
      %246 = sbr.rel (%p243) target = $region40
    $region39: #{_lambda_.22} parent=5 // pred_region
      %s247 = ssub.s32 %s13, 1
      %p248 = pneg %p34
      %p249 = pneg %p31
      %p250 = scmp.lt.s32.totalorder %s18, 3
      %s251 = scalar_select %p250, %s18, 3
      %s252 = smul.addr %s251, 8
      %s253 = smul.addr %s252, 8
      %s254 = scalar_lea.vmem %s1, %s253
      %p255 = pneg %p60
      %p256 = pneg %p57
      %p257 = scmp.lt.s32.totalorder %s18, 3
      %s258 = scalar_select %p257, %s18, 3
      %s259 = smul.addr %s258, 8
      %s260 = scalar_lea.vmem %s2, %s259
      %p261 = pneg %p86
      %p262 = pneg %p83
      %p263 = scmp.lt.s32.totalorder %s18, 3
      %s264 = scalar_select %p263, %s18, 3
      %s265 = smul.addr %s264, 128
      %s266 = smul.addr %s265, 8
      %s267 = scalar_lea.vmem %s3, %s266
      %p268 = pneg %p112
      %p269 = pneg %p109
      %p270 = scmp.lt.s32.totalorder %s18, 3
      %s271 = scalar_select %p270, %s18, 3
      %s272 = scalar_lea.vmem %s4, %s271
      %p273 = pneg %p138
      %p274 = pneg %p135
      %p275 = pneg %p164
      %p276 = pneg %p161
      %p277 = scmp.lt.s32.totalorder %s18, 3
      %s278 = scalar_select %p277, %s18, 3
      %s279 = smul.addr %s278, 2
      %s280 = scalar_lea.vmem %s5, %s279
      %p281 = pneg %p190
      %p282 = pneg %p187
      %p283 = scmp.lt.s32.totalorder %s18, 3
      %s284 = scalar_select %p283, %s18, 3
      %s285 = scalar_lea.vmem %s6, %s284
      %p286 = scmp.lt.s32.totalorder %s18, 3
      %s287 = scalar_select %p286, %s18, 3
      %s288 = smul.addr %s287, 8
      %s289 = smul.addr %s288, 8
      %s290 = scalar_lea.vmem %s1, %s289
      %p291 = scmp.lt.s32.totalorder %s18, 3
      %s292 = scalar_select %p291, %s18, 3
      %s293 = smul.addr %s292, 8
      %s294 = scalar_lea.vmem %s2, %s293
      %p295 = scmp.lt.s32.totalorder %s18, 3
      %s296 = scalar_select %p295, %s18, 3
      %s297 = smul.addr %s296, 128
      %s298 = smul.addr %s297, 8
      %s299 = scalar_lea.vmem %s3, %s298
      %p300 = scmp.lt.s32.totalorder %s18, 3
      %s301 = scalar_select %p300, %s18, 3
      %s302 = scalar_lea.vmem %s4, %s301
      %p303 = scmp.lt.s32.totalorder %s18, 3
      %s304 = scalar_select %p303, %s18, 3
      %s305 = smul.addr %s304, 2
      %s306 = scalar_lea.vmem %s5, %s305
      %p307 = scmp.lt.s32.totalorder %s18, 3
      %s308 = scalar_select %p307, %s18, 3
      %s309 = scalar_lea.vmem %s6, %s308
      %v310 = vld [vmem:[%s0] sm:$0x3]
      %v311 = vld [vmem:[%s290] sm:$0xff]
      %v312 = vld [vmem:[%s290 + $0x8] sm:$0xff]
      %v313 = vld [vmem:[%s290 + $0x10] sm:$0xff]
      %v314 = vld [vmem:[%s290 + $0x18] sm:$0xff]
      %v315 = vld [vmem:[%s290 + $0x20] sm:$0xff]
      %v316 = vld [vmem:[%s290 + $0x28] sm:$0xff]
      %v317 = vld [vmem:[%s290 + $0x30] sm:$0xff]
      %v318 = vld [vmem:[%s290 + $0x38] sm:$0xff]
      %v319 = vld [vmem:[%s294] sm:$0xff]
      %v321 = vlaneseq
      %v322 = vshrl.u32 %v321, 7
      %v323 = vsub.s32 0, %v322
      %v324 = vrot.slane %v319, %v323
      %v325 = vlaneseq
      %v326 = vshrl.u32 %v325, 7
      %v327 = vsub.s32 1, %v326
      %v328 = vrot.slane %v319, %v327
      %v329 = vlaneseq
      %v330 = vshrl.u32 %v329, 7
      %v331 = vsub.s32 2, %v330
      %v332 = vrot.slane %v319, %v331
      %v333 = vlaneseq
      %v334 = vshrl.u32 %v333, 7
      %v335 = vsub.s32 3, %v334
      %v336 = vrot.slane %v319, %v335
      %v337 = vlaneseq
      %v338 = vshrl.u32 %v337, 7
      %v339 = vsub.s32 4, %v338
      %v340 = vrot.slane %v319, %v339
      %v341 = vlaneseq
      %v342 = vshrl.u32 %v341, 7
      %v343 = vsub.s32 5, %v342
      %v344 = vrot.slane %v319, %v343
      %v345 = vlaneseq
      %v346 = vshrl.u32 %v345, 7
      %v347 = vsub.s32 6, %v346
      %v348 = vrot.slane %v319, %v347
      %v349 = vlaneseq
      %v350 = vshrl.u32 %v349, 7
      %v351 = vsub.s32 7, %v350
      %v352 = vrot.slane %v319, %v351
      %vm361 = vcmask 64512
      %v363 = vsel %vm361, %v310, 0
      %365 = vmatprep.subr.mxu0 %v312
      %366 = vmatpush1.msra.mxu0 %v311
      %367 = vmatprep.subr.mxu0 0.0
      %368 = vmatpush1.msra.mxu0 0.0
      %369 = vmatprep.subr.mxu0 0.0
      %370 = vmatpush1.msra.mxu0 0.0
      %371 = vmatprep.subr.mxu0 0.0
      %372 = vmatpush1.msra.mxu0 0.0
      %373 = vmatprep.subr.mxu0 0.0
      %374 = vmatpush1.msra.mxu0 0.0
      %375 = vmatprep.subr.mxu0 0.0
      %376 = vmatpush1.msra.mxu0 0.0
      %377 = vmatprep.subr.mxu0 0.0
      %378 = vmatpush1.msra.mxu0 0.0
      %379 = vmatprep.subr.mxu0 0.0
      %380 = vmatpush1.msra.mxu0 0.0
      %381 = vmatprep.subr.mxu0 0.0
      %382 = vmatpush1.msra.mxu0 0.0
      %383 = vmatprep.subr.mxu0 0.0
      %384 = vmatpush1.msra.mxu0 0.0
      %385 = vmatprep.subr.mxu0 0.0
      %386 = vmatpush1.msra.mxu0 0.0
      %387 = vmatprep.subr.mxu0 0.0
      %388 = vmatpush1.msra.mxu0 0.0
      %389 = vmatprep.subr.mxu0 0.0
      %390 = vmatpush1.msra.mxu0 0.0
      %391 = vmatprep.subr.mxu0 0.0
      %392 = vmatpush1.msra.mxu0 0.0
      %393 = vmatprep.subr.mxu0 0.0
      %394 = vmatpush1.msra.mxu0 0.0
      %395 = vmatprep.subr.mxu0 0.0
      %396 = vmatpush1.msra.mxu0 0.0
      %397 = vmatprep.subr.mxu0 0.0
      %398 = vmatpush1.msra.mxu0 0.0
      %399 = vmatprep.subr.mxu0 0.0
      %400 = vmatpush1.msra.mxu0 0.0
      %401 = vmatprep.subr.mxu0 0.0
      %402 = vmatpush1.msra.mxu0 0.0
      %403 = vmatprep.subr.mxu0 0.0
      %404 = vmatpush1.msra.mxu0 0.0
      %405 = vmatprep.subr.mxu0 0.0
      %406 = vmatpush1.msra.mxu0 0.0
      %407 = vmatprep.subr.mxu0 0.0
      %408 = vmatpush1.msra.mxu0 0.0
      %409 = vmatprep.subr.mxu0 0.0
      %410 = vmatpush1.msra.mxu0 0.0
      %411 = vmatprep.subr.mxu0 0.0
      %412 = vmatpush1.msra.mxu0 0.0
      %413 = vmatprep.subr.mxu0 0.0
      %414 = vmatpush1.msra.mxu0 0.0
      %415 = vmatprep.subr.mxu0 0.0
      %416 = vmatpush1.msra.mxu0 0.0
      %417 = vmatprep.subr.mxu0 0.0
      %418 = vmatpush1.msra.mxu0 0.0
      %419 = vmatprep.subr.mxu0 0.0
      %420 = vmatpush1.msra.mxu0 0.0
      %421 = vmatprep.subr.mxu0 0.0
      %422 = vmatpush1.msra.mxu0 0.0
      %423 = vmatprep.subr.mxu0 0.0
      %424 = vmatpush1.msra.mxu0 0.0
      %425 = vmatprep.subr.mxu0 0.0
      %426 = vmatpush1.msra.mxu0 0.0
      %427 = vmatprep.subr.mxu0 0.0
      %428 = vmatpush1.msra.mxu0 0.0
      %429 = vmatprep.mubr.f32.mxu0 0.0
      %430 = vmatmul.mubr.f32.gmra.mrb[0].mxu0 %v363
      %v431 = vpop.f32.mrb[0].mxu0
      %v432 = vadd.f32 %v324, %v431
      %v433 = vpop.f32.mrb[0].mxu0
      %v434 = vadd.f32 %v328, %v433
      %435 = vdwg.mxu0
      %436 = vmatprep.subr.mxu0 %v314
      %437 = vmatpush1.msra.mxu0 %v313
      %438 = vmatprep.subr.mxu0 0.0
      %439 = vmatpush1.msra.mxu0 0.0
      %440 = vmatprep.subr.mxu0 0.0
      %441 = vmatpush1.msra.mxu0 0.0
      %442 = vmatprep.subr.mxu0 0.0
      %443 = vmatpush1.msra.mxu0 0.0
      %444 = vmatprep.subr.mxu0 0.0
      %445 = vmatpush1.msra.mxu0 0.0
      %446 = vmatprep.subr.mxu0 0.0
      %447 = vmatpush1.msra.mxu0 0.0
      %448 = vmatprep.subr.mxu0 0.0
      %449 = vmatpush1.msra.mxu0 0.0
      %450 = vmatprep.subr.mxu0 0.0
      %451 = vmatpush1.msra.mxu0 0.0
      %452 = vmatprep.subr.mxu0 0.0
      %453 = vmatpush1.msra.mxu0 0.0
      %454 = vmatprep.subr.mxu0 0.0
      %455 = vmatpush1.msra.mxu0 0.0
      %456 = vmatprep.subr.mxu0 0.0
      %457 = vmatpush1.msra.mxu0 0.0
      %458 = vmatprep.subr.mxu0 0.0
      %459 = vmatpush1.msra.mxu0 0.0
      %460 = vmatprep.subr.mxu0 0.0
      %461 = vmatpush1.msra.mxu0 0.0
      %462 = vmatprep.subr.mxu0 0.0
      %463 = vmatpush1.msra.mxu0 0.0
      %464 = vmatprep.subr.mxu0 0.0
      %465 = vmatpush1.msra.mxu0 0.0
      %466 = vmatprep.subr.mxu0 0.0
      %467 = vmatpush1.msra.mxu0 0.0
      %468 = vmatprep.subr.mxu0 0.0
      %469 = vmatpush1.msra.mxu0 0.0
      %470 = vmatprep.subr.mxu0 0.0
      %471 = vmatpush1.msra.mxu0 0.0
      %472 = vmatprep.subr.mxu0 0.0
      %473 = vmatpush1.msra.mxu0 0.0
      %474 = vmatprep.subr.mxu0 0.0
      %475 = vmatpush1.msra.mxu0 0.0
      %476 = vmatprep.subr.mxu0 0.0
      %477 = vmatpush1.msra.mxu0 0.0
      %478 = vmatprep.subr.mxu0 0.0
      %479 = vmatpush1.msra.mxu0 0.0
      %480 = vmatprep.subr.mxu0 0.0
      %481 = vmatpush1.msra.mxu0 0.0
      %482 = vmatprep.subr.mxu0 0.0
      %483 = vmatpush1.msra.mxu0 0.0
      %484 = vmatprep.subr.mxu0 0.0
      %485 = vmatpush1.msra.mxu0 0.0
      %486 = vmatprep.subr.mxu0 0.0
      %487 = vmatpush1.msra.mxu0 0.0
      %488 = vmatprep.subr.mxu0 0.0
      %489 = vmatpush1.msra.mxu0 0.0
      %490 = vmatprep.subr.mxu0 0.0
      %491 = vmatpush1.msra.mxu0 0.0
      %492 = vmatprep.subr.mxu0 0.0
      %493 = vmatpush1.msra.mxu0 0.0
      %494 = vmatprep.subr.mxu0 0.0
      %495 = vmatpush1.msra.mxu0 0.0
      %496 = vmatprep.subr.mxu0 0.0
      %497 = vmatpush1.msra.mxu0 0.0
      %498 = vmatprep.subr.mxu0 0.0
      %499 = vmatpush1.msra.mxu0 0.0
      %500 = vmatprep.mubr.f32.mxu0 0.0
      %501 = vmatmul.mubr.f32.gmra.mrb[0].mxu0 %v363
      %v502 = vpop.f32.mrb[0].mxu0
      %v503 = vadd.f32 %v332, %v502
      %v504 = vpop.f32.mrb[0].mxu0
      %v505 = vadd.f32 %v336, %v504
      %506 = vdwg.mxu0
      %507 = vmatprep.subr.mxu0 %v316
      %508 = vmatpush1.msra.mxu0 %v315
      %509 = vmatprep.subr.mxu0 0.0
      %510 = vmatpush1.msra.mxu0 0.0
      %511 = vmatprep.subr.mxu0 0.0
      %512 = vmatpush1.msra.mxu0 0.0
      %513 = vmatprep.subr.mxu0 0.0
      %514 = vmatpush1.msra.mxu0 0.0
      %515 = vmatprep.subr.mxu0 0.0
      %516 = vmatpush1.msra.mxu0 0.0
      %517 = vmatprep.subr.mxu0 0.0
      %518 = vmatpush1.msra.mxu0 0.0
      %519 = vmatprep.subr.mxu0 0.0
      %520 = vmatpush1.msra.mxu0 0.0
      %521 = vmatprep.subr.mxu0 0.0
      %522 = vmatpush1.msra.mxu0 0.0
      %523 = vmatprep.subr.mxu0 0.0
      %524 = vmatpush1.msra.mxu0 0.0
      %525 = vmatprep.subr.mxu0 0.0
      %526 = vmatpush1.msra.mxu0 0.0
      %527 = vmatprep.subr.mxu0 0.0
      %528 = vmatpush1.msra.mxu0 0.0
      %529 = vmatprep.subr.mxu0 0.0
      %530 = vmatpush1.msra.mxu0 0.0
      %531 = vmatprep.subr.mxu0 0.0
      %532 = vmatpush1.msra.mxu0 0.0
      %533 = vmatprep.subr.mxu0 0.0
      %534 = vmatpush1.msra.mxu0 0.0
      %535 = vmatprep.subr.mxu0 0.0
      %536 = vmatpush1.msra.mxu0 0.0
      %537 = vmatprep.subr.mxu0 0.0
      %538 = vmatpush1.msra.mxu0 0.0
      %539 = vmatprep.subr.mxu0 0.0
      %540 = vmatpush1.msra.mxu0 0.0
      %541 = vmatprep.subr.mxu0 0.0
      %542 = vmatpush1.msra.mxu0 0.0
      %543 = vmatprep.subr.mxu0 0.0
      %544 = vmatpush1.msra.mxu0 0.0
      %545 = vmatprep.subr.mxu0 0.0
      %546 = vmatpush1.msra.mxu0 0.0
      %547 = vmatprep.subr.mxu0 0.0
      %548 = vmatpush1.msra.mxu0 0.0
      %549 = vmatprep.subr.mxu0 0.0
      %550 = vmatpush1.msra.mxu0 0.0
      %551 = vmatprep.subr.mxu0 0.0
      %552 = vmatpush1.msra.mxu0 0.0
      %553 = vmatprep.subr.mxu0 0.0
      %554 = vmatpush1.msra.mxu0 0.0
      %555 = vmatprep.subr.mxu0 0.0
      %556 = vmatpush1.msra.mxu0 0.0
      %557 = vmatprep.subr.mxu0 0.0
      %558 = vmatpush1.msra.mxu0 0.0
      %559 = vmatprep.subr.mxu0 0.0
      %560 = vmatpush1.msra.mxu0 0.0
      %561 = vmatprep.subr.mxu0 0.0
      %562 = vmatpush1.msra.mxu0 0.0
      %563 = vmatprep.subr.mxu0 0.0
      %564 = vmatpush1.msra.mxu0 0.0
      %565 = vmatprep.subr.mxu0 0.0
      %566 = vmatpush1.msra.mxu0 0.0
      %567 = vmatprep.subr.mxu0 0.0
      %568 = vmatpush1.msra.mxu0 0.0
      %569 = vmatprep.subr.mxu0 0.0
      %570 = vmatpush1.msra.mxu0 0.0
      %571 = vmatprep.mubr.f32.mxu0 0.0
      %572 = vmatmul.mubr.f32.gmra.mrb[0].mxu0 %v363
      %v573 = vpop.f32.mrb[0].mxu0
      %v574 = vadd.f32 %v340, %v573
      %v575 = vpop.f32.mrb[0].mxu0
      %v576 = vadd.f32 %v344, %v575
      %577 = vdwg.mxu0
      %578 = vmatprep.subr.mxu0 %v318
      %579 = vmatpush1.msra.mxu0 %v317
      %580 = vmatprep.subr.mxu0 0.0
      %581 = vmatpush1.msra.mxu0 0.0
      %582 = vmatprep.subr.mxu0 0.0
      %583 = vmatpush1.msra.mxu0 0.0
      %584 = vmatprep.subr.mxu0 0.0
      %585 = vmatpush1.msra.mxu0 0.0
      %586 = vmatprep.subr.mxu0 0.0
      %587 = vmatpush1.msra.mxu0 0.0
      %588 = vmatprep.subr.mxu0 0.0
      %589 = vmatpush1.msra.mxu0 0.0
      %590 = vmatprep.subr.mxu0 0.0
      %591 = vmatpush1.msra.mxu0 0.0
      %592 = vmatprep.subr.mxu0 0.0
      %593 = vmatpush1.msra.mxu0 0.0
      %594 = vmatprep.subr.mxu0 0.0
      %595 = vmatpush1.msra.mxu0 0.0
      %596 = vmatprep.subr.mxu0 0.0
      %597 = vmatpush1.msra.mxu0 0.0
      %598 = vmatprep.subr.mxu0 0.0
      %599 = vmatpush1.msra.mxu0 0.0
      %600 = vmatprep.subr.mxu0 0.0
      %601 = vmatpush1.msra.mxu0 0.0
      %602 = vmatprep.subr.mxu0 0.0
      %603 = vmatpush1.msra.mxu0 0.0
      %604 = vmatprep.subr.mxu0 0.0
      %605 = vmatpush1.msra.mxu0 0.0
      %606 = vmatprep.subr.mxu0 0.0
      %607 = vmatpush1.msra.mxu0 0.0
      %608 = vmatprep.subr.mxu0 0.0
      %609 = vmatpush1.msra.mxu0 0.0
      %610 = vmatprep.subr.mxu0 0.0
      %611 = vmatpush1.msra.mxu0 0.0
      %612 = vmatprep.subr.mxu0 0.0
      %613 = vmatpush1.msra.mxu0 0.0
      %614 = vmatprep.subr.mxu0 0.0
      %615 = vmatpush1.msra.mxu0 0.0
      %616 = vmatprep.subr.mxu0 0.0
      %617 = vmatpush1.msra.mxu0 0.0
      %618 = vmatprep.subr.mxu0 0.0
      %619 = vmatpush1.msra.mxu0 0.0
      %620 = vmatprep.subr.mxu0 0.0
      %621 = vmatpush1.msra.mxu0 0.0
      %622 = vmatprep.subr.mxu0 0.0
      %623 = vmatpush1.msra.mxu0 0.0
      %624 = vmatprep.subr.mxu0 0.0
      %625 = vmatpush1.msra.mxu0 0.0
      %626 = vmatprep.subr.mxu0 0.0
      %627 = vmatpush1.msra.mxu0 0.0
      %628 = vmatprep.subr.mxu0 0.0
      %629 = vmatpush1.msra.mxu0 0.0
      %630 = vmatprep.subr.mxu0 0.0
      %631 = vmatpush1.msra.mxu0 0.0
      %632 = vmatprep.subr.mxu0 0.0
      %633 = vmatpush1.msra.mxu0 0.0
      %634 = vmatprep.subr.mxu0 0.0
      %635 = vmatpush1.msra.mxu0 0.0
      %636 = vmatprep.subr.mxu0 0.0
      %637 = vmatpush1.msra.mxu0 0.0
      %638 = vmatprep.subr.mxu0 0.0
      %639 = vmatpush1.msra.mxu0 0.0
      %640 = vmatprep.subr.mxu0 0.0
      %641 = vmatpush1.msra.mxu0 0.0
      %642 = vmatprep.mubr.f32.mxu0 0.0
      %643 = vmatmul.mubr.f32.gmra.mrb[0].mxu0 %v363
      %v644 = vpop.f32.mrb[0].mxu0
      %v645 = vadd.f32 %v348, %v644
      %v646 = vpop.f32.mrb[0].mxu0
      %v647 = vadd.f32 %v352, %v646
      %648 = vdwg.mxu0
      %v649 = vmax.f32 %v432, 0.0
      %v650 = vmax.f32 %v434, 0.0
      %v651 = vmax.f32 %v503, 0.0
      %v652 = vmax.f32 %v505, 0.0
      %v653 = vmax.f32 %v574, 0.0
      %v654 = vmax.f32 %v576, 0.0
      %v655 = vmax.f32 %v645, 0.0
      %v656 = vmax.f32 %v647, 0.0
      %v657 = vld [vmem:[%s299] sm:$0xff]
      %v658 = vld [vmem:[%s299 + $0x8] sm:$0xff]
      %v659 = vld [vmem:[%s299 + $0x10] sm:$0xff]
      %v660 = vld [vmem:[%s299 + $0x18] sm:$0xff]
      %v661 = vld [vmem:[%s299 + $0x20] sm:$0xff]
      %v662 = vld [vmem:[%s299 + $0x28] sm:$0xff]
      %v663 = vld [vmem:[%s299 + $0x30] sm:$0xff]
      %v664 = vld [vmem:[%s299 + $0x38] sm:$0xff]
      %v665 = vld [vmem:[%s299 + $0x40] sm:$0xff]
      %v666 = vld [vmem:[%s299 + $0x48] sm:$0xff]
      %v667 = vld [vmem:[%s299 + $0x50] sm:$0xff]
      %v668 = vld [vmem:[%s299 + $0x58] sm:$0xff]
      %v669 = vld [vmem:[%s299 + $0x60] sm:$0xff]
      %v670 = vld [vmem:[%s299 + $0x68] sm:$0xff]
      %v671 = vld [vmem:[%s299 + $0x70] sm:$0xff]
      %v672 = vld [vmem:[%s299 + $0x78] sm:$0xff]
      %v673 = vld [vmem:[%s299 + $0x80] sm:$0xff]
      %v674 = vld [vmem:[%s299 + $0x88] sm:$0xff]
      %v675 = vld [vmem:[%s299 + $0x90] sm:$0xff]
      %v676 = vld [vmem:[%s299 + $0x98] sm:$0xff]
      %v677 = vld [vmem:[%s299 + $0xa0] sm:$0xff]
      %v678 = vld [vmem:[%s299 + $0xa8] sm:$0xff]
      %v679 = vld [vmem:[%s299 + $0xb0] sm:$0xff]
      %v680 = vld [vmem:[%s299 + $0xb8] sm:$0xff]
      %v681 = vld [vmem:[%s299 + $0xc0] sm:$0xff]
      %v682 = vld [vmem:[%s299 + $0xc8] sm:$0xff]
      %v683 = vld [vmem:[%s299 + $0xd0] sm:$0xff]
      %v684 = vld [vmem:[%s299 + $0xd8] sm:$0xff]
      %v685 = vld [vmem:[%s299 + $0xe0] sm:$0xff]
      %v686 = vld [vmem:[%s299 + $0xe8] sm:$0xff]
      %v687 = vld [vmem:[%s299 + $0xf0] sm:$0xff]
      %v688 = vld [vmem:[%s299 + $0xf8] sm:$0xff]
      %v689 = vld [vmem:[%s299 + $0x100] sm:$0xff]
      %v690 = vld [vmem:[%s299 + $0x108] sm:$0xff]
      %v691 = vld [vmem:[%s299 + $0x110] sm:$0xff]
      %v692 = vld [vmem:[%s299 + $0x118] sm:$0xff]
      %v693 = vld [vmem:[%s299 + $0x120] sm:$0xff]
      %v694 = vld [vmem:[%s299 + $0x128] sm:$0xff]
      %v695 = vld [vmem:[%s299 + $0x130] sm:$0xff]
      %v696 = vld [vmem:[%s299 + $0x138] sm:$0xff]
      %v697 = vld [vmem:[%s299 + $0x140] sm:$0xff]
      %v698 = vld [vmem:[%s299 + $0x148] sm:$0xff]
      %v699 = vld [vmem:[%s299 + $0x150] sm:$0xff]
      %v700 = vld [vmem:[%s299 + $0x158] sm:$0xff]
      %v701 = vld [vmem:[%s299 + $0x160] sm:$0xff]
      %v702 = vld [vmem:[%s299 + $0x168] sm:$0xff]
      %v703 = vld [vmem:[%s299 + $0x170] sm:$0xff]
      %v704 = vld [vmem:[%s299 + $0x178] sm:$0xff]
      %v705 = vld [vmem:[%s299 + $0x180] sm:$0xff]
      %v706 = vld [vmem:[%s299 + $0x188] sm:$0xff]
      %v707 = vld [vmem:[%s299 + $0x190] sm:$0xff]
      %v708 = vld [vmem:[%s299 + $0x198] sm:$0xff]
      %v709 = vld [vmem:[%s299 + $0x1a0] sm:$0xff]
      %v710 = vld [vmem:[%s299 + $0x1a8] sm:$0xff]
      %v711 = vld [vmem:[%s299 + $0x1b0] sm:$0xff]
      %v712 = vld [vmem:[%s299 + $0x1b8] sm:$0xff]
      %v713 = vld [vmem:[%s299 + $0x1c0] sm:$0xff]
      %v714 = vld [vmem:[%s299 + $0x1c8] sm:$0xff]
      %v715 = vld [vmem:[%s299 + $0x1d0] sm:$0xff]
      %v716 = vld [vmem:[%s299 + $0x1d8] sm:$0xff]
      %v717 = vld [vmem:[%s299 + $0x1e0] sm:$0xff]
      %v718 = vld [vmem:[%s299 + $0x1e8] sm:$0xff]
      %v719 = vld [vmem:[%s299 + $0x1f0] sm:$0xff]
      %v720 = vld [vmem:[%s299 + $0x1f8] sm:$0xff]
      %v721 = vld [vmem:[%s299 + $0x200] sm:$0xff]
      %v722 = vld [vmem:[%s299 + $0x208] sm:$0xff]
      %v723 = vld [vmem:[%s299 + $0x210] sm:$0xff]
      %v724 = vld [vmem:[%s299 + $0x218] sm:$0xff]
      %v725 = vld [vmem:[%s299 + $0x220] sm:$0xff]
      %v726 = vld [vmem:[%s299 + $0x228] sm:$0xff]
      %v727 = vld [vmem:[%s299 + $0x230] sm:$0xff]
      %v728 = vld [vmem:[%s299 + $0x238] sm:$0xff]
      %v729 = vld [vmem:[%s299 + $0x240] sm:$0xff]
      %v730 = vld [vmem:[%s299 + $0x248] sm:$0xff]
      %v731 = vld [vmem:[%s299 + $0x250] sm:$0xff]
      %v732 = vld [vmem:[%s299 + $0x258] sm:$0xff]
      %v733 = vld [vmem:[%s299 + $0x260] sm:$0xff]
      %v734 = vld [vmem:[%s299 + $0x268] sm:$0xff]
      %v735 = vld [vmem:[%s299 + $0x270] sm:$0xff]
      %v736 = vld [vmem:[%s299 + $0x278] sm:$0xff]
      %v737 = vld [vmem:[%s299 + $0x280] sm:$0xff]
      %v738 = vld [vmem:[%s299 + $0x288] sm:$0xff]
      %v739 = vld [vmem:[%s299 + $0x290] sm:$0xff]
      %v740 = vld [vmem:[%s299 + $0x298] sm:$0xff]
      %v741 = vld [vmem:[%s299 + $0x2a0] sm:$0xff]
      %v742 = vld [vmem:[%s299 + $0x2a8] sm:$0xff]
      %v743 = vld [vmem:[%s299 + $0x2b0] sm:$0xff]
      %v744 = vld [vmem:[%s299 + $0x2b8] sm:$0xff]
      %v745 = vld [vmem:[%s299 + $0x2c0] sm:$0xff]
      %v746 = vld [vmem:[%s299 + $0x2c8] sm:$0xff]
      %v747 = vld [vmem:[%s299 + $0x2d0] sm:$0xff]
      %v748 = vld [vmem:[%s299 + $0x2d8] sm:$0xff]
      %v749 = vld [vmem:[%s299 + $0x2e0] sm:$0xff]
      %v750 = vld [vmem:[%s299 + $0x2e8] sm:$0xff]
      %v751 = vld [vmem:[%s299 + $0x2f0] sm:$0xff]
      %v752 = vld [vmem:[%s299 + $0x2f8] sm:$0xff]
      %v753 = vld [vmem:[%s299 + $0x300] sm:$0xff]
      %v754 = vld [vmem:[%s299 + $0x308] sm:$0xff]
      %v755 = vld [vmem:[%s299 + $0x310] sm:$0xff]
      %v756 = vld [vmem:[%s299 + $0x318] sm:$0xff]
      %v757 = vld [vmem:[%s299 + $0x320] sm:$0xff]
      %v758 = vld [vmem:[%s299 + $0x328] sm:$0xff]
      %v759 = vld [vmem:[%s299 + $0x330] sm:$0xff]
      %v760 = vld [vmem:[%s299 + $0x338] sm:$0xff]
      %v761 = vld [vmem:[%s299 + $0x340] sm:$0xff]
      %v762 = vld [vmem:[%s299 + $0x348] sm:$0xff]
      %v763 = vld [vmem:[%s299 + $0x350] sm:$0xff]
      %v764 = vld [vmem:[%s299 + $0x358] sm:$0xff]
      %v765 = vld [vmem:[%s299 + $0x360] sm:$0xff]
      %v766 = vld [vmem:[%s299 + $0x368] sm:$0xff]
      %v767 = vld [vmem:[%s299 + $0x370] sm:$0xff]
      %v768 = vld [vmem:[%s299 + $0x378] sm:$0xff]
      %v769 = vld [vmem:[%s299 + $0x380] sm:$0xff]
      %v770 = vld [vmem:[%s299 + $0x388] sm:$0xff]
      %v771 = vld [vmem:[%s299 + $0x390] sm:$0xff]
      %v772 = vld [vmem:[%s299 + $0x398] sm:$0xff]
      %v773 = vld [vmem:[%s299 + $0x3a0] sm:$0xff]
      %v774 = vld [vmem:[%s299 + $0x3a8] sm:$0xff]
      %v775 = vld [vmem:[%s299 + $0x3b0] sm:$0xff]
      %v776 = vld [vmem:[%s299 + $0x3b8] sm:$0xff]
      %v777 = vld [vmem:[%s299 + $0x3c0] sm:$0xff]
      %v778 = vld [vmem:[%s299 + $0x3c8] sm:$0xff]
      %v779 = vld [vmem:[%s299 + $0x3d0] sm:$0xff]
      %v780 = vld [vmem:[%s299 + $0x3d8] sm:$0xff]
      %v781 = vld [vmem:[%s299 + $0x3e0] sm:$0xff]
      %v782 = vld [vmem:[%s299 + $0x3e8] sm:$0xff]
      %v783 = vld [vmem:[%s299 + $0x3f0] sm:$0xff]
      %v784 = vld [vmem:[%s299 + $0x3f8] sm:$0xff]
      %v785 = vld [vmem:[%s302] sm:$0x1]
      %v787 = vlaneseq
      %v788 = vshrl.u32 %v787, 7
      %v789 = vsub.s32 0, %v788
      %v790 = vrot.slane %v785, %v789
      %792 = vmatprep.subr.mxu0 0.0
      %793 = vmatpush1.msra.mxu0 %v657
      %794 = vmatprep.subr.mxu0 0.0
      %795 = vmatpush1.msra.mxu0 %v658
      %796 = vmatprep.subr.mxu0 0.0
      %797 = vmatpush1.msra.mxu0 %v659
      %798 = vmatprep.subr.mxu0 0.0
      %799 = vmatpush1.msra.mxu0 %v660
      %800 = vmatprep.subr.mxu0 0.0
      %801 = vmatpush1.msra.mxu0 %v661
      %802 = vmatprep.subr.mxu0 0.0
      %803 = vmatpush1.msra.mxu0 %v662
      %804 = vmatprep.subr.mxu0 0.0
      %805 = vmatpush1.msra.mxu0 %v663
      %806 = vmatprep.subr.mxu0 0.0
      %807 = vmatpush1.msra.mxu0 %v664
      %808 = vmatprep.subr.mxu0 0.0
      %809 = vmatpush1.msra.mxu0 %v665
      %810 = vmatprep.subr.mxu0 0.0
      %811 = vmatpush1.msra.mxu0 %v666
      %812 = vmatprep.subr.mxu0 0.0
      %813 = vmatpush1.msra.mxu0 %v667
      %814 = vmatprep.subr.mxu0 0.0
      %815 = vmatpush1.msra.mxu0 %v668
      %816 = vmatprep.subr.mxu0 0.0
      %817 = vmatpush1.msra.mxu0 %v669
      %818 = vmatprep.subr.mxu0 0.0
      %819 = vmatpush1.msra.mxu0 %v670
      %820 = vmatprep.subr.mxu0 0.0
      %821 = vmatpush1.msra.mxu0 %v671
      %822 = vmatprep.subr.mxu0 0.0
      %823 = vmatpush1.msra.mxu0 %v672
      %824 = vmatprep.subr.mxu0 0.0
      %825 = vmatpush1.msra.mxu0 %v673
      %826 = vmatprep.subr.mxu0 0.0
      %827 = vmatpush1.msra.mxu0 %v674
      %828 = vmatprep.subr.mxu0 0.0
      %829 = vmatpush1.msra.mxu0 %v675
      %830 = vmatprep.subr.mxu0 0.0
      %831 = vmatpush1.msra.mxu0 %v676
      %832 = vmatprep.subr.mxu0 0.0
      %833 = vmatpush1.msra.mxu0 %v677
      %834 = vmatprep.subr.mxu0 0.0
      %835 = vmatpush1.msra.mxu0 %v678
      %836 = vmatprep.subr.mxu0 0.0
      %837 = vmatpush1.msra.mxu0 %v679
      %838 = vmatprep.subr.mxu0 0.0
      %839 = vmatpush1.msra.mxu0 %v680
      %840 = vmatprep.subr.mxu0 0.0
      %841 = vmatpush1.msra.mxu0 %v681
      %842 = vmatprep.subr.mxu0 0.0
      %843 = vmatpush1.msra.mxu0 %v682
      %844 = vmatprep.subr.mxu0 0.0
      %845 = vmatpush1.msra.mxu0 %v683
      %846 = vmatprep.subr.mxu0 0.0
      %847 = vmatpush1.msra.mxu0 %v684
      %848 = vmatprep.subr.mxu0 0.0
      %849 = vmatpush1.msra.mxu0 %v685
      %850 = vmatprep.subr.mxu0 0.0
      %851 = vmatpush1.msra.mxu0 %v686
      %852 = vmatprep.subr.mxu0 0.0
      %853 = vmatpush1.msra.mxu0 %v687
      %854 = vmatprep.subr.mxu0 0.0
      %855 = vmatpush1.msra.mxu0 %v688
      %856 = vmatprep.mubr.f32.mxu0 %v650
      %857 = vmatmul.mubr.f32.gmra.mrb[0].mxu0 %v649
      %v858 = vpop.f32.mrb[0].mxu0
      %v859 = vadd.f32 %v790, %v858
      %v860 = vpop.f32.mrb[0].mxu0
      %861 = vdwg.mxu0
      %862 = vmatprep.subr.mxu0 0.0
      %863 = vmatpush1.msra.mxu0 %v689
      %864 = vmatprep.subr.mxu0 0.0
      %865 = vmatpush1.msra.mxu0 %v690
      %866 = vmatprep.subr.mxu0 0.0
      %867 = vmatpush1.msra.mxu0 %v691
      %868 = vmatprep.subr.mxu0 0.0
      %869 = vmatpush1.msra.mxu0 %v692
      %870 = vmatprep.subr.mxu0 0.0
      %871 = vmatpush1.msra.mxu0 %v693
      %872 = vmatprep.subr.mxu0 0.0
      %873 = vmatpush1.msra.mxu0 %v694
      %874 = vmatprep.subr.mxu0 0.0
      %875 = vmatpush1.msra.mxu0 %v695
      %876 = vmatprep.subr.mxu0 0.0
      %877 = vmatpush1.msra.mxu0 %v696
      %878 = vmatprep.subr.mxu0 0.0
      %879 = vmatpush1.msra.mxu0 %v697
      %880 = vmatprep.subr.mxu0 0.0
      %881 = vmatpush1.msra.mxu0 %v698
      %882 = vmatprep.subr.mxu0 0.0
      %883 = vmatpush1.msra.mxu0 %v699
      %884 = vmatprep.subr.mxu0 0.0
      %885 = vmatpush1.msra.mxu0 %v700
      %886 = vmatprep.subr.mxu0 0.0
      %887 = vmatpush1.msra.mxu0 %v701
      %888 = vmatprep.subr.mxu0 0.0
      %889 = vmatpush1.msra.mxu0 %v702
      %890 = vmatprep.subr.mxu0 0.0
      %891 = vmatpush1.msra.mxu0 %v703
      %892 = vmatprep.subr.mxu0 0.0
      %893 = vmatpush1.msra.mxu0 %v704
      %894 = vmatprep.subr.mxu0 0.0
      %895 = vmatpush1.msra.mxu0 %v705
      %896 = vmatprep.subr.mxu0 0.0
      %897 = vmatpush1.msra.mxu0 %v706
      %898 = vmatprep.subr.mxu0 0.0
      %899 = vmatpush1.msra.mxu0 %v707
      %900 = vmatprep.subr.mxu0 0.0
      %901 = vmatpush1.msra.mxu0 %v708
      %902 = vmatprep.subr.mxu0 0.0
      %903 = vmatpush1.msra.mxu0 %v709
      %904 = vmatprep.subr.mxu0 0.0
      %905 = vmatpush1.msra.mxu0 %v710
      %906 = vmatprep.subr.mxu0 0.0
      %907 = vmatpush1.msra.mxu0 %v711
      %908 = vmatprep.subr.mxu0 0.0
      %909 = vmatpush1.msra.mxu0 %v712
      %910 = vmatprep.subr.mxu0 0.0
      %911 = vmatpush1.msra.mxu0 %v713
      %912 = vmatprep.subr.mxu0 0.0
      %913 = vmatpush1.msra.mxu0 %v714
      %914 = vmatprep.subr.mxu0 0.0
      %915 = vmatpush1.msra.mxu0 %v715
      %916 = vmatprep.subr.mxu0 0.0
      %917 = vmatpush1.msra.mxu0 %v716
      %918 = vmatprep.subr.mxu0 0.0
      %919 = vmatpush1.msra.mxu0 %v717
      %920 = vmatprep.subr.mxu0 0.0
      %921 = vmatpush1.msra.mxu0 %v718
      %922 = vmatprep.subr.mxu0 0.0
      %923 = vmatpush1.msra.mxu0 %v719
      %924 = vmatprep.subr.mxu0 0.0
      %925 = vmatpush1.msra.mxu0 %v720
      %926 = vmatprep.mubr.f32.mxu0 %v652
      %927 = vmatmul.mubr.f32.gmra.mrb[0].mxu0 %v651
      %v928 = vpop.f32.mrb[0].mxu0
      %v929 = vadd.f32 %v859, %v928
      %v930 = vpop.f32.mrb[0].mxu0
      %931 = vdwg.mxu0
      %932 = vmatprep.subr.mxu0 0.0
      %933 = vmatpush1.msra.mxu0 %v721
      %934 = vmatprep.subr.mxu0 0.0
      %935 = vmatpush1.msra.mxu0 %v722
      %936 = vmatprep.subr.mxu0 0.0
      %937 = vmatpush1.msra.mxu0 %v723
      %938 = vmatprep.subr.mxu0 0.0
      %939 = vmatpush1.msra.mxu0 %v724
      %940 = vmatprep.subr.mxu0 0.0
      %941 = vmatpush1.msra.mxu0 %v725
      %942 = vmatprep.subr.mxu0 0.0
      %943 = vmatpush1.msra.mxu0 %v726
      %944 = vmatprep.subr.mxu0 0.0
      %945 = vmatpush1.msra.mxu0 %v727
      %946 = vmatprep.subr.mxu0 0.0
      %947 = vmatpush1.msra.mxu0 %v728
      %948 = vmatprep.subr.mxu0 0.0
      %949 = vmatpush1.msra.mxu0 %v729
      %950 = vmatprep.subr.mxu0 0.0
      %951 = vmatpush1.msra.mxu0 %v730
      %952 = vmatprep.subr.mxu0 0.0
      %953 = vmatpush1.msra.mxu0 %v731
      %954 = vmatprep.subr.mxu0 0.0
      %955 = vmatpush1.msra.mxu0 %v732
      %956 = vmatprep.subr.mxu0 0.0
      %957 = vmatpush1.msra.mxu0 %v733
      %958 = vmatprep.subr.mxu0 0.0
      %959 = vmatpush1.msra.mxu0 %v734
      %960 = vmatprep.subr.mxu0 0.0
      %961 = vmatpush1.msra.mxu0 %v735
      %962 = vmatprep.subr.mxu0 0.0
      %963 = vmatpush1.msra.mxu0 %v736
      %964 = vmatprep.subr.mxu0 0.0
      %965 = vmatpush1.msra.mxu0 %v737
      %966 = vmatprep.subr.mxu0 0.0
      %967 = vmatpush1.msra.mxu0 %v738
      %968 = vmatprep.subr.mxu0 0.0
      %969 = vmatpush1.msra.mxu0 %v739
      %970 = vmatprep.subr.mxu0 0.0
      %971 = vmatpush1.msra.mxu0 %v740
      %972 = vmatprep.subr.mxu0 0.0
      %973 = vmatpush1.msra.mxu0 %v741
      %974 = vmatprep.subr.mxu0 0.0
      %975 = vmatpush1.msra.mxu0 %v742
      %976 = vmatprep.subr.mxu0 0.0
      %977 = vmatpush1.msra.mxu0 %v743
      %978 = vmatprep.subr.mxu0 0.0
      %979 = vmatpush1.msra.mxu0 %v744
      %980 = vmatprep.subr.mxu0 0.0
      %981 = vmatpush1.msra.mxu0 %v745
      %982 = vmatprep.subr.mxu0 0.0
      %983 = vmatpush1.msra.mxu0 %v746
      %984 = vmatprep.subr.mxu0 0.0
      %985 = vmatpush1.msra.mxu0 %v747
      %986 = vmatprep.subr.mxu0 0.0
      %987 = vmatpush1.msra.mxu0 %v748
      %988 = vmatprep.subr.mxu0 0.0
      %989 = vmatpush1.msra.mxu0 %v749
      %990 = vmatprep.subr.mxu0 0.0
      %991 = vmatpush1.msra.mxu0 %v750
      %992 = vmatprep.subr.mxu0 0.0
      %993 = vmatpush1.msra.mxu0 %v751
      %994 = vmatprep.subr.mxu0 0.0
      %995 = vmatpush1.msra.mxu0 %v752
      %996 = vmatprep.mubr.f32.mxu0 %v654
      %997 = vmatmul.mubr.f32.gmra.mrb[0].mxu0 %v653
      %v998 = vpop.f32.mrb[0].mxu0
      %v999 = vadd.f32 %v929, %v998
      %v1000 = vpop.f32.mrb[0].mxu0
      %1001 = vdwg.mxu0
      %1002 = vmatprep.subr.mxu0 0.0
      %1003 = vmatpush1.msra.mxu0 %v753
      %1004 = vmatprep.subr.mxu0 0.0
      %1005 = vmatpush1.msra.mxu0 %v754
      %1006 = vmatprep.subr.mxu0 0.0
      %1007 = vmatpush1.msra.mxu0 %v755
      %1008 = vmatprep.subr.mxu0 0.0
      %1009 = vmatpush1.msra.mxu0 %v756
      %1010 = vmatprep.subr.mxu0 0.0
      %1011 = vmatpush1.msra.mxu0 %v757
      %1012 = vmatprep.subr.mxu0 0.0
      %1013 = vmatpush1.msra.mxu0 %v758
      %1014 = vmatprep.subr.mxu0 0.0
      %1015 = vmatpush1.msra.mxu0 %v759
      %1016 = vmatprep.subr.mxu0 0.0
      %1017 = vmatpush1.msra.mxu0 %v760
      %1018 = vmatprep.subr.mxu0 0.0
      %1019 = vmatpush1.msra.mxu0 %v761
      %1020 = vmatprep.subr.mxu0 0.0
      %1021 = vmatpush1.msra.mxu0 %v762
      %1022 = vmatprep.subr.mxu0 0.0
      %1023 = vmatpush1.msra.mxu0 %v763
      %1024 = vmatprep.subr.mxu0 0.0
      %1025 = vmatpush1.msra.mxu0 %v764
      %1026 = vmatprep.subr.mxu0 0.0
      %1027 = vmatpush1.msra.mxu0 %v765
      %1028 = vmatprep.subr.mxu0 0.0
      %1029 = vmatpush1.msra.mxu0 %v766
      %1030 = vmatprep.subr.mxu0 0.0
      %1031 = vmatpush1.msra.mxu0 %v767
      %1032 = vmatprep.subr.mxu0 0.0
      %1033 = vmatpush1.msra.mxu0 %v768
      %1034 = vmatprep.subr.mxu0 0.0
      %1035 = vmatpush1.msra.mxu0 %v769
      %1036 = vmatprep.subr.mxu0 0.0
      %1037 = vmatpush1.msra.mxu0 %v770
      %1038 = vmatprep.subr.mxu0 0.0
      %1039 = vmatpush1.msra.mxu0 %v771
      %1040 = vmatprep.subr.mxu0 0.0
      %1041 = vmatpush1.msra.mxu0 %v772
      %1042 = vmatprep.subr.mxu0 0.0
      %1043 = vmatpush1.msra.mxu0 %v773
      %1044 = vmatprep.subr.mxu0 0.0
      %1045 = vmatpush1.msra.mxu0 %v774
      %1046 = vmatprep.subr.mxu0 0.0
      %1047 = vmatpush1.msra.mxu0 %v775
      %1048 = vmatprep.subr.mxu0 0.0
      %1049 = vmatpush1.msra.mxu0 %v776
      %1050 = vmatprep.subr.mxu0 0.0
      %1051 = vmatpush1.msra.mxu0 %v777
      %1052 = vmatprep.subr.mxu0 0.0
      %1053 = vmatpush1.msra.mxu0 %v778
      %1054 = vmatprep.subr.mxu0 0.0
      %1055 = vmatpush1.msra.mxu0 %v779
      %1056 = vmatprep.subr.mxu0 0.0
      %1057 = vmatpush1.msra.mxu0 %v780
      %1058 = vmatprep.subr.mxu0 0.0
      %1059 = vmatpush1.msra.mxu0 %v781
      %1060 = vmatprep.subr.mxu0 0.0
      %1061 = vmatpush1.msra.mxu0 %v782
      %1062 = vmatprep.subr.mxu0 0.0
      %1063 = vmatpush1.msra.mxu0 %v783
      %1064 = vmatprep.subr.mxu0 0.0
      %1065 = vmatpush1.msra.mxu0 %v784
      %1066 = vmatprep.mubr.f32.mxu0 %v656
      %1067 = vmatmul.mubr.f32.gmra.mrb[0].mxu0 %v655
      %v1068 = vpop.f32.mrb[0].mxu0
      %v1069 = vadd.f32 %v999, %v1068
      %v1070 = vpop.f32.mrb[0].mxu0
      %1071 = vdwg.mxu0
      %vm1072 = vcmask 517120
      %1073 = vst.msk [vmem:[%s306] sm:$0x3] %vm1072, %v1069
      %1075 = vrot.lane.b32.xlu0 %v1069, 8
      %v1076 = vpop.permute.xlu0 %1075
      %v1078 = vsub.f32 %v1069, %v1076
      %v1079 = vand.u32 2147483647, %v1078
      %1080 = vrot.lane.b32.xlu0 %v1069, 1
      %v1081 = vpop.permute.xlu0 %1080
      %v1083 = vsub.f32 %v1069, %v1081
      %v1084 = vand.u32 2147483647, %v1083
      %v1085 = vlaneseq
      %v1086 = vand.u32 %v1085, 127
      %v1087 = vadd.s32 %v1086, 1
      %vm1088 = vcmp.lt.s32.totalorder %v1087, 0
      %v1089 = vsub.s32 0, %v1087
      %v1090 = vsel %vm1088, %v1089, %v1087
      %v1091 = vshrl.u32 %v1090, 3
      %v1092 = vand.u32 %v1090, 7
      %v1093 = vsub.s32 0, %v1092
      %v1094 = vsel %vm1088, %v1093, %v1092
      %vm1095 = vcmp.ne.s32.totalorder %v1094, 0
      %vm1096 = vcmp.lt.s32.totalorder %v1094, 0
      %vm1097 = vmand %vm1096, %vm1095
      %v1098 = vadd.s32 %v1094, 8
      %v1099 = vsel %vm1097, %v1098, %v1094
      %vm1100 = vcmp.ne.s32.totalorder %v1099, 0
      %1102 = vrot.lane.b32.xlu0 %v1079, 120
      %v1103 = vpop.permute.xlu0 %1102
      %vm1105 = vcmask 451584
      %v1106 = vsel %vm1105, %v1103, 0.0
      %1107 = vadd.xlane.f32.xlu0 %v1106
      %v1108 = vpop.xlane.xlu0 %1107
      %vm1109 = vcmask 1041408
      %v1110 = vsel %vm1109, %v1108, 0.0
      %v1111 = vrot.slane %v1110, 4
      %v1112 = vadd.f32 %v1110, %v1111
      %v1113 = vrot.slane %v1112, 2
      %v1114 = vadd.f32 %v1112, %v1113
      %v1115 = vrot.slane %v1114, 1
      %v1116 = vadd.f32 %v1114, %v1115
      %1118 = vrot.lane.b32.xlu0 %v1084, 127
      %v1119 = vpop.permute.xlu0 %1118
      %v1121 = vsel %vm1100, %v1119, 0.0
      %vm1122 = vcmask 508928
      %v1123 = vsel %vm1122, %v1121, 0.0
      %1124 = vadd.xlane.f32.xlu0 %v1123
      %v1125 = vpop.xlane.xlu0 %1124
      %v1126 = vsel %vm1109, %v1125, 0.0
      %v1127 = vrot.slane %v1126, 4
      %v1128 = vadd.f32 %v1126, %v1127
      %v1129 = vrot.slane %v1128, 2
      %v1130 = vadd.f32 %v1128, %v1129
      %v1131 = vrot.slane %v1130, 1
      %v1132 = vadd.f32 %v1130, %v1131
      %v1133 = vadd.f32 %v1116, %v1132
      %vm1134 = vcmask 0
      %1135 = vst.msk [vmem:[%s309] sm:$0x1] %vm1134, %v1133
      %p1136 = scmp.lt.s32.totalorder %s18, 3
      %s1137 = scalar_select %p1136, %s18, 3
      %s1138 = smul.addr %s1137, 2
      %s1139 = scalar_lea.vmem %s5, %s1138
      %p1140 = scmp.lt.s32.totalorder %s18, 3
      %s1141 = scalar_select %p1140, %s18, 3
      %s1142 = scalar_lea.vmem %s6, %s1141
      // Predicated region
      $region41: #{_lambda_.22} parent=39 // pred_check
        %p1143 = pneg %p161
      $region42: #{_lambda_.22} parent=39 // pred_check_branch
        %1145 = sbr.rel (%p1143) target = $region44
      $region43: #{_lambda_.22} parent=39 // pred_region
        _
      $region44: #{_lambda_.22} parent=39 // pred_fallthru
        _
      // Predicated region
      $region45: #{_lambda_.22} parent=39 // pred_check
        %p1146 = pneg %p187
      $region46: #{_lambda_.22} parent=39 // pred_check_branch
        %1148 = sbr.rel (%p1146) target = $region48
      $region47: #{_lambda_.22} parent=39 // pred_region
        _
      $region48: #{_lambda_.22} parent=39 // pred_fallthru
        _
    $region40: #{_lambda_.22} parent=5 // pred_fallthru
      _
    %p1149 = scmp.le.s32.totalorder 2, %s13
    // Predicated region
    $region49: #{_lambda_.22} parent=5 // pred_check
      %p1150 = pneg %p1149
    $region50: #{_lambda_.22} parent=5 // pred_check_branch
      %1152 = sbr.rel (%p1150) target = $region52
    $region51: #{_lambda_.22} parent=5 // pred_region
      %s1153 = ssub.s32 %s13, 2
      // Predicated region
      $region53: #{_lambda_.22} parent=51 // pred_check
        %p1154 = pneg %p167
      $region54: #{_lambda_.22} parent=51 // pred_check_branch
        %1156 = sbr.rel (%p1154) target = $region56
      $region55: #{_lambda_.22} parent=51 // pred_region
        %p1157 = scmp.lt.s32.totalorder %s19, 3
        %s1158 = scalar_select %p1157, %s19, 3
        %s1159 = smul.addr %s1158, 2
        %s1160 = scalar_lea.vmem %s5, %s1159
      $region56: #{_lambda_.22} parent=51 // pred_fallthru
        _
      // Predicated region
      $region57: #{_lambda_.22} parent=51 // pred_check
        %p1161 = pneg %p193
      $region58: #{_lambda_.22} parent=51 // pred_check_branch
        %1163 = sbr.rel (%p1161) target = $region60
      $region59: #{_lambda_.22} parent=51 // pred_region
        %p1164 = scmp.lt.s32.totalorder %s19, 3
        %s1165 = scalar_select %p1164, %s19, 3
        %s1166 = scalar_lea.vmem %s6, %s1165
      $region60: #{_lambda_.22} parent=51 // pred_fallthru
        _
    $region52: #{_lambda_.22} parent=5 // pred_fallthru
      _
  $region6: #{_lambda_.22} parent=0 // loop_footer
    %s17 = sadd.s32 1, %s13
  $region7: #{_lambda_.22} parent=0 // loop_footer_branch
    %12 = sbr.rel target = $region3
  $region8: #{_lambda_.22} parent=0 // loop_exit
    _

</llo_original>
